<compile_context>
chip_gen: v6e
topology: v6e:2x2x1
jax: 0.10.0
libtpu: 0.0.40
codegen_flags: <defaults>
</compile_context>

<pallas_src>
import functools

import numpy as np

import jax
import jax.numpy as jnp
from jax.experimental import pallas as pl
from jax.experimental.pallas import tpu as pltpu


# ----------------------------------------------------------------------------
# Host-side constants: block-diagonal 0/1 row-selection matrices for the pools
# ----------------------------------------------------------------------------
@functools.lru_cache(maxsize=None)
def _pool_selectors(T):
    # pool1: z1 rows are per-image 32-row blocks (rows 0..27 valid);
    #        p1 rows are per-image 16-row blocks (rows 0..13 valid).
    r1e = np.zeros((T * 16, T * 32), np.float32)
    r1o = np.zeros((T * 16, T * 32), np.float32)
    for t in range(T):
        for q in range(14):
            r1e[t * 16 + q, t * 32 + 2 * q] = 1.0
            r1o[t * 16 + q, t * 32 + 2 * q + 1] = 1.0
    # pool2: z2 rows are per-image 16-row blocks (rows 0..9 valid);
    #        p2 rows are grouped py-major: row py*T + t  (py in 0..4).
    r2e = np.zeros((5 * T, T * 16), np.float32)
    r2o = np.zeros((5 * T, T * 16), np.float32)
    for py in range(5):
        for t in range(T):
            r2e[py * T + t, t * 16 + 2 * py] = 1.0
            r2o[py * T + t, t * 16 + 2 * py + 1] = 1.0
    bf = jnp.bfloat16
    return (jnp.asarray(r1e, bf), jnp.asarray(r1o, bf),
            jnp.asarray(r2e, bf), jnp.asarray(r2o, bf))


# ----------------------------------------------------------------------------
# Fused LeNet kernel: T images per grid step
# ----------------------------------------------------------------------------
def _lenet_kernel(T, a1_ref, w1_ref, b1_ref, r1e_ref, r1o_ref,
                  w2_ref, b2_ref, r2e_ref, r2o_ref,
                  fc1w_ref, fc1b_ref, fc2w_ref, fc2b_ref, fc3w_ref, fc3b_ref,
                  out_ref, p1s_ref):
    f32, bf16 = jnp.float32, jnp.bfloat16
    T16 = 16 * T

    # ---- conv1: row taps folded into K (operand prebuilt in the wrapper) ----
    # z1[t*32 + r, col1(co, ox)] = conv1 output (before bias) at (co, r, ox),
    # with even-ox columns in lanes [0,128) and odd-ox columns in [128,256).
    z1 = jnp.dot(a1_ref[...], w1_ref[...], preferred_element_type=f32)
    z1 = jnp.maximum(z1 + b1_ref[...], 0.0)
    # pool1, x direction: elementwise max of the two 128-lane halves (VPU).
    z1c = jnp.maximum(z1[:, 0:128], z1[:, 128:256]).astype(bf16)
    # pool1, y direction: exact 0/1 block-diagonal row-selection matmuls.
    p1 = jnp.maximum(
        jnp.dot(r1e_ref[...], z1c, preferred_element_type=f32),
        jnp.dot(r1o_ref[...], z1c, preferred_element_type=f32))
    # p1: (T*16, 128) f32; per-image rows 0..13 valid, lanes [c*14 + x] valid.

    # ---- conv2: row taps folded into K via a zero-tailed shift scratch ------
    p1s_ref[0:T16, :] = p1
    p1s_ref[T16:T16 + 8, :] = jnp.zeros((8, 128), f32)
    z2 = jnp.zeros((T16, 256), f32)
    for di in range(5):
        z2 = z2 + jnp.dot(p1s_ref[di:di + T16, :].astype(bf16), w2_ref[di],
                          preferred_element_type=f32)
    z2 = jnp.maximum(z2 + b2_ref[...], 0.0)
    # pool2, x direction (even/odd halves) then y direction (selection matmuls).
    z2c = jnp.maximum(z2[:, 0:128], z2[:, 128:256]).astype(bf16)
    p2 = jnp.maximum(
        jnp.dot(r2e_ref[...], z2c, preferred_element_type=f32),
        jnp.dot(r2o_ref[...], z2c, preferred_element_type=f32)).astype(bf16)
    # p2: (5*T, 128); row py*T + t = image t, pooled row py, lanes [co*5 + px].

    # ---- fc1 / fc2 / fc3 ----------------------------------------------------
    h = jnp.zeros((T, 128), f32)
    for py in range(5):                       # 8-aligned static row slices
        h = h + jnp.dot(p2[py * T:(py + 1) * T, :], fc1w_ref[py],
                        preferred_element_type=f32)
    h = jnp.maximum(h + fc1b_ref[...], 0.0).astype(bf16)
    h = jnp.maximum(
        jnp.dot(h, fc2w_ref[...], preferred_element_type=f32) + fc2b_ref[...],
        0.0).astype(bf16)
    out_ref[...] = (jnp.dot(h, fc3w_ref[...], preferred_element_type=f32)
                    + fc3b_ref[...])


def lenet_forward(prep, x, *, nb_classes, T=8):
    """x: (B, Cin, 28, 28) float32 -> logits (B, nb_classes)."""
    B, cin, H, W = x.shape
    assert (H, W) == (28, 28), "fc1 expects 16*5*5 features -> 28x28 input"
    assert T % 8 == 0, "T must be a multiple of 8 (unmasked (T,128) stores)"
    assert prep["w1"].shape[0] == 5 * cin * 32, "prep/input channel mismatch"

    Bp = ((B + T - 1) // T) * T
    if Bp != B:
        x = jnp.pad(x, ((0, Bp - B), (0, 0), (0, 0), (0, 0)))

    # conv1 operand with the 5 row taps folded into K (built outside the
    # kernel on a tiny tensor): a1[b*32 + r, di*cin*32 + c*32 + j]
    #   = x_padded[b, c, r + di, j]   (pad = 2 top/left, 2 right, 6 bottom).
    xp = jnp.pad(x, ((0, 0), (0, 0), (2, 6), (2, 2)))          # (Bp,cin,36,32)
    taps = jnp.stack([xp[:, :, d:d + 32, :] for d in range(5)], axis=1)
    a1 = jnp.transpose(taps, (0, 3, 1, 2, 4)).reshape(Bp * 32, 5 * cin * 32)
    a1 = a1.astype(jnp.bfloat16)

    r1e, r1o, r2e, r2o = _pool_selectors(T)
    K1 = 5 * cin * 32
    G = Bp // T

    out = pl.pallas_call(
        functools.partial(_lenet_kernel, T),
        out_shape=jax.ShapeDtypeStruct((Bp, 128), jnp.float32),
        grid=(G,),
        in_specs=[
            pl.BlockSpec((T * 32, K1), lambda g: (g, 0)),        # a1
            pl.BlockSpec((K1, 256), lambda g: (0, 0)),           # w1 (K-folded)
            pl.BlockSpec((1, 256), lambda g: (0, 0)),            # b1
            pl.BlockSpec((T * 16, T * 32), lambda g: (0, 0)),    # pool1 even
            pl.BlockSpec((T * 16, T * 32), lambda g: (0, 0)),    # pool1 odd
            pl.BlockSpec((5, 128, 256), lambda g: (0, 0, 0)),    # w2 (K-folded)
            pl.BlockSpec((1, 256), lambda g: (0, 0)),            # b2
            pl.BlockSpec((5 * T, T * 16), lambda g: (0, 0)),     # pool2 even
            pl.BlockSpec((5 * T, T * 16), lambda g: (0, 0)),     # pool2 odd
            pl.BlockSpec((5, 128, 128), lambda g: (0, 0, 0)),    # fc1 w
            pl.BlockSpec((1, 128), lambda g: (0, 0)),            # fc1 b
            pl.BlockSpec((128, 128), lambda g: (0, 0)),          # fc2 w
            pl.BlockSpec((1, 128), lambda g: (0, 0)),            # fc2 b
            pl.BlockSpec((128, 128), lambda g: (0, 0)),          # fc3 w
            pl.BlockSpec((1, 128), lambda g: (0, 0)),            # fc3 b
        ],
        out_specs=pl.BlockSpec((T, 128), lambda g: (g, 0)),
        scratch_shapes=[pltpu.VMEM((T * 16 + 8, 128), jnp.float32)],
        compiler_params=pltpu.CompilerParams(
            dimension_semantics=("parallel",)),
    )(a1, prep["w1"], prep["b1"], r1e, r1o, prep["w2"], prep["b2"],
      r2e, r2o, prep["fc1_w"], prep["fc1_b"], prep["fc2_w"], prep["fc2_b"],
      prep["fc3_w"], prep["fc3_b"])
    return out[:B, :nb_classes]


# ----------------------------------------------------------------------------
# Parameters: PyTorch-style init + one-time host-side repack for the kernel
# ----------------------------------------------------------------------------
def init_lenet_params(key, input_dim, nb_classes):
    def uinit(k, shape, fan_in):
        bound = 1.0 / float(fan_in) ** 0.5
        return jax.random.uniform(k, shape, jnp.float32, -bound, bound)

    ks = jax.random.split(key, 10)
    return {
        "conv1_w": uinit(ks[0], (6, input_dim, 5, 5), input_dim * 25),
        "conv1_b": uinit(ks[1], (6,), input_dim * 25),
        "conv2_w": uinit(ks[2], (16, 6, 5, 5), 6 * 25),
        "conv2_b": uinit(ks[3], (16,), 6 * 25),
        "fc1_w": uinit(ks[4], (120, 16 * 5 * 5), 16 * 5 * 5),
        "fc1_b": uinit(ks[5], (120,), 16 * 5 * 5),
        "fc2_w": uinit(ks[6], (84, 120), 120),
        "fc2_b": uinit(ks[7], (84,), 120),
        "fc3_w": uinit(ks[8], (nb_classes, 84), 84),
        "fc3_b": uinit(ks[9], (nb_classes,), 84),
    }


def prepare_lenet_params(params, nb_classes):
    """One-time host repack.

    * conv weights become K-folded band matrices (taps along K); their output
      columns put even/odd x positions in separate 128-lane halves so x-pooling
      is a lane max in the kernel.
    * fc weights are pre-transposed, regrouped to the kernel's feature layout
      and zero-padded to 128 lanes.
    """
    w1 = np.asarray(params["conv1_w"], np.float32)   # (6, cin, 5, 5)
    b1 = np.asarray(params["conv1_b"], np.float32)
    w2 = np.asarray(params["conv2_w"], np.float32)   # (16, 6, 5, 5)
    b2 = np.asarray(params["conv2_b"], np.float32)
    f1w = np.asarray(params["fc1_w"], np.float32)    # (120, 400)
    f1b = np.asarray(params["fc1_b"], np.float32)
    f2w = np.asarray(params["fc2_w"], np.float32)    # (84, 120)
    f2b = np.asarray(params["fc2_b"], np.float32)
    f3w = np.asarray(params["fc3_w"], np.float32)    # (ncls, 84)
    f3b = np.asarray(params["fc3_b"], np.float32)

    cin = w1.shape[1]
    assert w1.shape[0] == 6 and w2.shape == (16, 6, 5, 5)
    assert f1w.shape == (120, 400) and f2w.shape == (84, 120)
    assert f3w.shape == (nb_classes, 84) and nb_classes <= 128

    # conv1: (a1 @ w1k)[r, col1(co,ox)] = sum_{c,di,dj} xpad[c,r+di,ox+dj]*w1
    K1 = 5 * cin * 32
    w1k = np.zeros((K1, 256), np.float32)
    b1c = np.zeros((1, 256), np.float32)
    for co in range(6):
        for ox in range(28):
            col = (ox % 2) * 128 + co * 14 + ox // 2
            b1c[0, col] = b1[co]
            for c in range(cin):
                for di in range(5):
                    for dj in range(5):
                        w1k[di * cin * 32 + c * 32 + ox + dj, col] = \
                            w1[co, c, di, dj]

    # conv2: per-tap (128, 256) blocks; input lanes are [c*14 + x].
    w2k = np.zeros((5, 128, 256), np.float32)
    b2c = np.zeros((1, 256), np.float32)
    for co in range(16):
        for ox in range(10):
            col = (ox % 2) * 128 + co * 5 + ox // 2
            b2c[0, col] = b2[co]
            for c in range(6):
                for di in range(5):
                    for dj in range(5):
                        w2k[di, c * 14 + ox + dj, col] = w2[co, c, di, dj]

    # fc1 regrouped to the kernel's (py, co*5+px) feature layout, padded to 128
    fc1w_g = np.zeros((5, 128, 128), np.float32)
    for py in range(5):
        for co in range(16):
            for px in range(5):
                fc1w_g[py, co * 5 + px, :120] = f1w[:, co * 25 + py * 5 + px]
    fc1b_p = np.zeros((1, 128), np.float32)
    fc1b_p[0, :120] = f1b
    fc2w_p = np.zeros((128, 128), np.float32)
    fc2w_p[:120, :84] = f2w.T
    fc2b_p = np.zeros((1, 128), np.float32)
    fc2b_p[0, :84] = f2b
    fc3w_p = np.zeros((128, 128), np.float32)
    fc3w_p[:84, :nb_classes] = f3w.T
    fc3b_p = np.zeros((1, 128), np.float32)
    fc3b_p[0, :nb_classes] = f3b

    bf = jnp.bfloat16
    return {
        "w1": jnp.asarray(w1k, bf), "b1": jnp.asarray(b1c),
        "w2": jnp.asarray(w2k, bf), "b2": jnp.asarray(b2c),
        "fc1_w": jnp.asarray(fc1w_g, bf), "fc1_b": jnp.asarray(fc1b_p),
        "fc2_w": jnp.asarray(fc2w_p, bf), "fc2_b": jnp.asarray(fc2b_p),
        "fc3_w": jnp.asarray(fc3w_p, bf), "fc3_b": jnp.asarray(fc3b_p),
    }


# ----------------------------------------------------------------------------
# Plain-JAX reference (numerical cross-check only)
# ----------------------------------------------------------------------------
def lenet_reference(params, x):
    dn = ("NCHW", "OIHW", "NCHW")
    y = jax.lax.conv_general_dilated(x, params["conv1_w"], (1, 1),
                                     ((2, 2), (2, 2)), dimension_numbers=dn)
    y = jax.nn.relu(y + params["conv1_b"][None, :, None, None])
    y = jax.lax.reduce_window(y, -jnp.inf, jax.lax.max,
                              (1, 1, 2, 2), (1, 1, 2, 2), "VALID")
    y = jax.lax.conv_general_dilated(y, params["conv2_w"], (1, 1), "VALID",
                                     dimension_numbers=dn)
    y = jax.nn.relu(y + params["conv2_b"][None, :, None, None])
    y = jax.lax.reduce_window(y, -jnp.inf, jax.lax.max,
                              (1, 1, 2, 2), (1, 1, 2, 2), "VALID")
    f = y.reshape(y.shape[0], -1)
    h = jax.nn.relu(f @ params["fc1_w"].T + params["fc1_b"])
    h = jax.nn.relu(h @ params["fc2_w"].T + params["fc2_b"])
    return h @ params["fc3_w"].T + params["fc3_b"]


if __name__ == "__main__":
    key = jax.random.PRNGKey(0)
    k_param, k_x = jax.random.split(key)

    batch, input_dim = 2, 1          # 28x28 input is required by fc1 (16*5*5)
    nb_classes = 10

    params = init_lenet_params(k_param, input_dim, nb_classes)
    prep = prepare_lenet_params(params, nb_classes)
    x = jax.random.normal(k_x, (batch, input_dim, 28, 28), dtype=jnp.float32)

    fwd = jax.jit(functools.partial(lenet_forward, nb_classes=nb_classes))
    logits = fwd(prep, x)
    jax.block_until_ready(logits)
    assert logits.shape == (batch, nb_classes)

    # Cross-check against the plain-JAX reference (bf16 operands in the kernel
    # -> loose tolerance).
    ref = lenet_reference(params, x)
    max_err = float(jnp.max(jnp.abs(logits - ref)))
    assert max_err < 5e-2, f"kernel/reference mismatch: {max_err}"
    print("KERNEL_OK")
</pallas_src>

<mosaic_0001>
module attributes {stable_mosaic.version = 11 : i64} {
  func.func @_lenet_kernel(%arg0: i32, %arg1: memref<256x160xbf16, #tpu.memory_space<vmem>>, %arg2: memref<160x256xbf16, #tpu.memory_space<vmem>>, %arg3: memref<1x256xf32, #tpu.memory_space<vmem>>, %arg4: memref<128x256xbf16, #tpu.memory_space<vmem>>, %arg5: memref<128x256xbf16, #tpu.memory_space<vmem>>, %arg6: memref<5x128x256xbf16, #tpu.memory_space<vmem>>, %arg7: memref<1x256xf32, #tpu.memory_space<vmem>>, %arg8: memref<40x128xbf16, #tpu.memory_space<vmem>>, %arg9: memref<40x128xbf16, #tpu.memory_space<vmem>>, %arg10: memref<5x128x128xbf16, #tpu.memory_space<vmem>>, %arg11: memref<1x128xf32, #tpu.memory_space<vmem>>, %arg12: memref<128x128xbf16, #tpu.memory_space<vmem>>, %arg13: memref<1x128xf32, #tpu.memory_space<vmem>>, %arg14: memref<128x128xbf16, #tpu.memory_space<vmem>>, %arg15: memref<1x128xf32, #tpu.memory_space<vmem>>, %arg16: memref<8x128xf32, #tpu.memory_space<vmem>>, %arg17: memref<136x128xf32, #tpu.memory_space<vmem>>) attributes {dimension_semantics = [#tpu.dimension_semantics<parallel>], iteration_bounds = array<i64: 1>, scalar_prefetch = 0 : i64, scratch_operands = 1 : i64, tpu.core_type = #tpu.core_type<tc>, window_params = [{transform_indices = @transform_0, window_bounds = array<i64: 256, 160>}, {pipeline_mode = #tpu.pipeline_mode<synchronous>, transform_indices = @transform_1, window_bounds = array<i64: 160, 256>}, {pipeline_mode = #tpu.pipeline_mode<synchronous>, transform_indices = @transform_2, window_bounds = array<i64: 1, 256>}, {pipeline_mode = #tpu.pipeline_mode<synchronous>, transform_indices = @transform_3, window_bounds = array<i64: 128, 256>}, {pipeline_mode = #tpu.pipeline_mode<synchronous>, transform_indices = @transform_4, window_bounds = array<i64: 128, 256>}, {pipeline_mode = #tpu.pipeline_mode<synchronous>, transform_indices = @transform_5, window_bounds = array<i64: 5, 128, 256>}, {pipeline_mode = #tpu.pipeline_mode<synchronous>, transform_indices = @transform_6, window_bounds = array<i64: 1, 256>}, {pipeline_mode = #tpu.pipeline_mode<synchronous>, transform_indices = @transform_7, window_bounds = array<i64: 40, 128>}, {pipeline_mode = #tpu.pipeline_mode<synchronous>, transform_indices = @transform_8, window_bounds = array<i64: 40, 128>}, {pipeline_mode = #tpu.pipeline_mode<synchronous>, transform_indices = @transform_9, window_bounds = array<i64: 5, 128, 128>}, {pipeline_mode = #tpu.pipeline_mode<synchronous>, transform_indices = @transform_10, window_bounds = array<i64: 1, 128>}, {pipeline_mode = #tpu.pipeline_mode<synchronous>, transform_indices = @transform_11, window_bounds = array<i64: 128, 128>}, {pipeline_mode = #tpu.pipeline_mode<synchronous>, transform_indices = @transform_12, window_bounds = array<i64: 1, 128>}, {pipeline_mode = #tpu.pipeline_mode<synchronous>, transform_indices = @transform_13, window_bounds = array<i64: 128, 128>}, {pipeline_mode = #tpu.pipeline_mode<synchronous>, transform_indices = @transform_14, window_bounds = array<i64: 1, 128>}, {transform_indices = @transform_15, window_bounds = array<i64: 8, 128>}]} {
    %c0 = arith.constant 0 : index
    %c0_0 = arith.constant 0 : index
    %0 = vector.load %arg1[%c0, %c0_0] : memref<256x160xbf16, #tpu.memory_space<vmem>>, vector<256x160xbf16>
    %c0_1 = arith.constant 0 : index
    %c0_2 = arith.constant 0 : index
    %1 = vector.load %arg2[%c0_1, %c0_2] : memref<160x256xbf16, #tpu.memory_space<vmem>>, vector<160x256xbf16>
    %cst = arith.constant dense<0.000000e+00> : vector<256x256xf32>
    %2 = tpu.matmul %0, %1, %cst {dimension_numbers = #tpu.dot_dimension_numbers<[1], [0], [0], [1], [0, 0, 1, 1], [], []>} : vector<256x160xbf16>, vector<160x256xbf16>, vector<256x256xf32> -> vector<256x256xf32>
    %c0_3 = arith.constant 0 : index
    %c0_4 = arith.constant 0 : index
    %3 = vector.load %arg3[%c0_3, %c0_4] : memref<1x256xf32, #tpu.memory_space<vmem>>, vector<1x256xf32>
    %4 = vector.broadcast %3 : vector<1x256xf32> to vector<256x256xf32>
    %5 = arith.addf %2, %4 : vector<256x256xf32>
    %cst_5 = arith.constant 0.000000e+00 : f32
    %6 = vector.broadcast %cst_5 : f32 to vector<256x256xf32>
    %7 = arith.maximumf %5, %6 : vector<256x256xf32>
    %8 = vector.extract_strided_slice %7 {offsets = [0, 0], sizes = [256, 128], strides = [1, 1]} : vector<256x256xf32> to vector<256x128xf32>
    %9 = vector.extract_strided_slice %7 {offsets = [0, 128], sizes = [256, 128], strides = [1, 1]} : vector<256x256xf32> to vector<256x128xf32>
    %10 = arith.maximumf %8, %9 : vector<256x128xf32>
    %11 = arith.truncf %10 : vector<256x128xf32> to vector<256x128xbf16>
    %c0_6 = arith.constant 0 : index
    %c0_7 = arith.constant 0 : index
    %12 = vector.load %arg4[%c0_6, %c0_7] : memref<128x256xbf16, #tpu.memory_space<vmem>>, vector<128x256xbf16>
    %cst_8 = arith.constant dense<0.000000e+00> : vector<128x128xf32>
    %13 = tpu.matmul %12, %11, %cst_8 {dimension_numbers = #tpu.dot_dimension_numbers<[1], [0], [0], [1], [0, 0, 1, 1], [], []>} : vector<128x256xbf16>, vector<256x128xbf16>, vector<128x128xf32> -> vector<128x128xf32>
    %c0_9 = arith.constant 0 : index
    %c0_10 = arith.constant 0 : index
    %14 = vector.load %arg5[%c0_9, %c0_10] : memref<128x256xbf16, #tpu.memory_space<vmem>>, vector<128x256xbf16>
    %cst_11 = arith.constant dense<0.000000e+00> : vector<128x128xf32>
    %15 = tpu.matmul %14, %11, %cst_11 {dimension_numbers = #tpu.dot_dimension_numbers<[1], [0], [0], [1], [0, 0, 1, 1], [], []>} : vector<128x256xbf16>, vector<256x128xbf16>, vector<128x128xf32> -> vector<128x128xf32>
    %16 = arith.maximumf %13, %15 : vector<128x128xf32>
    %c0_12 = arith.constant 0 : index
    %c0_13 = arith.constant 0 : index
    %17 = vector.load %arg17[%c0_12, %c0_13] : memref<136x128xf32, #tpu.memory_space<vmem>>, vector<128x128xf32>
    tpu.vector_store %arg17[%c0_12, %c0_13], %16 {strides = array<i32>} : memref<136x128xf32, #tpu.memory_space<vmem>>, vector<128x128xf32>,
    %cst_14 = arith.constant 0.000000e+00 : f32
    %18 = vector.broadcast %cst_14 : f32 to vector<8x128xf32>
    %c128 = arith.constant 128 : index
    %c0_15 = arith.constant 0 : index
    %19 = vector.load %arg17[%c128, %c0_15] : memref<136x128xf32, #tpu.memory_space<vmem>>, vector<8x128xf32>
    tpu.vector_store %arg17[%c128, %c0_15], %18 {strides = array<i32>} : memref<136x128xf32, #tpu.memory_space<vmem>>, vector<8x128xf32>,
    %cst_16 = arith.constant 0.000000e+00 : f32
    %20 = vector.broadcast %cst_16 : f32 to vector<128x256xf32>
    %c0_17 = arith.constant 0 : index
    %c0_18 = arith.constant 0 : index
    %21 = vector.load %arg17[%c0_17, %c0_18] : memref<136x128xf32, #tpu.memory_space<vmem>>, vector<128x128xf32>
    %22 = arith.truncf %21 : vector<128x128xf32> to vector<128x128xbf16>
    %c0_19 = arith.constant 0 : index
    %c0_20 = arith.constant 0 : index
    %c0_21 = arith.constant 0 : index
    %23 = vector.load %arg6[%c0_19, %c0_20, %c0_21] : memref<5x128x256xbf16, #tpu.memory_space<vmem>>, vector<1x128x256xbf16>
    %24 = vector.shape_cast %23 : vector<1x128x256xbf16> to vector<128x256xbf16>
    %cst_22 = arith.constant dense<0.000000e+00> : vector<128x256xf32>
    %25 = tpu.matmul %22, %24, %cst_22 {dimension_numbers = #tpu.dot_dimension_numbers<[1], [0], [0], [1], [0, 0, 1, 1], [], []>} : vector<128x128xbf16>, vector<128x256xbf16>, vector<128x256xf32> -> vector<128x256xf32>
    %26 = arith.addf %20, %25 : vector<128x256xf32>
    %c1 = arith.constant 1 : index
    %c0_23 = arith.constant 0 : index
    %27 = vector.load %arg17[%c1, %c0_23] : memref<136x128xf32, #tpu.memory_space<vmem>>, vector<128x128xf32>
    %28 = arith.truncf %27 : vector<128x128xf32> to vector<128x128xbf16>
    %c1_24 = arith.constant 1 : index
    %c0_25 = arith.constant 0 : index
    %c0_26 = arith.constant 0 : index
    %29 = vector.load %arg6[%c1_24, %c0_25, %c0_26] : memref<5x128x256xbf16, #tpu.memory_space<vmem>>, vector<1x128x256xbf16>
    %30 = vector.shape_cast %29 : vector<1x128x256xbf16> to vector<128x256xbf16>
    %cst_27 = arith.constant dense<0.000000e+00> : vector<128x256xf32>
    %31 = tpu.matmul %28, %30, %cst_27 {dimension_numbers = #tpu.dot_dimension_numbers<[1], [0], [0], [1], [0, 0, 1, 1], [], []>} : vector<128x128xbf16>, vector<128x256xbf16>, vector<128x256xf32> -> vector<128x256xf32>
    %32 = arith.addf %26, %31 : vector<128x256xf32>
    %c2 = arith.constant 2 : index
    %c0_28 = arith.constant 0 : index
    %33 = vector.load %arg17[%c2, %c0_28] : memref<136x128xf32, #tpu.memory_space<vmem>>, vector<128x128xf32>
    %34 = arith.truncf %33 : vector<128x128xf32> to vector<128x128xbf16>
    %c2_29 = arith.constant 2 : index
    %c0_30 = arith.constant 0 : index
    %c0_31 = arith.constant 0 : index
    %35 = vector.load %arg6[%c2_29, %c0_30, %c0_31] : memref<5x128x256xbf16, #tpu.memory_space<vmem>>, vector<1x128x256xbf16>
    %36 = vector.shape_cast %35 : vector<1x128x256xbf16> to vector<128x256xbf16>
    %cst_32 = arith.constant dense<0.000000e+00> : vector<128x256xf32>
    %37 = tpu.matmul %34, %36, %cst_32 {dimension_numbers = #tpu.dot_dimension_numbers<[1], [0], [0], [1], [0, 0, 1, 1], [], []>} : vector<128x128xbf16>, vector<128x256xbf16>, vector<128x256xf32> -> vector<128x256xf32>
    %38 = arith.addf %32, %37 : vector<128x256xf32>
    %c3 = arith.constant 3 : index
    %c0_33 = arith.constant 0 : index
    %39 = vector.load %arg17[%c3, %c0_33] : memref<136x128xf32, #tpu.memory_space<vmem>>, vector<128x128xf32>
    %40 = arith.truncf %39 : vector<128x128xf32> to vector<128x128xbf16>
    %c3_34 = arith.constant 3 : index
    %c0_35 = arith.constant 0 : index
    %c0_36 = arith.constant 0 : index
    %41 = vector.load %arg6[%c3_34, %c0_35, %c0_36] : memref<5x128x256xbf16, #tpu.memory_space<vmem>>, vector<1x128x256xbf16>
    %42 = vector.shape_cast %41 : vector<1x128x256xbf16> to vector<128x256xbf16>
    %cst_37 = arith.constant dense<0.000000e+00> : vector<128x256xf32>
    %43 = tpu.matmul %40, %42, %cst_37 {dimension_numbers = #tpu.dot_dimension_numbers<[1], [0], [0], [1], [0, 0, 1, 1], [], []>} : vector<128x128xbf16>, vector<128x256xbf16>, vector<128x256xf32> -> vector<128x256xf32>
    %44 = arith.addf %38, %43 : vector<128x256xf32>
    %c4 = arith.constant 4 : index
    %c0_38 = arith.constant 0 : index
    %45 = vector.load %arg17[%c4, %c0_38] : memref<136x128xf32, #tpu.memory_space<vmem>>, vector<128x128xf32>
    %46 = arith.truncf %45 : vector<128x128xf32> to vector<128x128xbf16>
    %c4_39 = arith.constant 4 : index
    %c0_40 = arith.constant 0 : index
    %c0_41 = arith.constant 0 : index
    %47 = vector.load %arg6[%c4_39, %c0_40, %c0_41] : memref<5x128x256xbf16, #tpu.memory_space<vmem>>, vector<1x128x256xbf16>
    %48 = vector.shape_cast %47 : vector<1x128x256xbf16> to vector<128x256xbf16>
    %cst_42 = arith.constant dense<0.000000e+00> : vector<128x256xf32>
    %49 = tpu.matmul %46, %48, %cst_42 {dimension_numbers = #tpu.dot_dimension_numbers<[1], [0], [0], [1], [0, 0, 1, 1], [], []>} : vector<128x128xbf16>, vector<128x256xbf16>, vector<128x256xf32> -> vector<128x256xf32>
    %50 = arith.addf %44, %49 : vector<128x256xf32>
    %c0_43 = arith.constant 0 : index
    %c0_44 = arith.constant 0 : index
    %51 = vector.load %arg7[%c0_43, %c0_44] : memref<1x256xf32, #tpu.memory_space<vmem>>, vector<1x256xf32>
    %52 = vector.broadcast %51 : vector<1x256xf32> to vector<128x256xf32>
    %53 = arith.addf %50, %52 : vector<128x256xf32>
    %cst_45 = arith.constant 0.000000e+00 : f32
    %54 = vector.broadcast %cst_45 : f32 to vector<128x256xf32>
    %55 = arith.maximumf %53, %54 : vector<128x256xf32>
    %56 = vector.extract_strided_slice %55 {offsets = [0, 0], sizes = [128, 128], strides = [1, 1]} : vector<128x256xf32> to vector<128x128xf32>
    %57 = vector.extract_strided_slice %55 {offsets = [0, 128], sizes = [128, 128], strides = [1, 1]} : vector<128x256xf32> to vector<128x128xf32>
    %58 = arith.maximumf %56, %57 : vector<128x128xf32>
    %59 = arith.truncf %58 : vector<128x128xf32> to vector<128x128xbf16>
    %c0_46 = arith.constant 0 : index
    %c0_47 = arith.constant 0 : index
    %60 = vector.load %arg8[%c0_46, %c0_47] : memref<40x128xbf16, #tpu.memory_space<vmem>>, vector<40x128xbf16>
    %cst_48 = arith.constant dense<0.000000e+00> : vector<40x128xf32>
    %61 = tpu.matmul %60, %59, %cst_48 {dimension_numbers = #tpu.dot_dimension_numbers<[1], [0], [0], [1], [0, 0, 1, 1], [], []>} : vector<40x128xbf16>, vector<128x128xbf16>, vector<40x128xf32> -> vector<40x128xf32>
    %c0_49 = arith.constant 0 : index
    %c0_50 = arith.constant 0 : index
    %62 = vector.load %arg9[%c0_49, %c0_50] : memref<40x128xbf16, #tpu.memory_space<vmem>>, vector<40x128xbf16>
    %cst_51 = arith.constant dense<0.000000e+00> : vector<40x128xf32>
    %63 = tpu.matmul %62, %59, %cst_51 {dimension_numbers = #tpu.dot_dimension_numbers<[1], [0], [0], [1], [0, 0, 1, 1], [], []>} : vector<40x128xbf16>, vector<128x128xbf16>, vector<40x128xf32> -> vector<40x128xf32>
    %64 = arith.maximumf %61, %63 : vector<40x128xf32>
    %65 = arith.truncf %64 : vector<40x128xf32> to vector<40x128xbf16>
    %cst_52 = arith.constant 0.000000e+00 : f32
    %66 = vector.broadcast %cst_52 : f32 to vector<8x128xf32>
    %67 = vector.extract_strided_slice %65 {offsets = [0, 0], sizes = [8, 128], strides = [1, 1]} : vector<40x128xbf16> to vector<8x128xbf16>
    %c0_53 = arith.constant 0 : index
    %c0_54 = arith.constant 0 : index
    %c0_55 = arith.constant 0 : index
    %68 = vector.load %arg10[%c0_53, %c0_54, %c0_55] : memref<5x128x128xbf16, #tpu.memory_space<vmem>>, vector<1x128x128xbf16>
    %69 = vector.shape_cast %68 : vector<1x128x128xbf16> to vector<128x128xbf16>
    %cst_56 = arith.constant dense<0.000000e+00> : vector<8x128xf32>
    %70 = tpu.matmul %67, %69, %cst_56 {dimension_numbers = #tpu.dot_dimension_numbers<[1], [0], [0], [1], [0, 0, 1, 1], [], []>} : vector<8x128xbf16>, vector<128x128xbf16>, vector<8x128xf32> -> vector<8x128xf32>
    %71 = arith.addf %66, %70 : vector<8x128xf32>
    %72 = vector.extract_strided_slice %65 {offsets = [8, 0], sizes = [8, 128], strides = [1, 1]} : vector<40x128xbf16> to vector<8x128xbf16>
    %c1_57 = arith.constant 1 : index
    %c0_58 = arith.constant 0 : index
    %c0_59 = arith.constant 0 : index
    %73 = vector.load %arg10[%c1_57, %c0_58, %c0_59] : memref<5x128x128xbf16, #tpu.memory_space<vmem>>, vector<1x128x128xbf16>
    %74 = vector.shape_cast %73 : vector<1x128x128xbf16> to vector<128x128xbf16>
    %cst_60 = arith.constant dense<0.000000e+00> : vector<8x128xf32>
    %75 = tpu.matmul %72, %74, %cst_60 {dimension_numbers = #tpu.dot_dimension_numbers<[1], [0], [0], [1], [0, 0, 1, 1], [], []>} : vector<8x128xbf16>, vector<128x128xbf16>, vector<8x128xf32> -> vector<8x128xf32>
    %76 = arith.addf %71, %75 : vector<8x128xf32>
    %77 = vector.extract_strided_slice %65 {offsets = [16, 0], sizes = [8, 128], strides = [1, 1]} : vector<40x128xbf16> to vector<8x128xbf16>
    %c2_61 = arith.constant 2 : index
    %c0_62 = arith.constant 0 : index
    %c0_63 = arith.constant 0 : index
    %78 = vector.load %arg10[%c2_61, %c0_62, %c0_63] : memref<5x128x128xbf16, #tpu.memory_space<vmem>>, vector<1x128x128xbf16>
    %79 = vector.shape_cast %78 : vector<1x128x128xbf16> to vector<128x128xbf16>
    %cst_64 = arith.constant dense<0.000000e+00> : vector<8x128xf32>
    %80 = tpu.matmul %77, %79, %cst_64 {dimension_numbers = #tpu.dot_dimension_numbers<[1], [0], [0], [1], [0, 0, 1, 1], [], []>} : vector<8x128xbf16>, vector<128x128xbf16>, vector<8x128xf32> -> vector<8x128xf32>
    %81 = arith.addf %76, %80 : vector<8x128xf32>
    %82 = vector.extract_strided_slice %65 {offsets = [24, 0], sizes = [8, 128], strides = [1, 1]} : vector<40x128xbf16> to vector<8x128xbf16>
    %c3_65 = arith.constant 3 : index
    %c0_66 = arith.constant 0 : index
    %c0_67 = arith.constant 0 : index
    %83 = vector.load %arg10[%c3_65, %c0_66, %c0_67] : memref<5x128x128xbf16, #tpu.memory_space<vmem>>, vector<1x128x128xbf16>
    %84 = vector.shape_cast %83 : vector<1x128x128xbf16> to vector<128x128xbf16>
    %cst_68 = arith.constant dense<0.000000e+00> : vector<8x128xf32>
    %85 = tpu.matmul %82, %84, %cst_68 {dimension_numbers = #tpu.dot_dimension_numbers<[1], [0], [0], [1], [0, 0, 1, 1], [], []>} : vector<8x128xbf16>, vector<128x128xbf16>, vector<8x128xf32> -> vector<8x128xf32>
    %86 = arith.addf %81, %85 : vector<8x128xf32>
    %87 = vector.extract_strided_slice %65 {offsets = [32, 0], sizes = [8, 128], strides = [1, 1]} : vector<40x128xbf16> to vector<8x128xbf16>
    %c4_69 = arith.constant 4 : index
    %c0_70 = arith.constant 0 : index
    %c0_71 = arith.constant 0 : index
    %88 = vector.load %arg10[%c4_69, %c0_70, %c0_71] : memref<5x128x128xbf16, #tpu.memory_space<vmem>>, vector<1x128x128xbf16>
    %89 = vector.shape_cast %88 : vector<1x128x128xbf16> to vector<128x128xbf16>
    %cst_72 = arith.constant dense<0.000000e+00> : vector<8x128xf32>
    %90 = tpu.matmul %87, %89, %cst_72 {dimension_numbers = #tpu.dot_dimension_numbers<[1], [0], [0], [1], [0, 0, 1, 1], [], []>} : vector<8x128xbf16>, vector<128x128xbf16>, vector<8x128xf32> -> vector<8x128xf32>
    %91 = arith.addf %86, %90 : vector<8x128xf32>
    %c0_73 = arith.constant 0 : index
    %c0_74 = arith.constant 0 : index
    %92 = vector.load %arg11[%c0_73, %c0_74] : memref<1x128xf32, #tpu.memory_space<vmem>>, vector<1x128xf32>
    %93 = vector.broadcast %92 : vector<1x128xf32> to vector<8x128xf32>
    %94 = arith.addf %91, %93 : vector<8x128xf32>
    %cst_75 = arith.constant 0.000000e+00 : f32
    %95 = vector.broadcast %cst_75 : f32 to vector<8x128xf32>
    %96 = arith.maximumf %94, %95 : vector<8x128xf32>
    %97 = arith.truncf %96 : vector<8x128xf32> to vector<8x128xbf16>
    %c0_76 = arith.constant 0 : index
    %c0_77 = arith.constant 0 : index
    %98 = vector.load %arg12[%c0_76, %c0_77] : memref<128x128xbf16, #tpu.memory_space<vmem>>, vector<128x128xbf16>
    %cst_78 = arith.constant dense<0.000000e+00> : vector<8x128xf32>
    %99 = tpu.matmul %97, %98, %cst_78 {dimension_numbers = #tpu.dot_dimension_numbers<[1], [0], [0], [1], [0, 0, 1, 1], [], []>} : vector<8x128xbf16>, vector<128x128xbf16>, vector<8x128xf32> -> vector<8x128xf32>
    %c0_79 = arith.constant 0 : index
    %c0_80 = arith.constant 0 : index
    %100 = vector.load %arg13[%c0_79, %c0_80] : memref<1x128xf32, #tpu.memory_space<vmem>>, vector<1x128xf32>
    %101 = vector.broadcast %100 : vector<1x128xf32> to vector<8x128xf32>
    %102 = arith.addf %99, %101 : vector<8x128xf32>
    %cst_81 = arith.constant 0.000000e+00 : f32
    %103 = vector.broadcast %cst_81 : f32 to vector<8x128xf32>
    %104 = arith.maximumf %102, %103 : vector<8x128xf32>
    %105 = arith.truncf %104 : vector<8x128xf32> to vector<8x128xbf16>
    %c0_82 = arith.constant 0 : index
    %c0_83 = arith.constant 0 : index
    %106 = vector.load %arg14[%c0_82, %c0_83] : memref<128x128xbf16, #tpu.memory_space<vmem>>, vector<128x128xbf16>
    %cst_84 = arith.constant dense<0.000000e+00> : vector<8x128xf32>
    %107 = tpu.matmul %105, %106, %cst_84 {dimension_numbers = #tpu.dot_dimension_numbers<[1], [0], [0], [1], [0, 0, 1, 1], [], []>} : vector<8x128xbf16>, vector<128x128xbf16>, vector<8x128xf32> -> vector<8x128xf32>
    %c0_85 = arith.constant 0 : index
    %c0_86 = arith.constant 0 : index
    %108 = vector.load %arg15[%c0_85, %c0_86] : memref<1x128xf32, #tpu.memory_space<vmem>>, vector<1x128xf32>
    %109 = vector.broadcast %108 : vector<1x128xf32> to vector<8x128xf32>
    %110 = arith.addf %107, %109 : vector<8x128xf32>
    %c0_87 = arith.constant 0 : index
    %c0_88 = arith.constant 0 : index
    %111 = vector.load %arg16[%c0_87, %c0_88] : memref<8x128xf32, #tpu.memory_space<vmem>>, vector<8x128xf32>
    tpu.vector_store %arg16[%c0_87, %c0_88], %110 {strides = array<i32>} : memref<8x128xf32, #tpu.memory_space<vmem>>, vector<8x128xf32>,
    return
  }
  func.func @transform_0(%arg0: i32) -> (i32, i32) {
    %c0_i32 = arith.constant 0 : i32
    %c0_i32_0 = arith.constant 0 : i32
    return %arg0, %c0_i32 : i32, i32
  }
  func.func @transform_1(%arg0: i32) -> (i32, i32) {
    %c0_i32 = arith.constant 0 : i32
    %c0_i32_0 = arith.constant 0 : i32
    %c0_i32_1 = arith.constant 0 : i32
    return %c0_i32, %c0_i32_0 : i32, i32
  }
  func.func @transform_2(%arg0: i32) -> (i32, i32) {
    %c0_i32 = arith.constant 0 : i32
    %c0_i32_0 = arith.constant 0 : i32
    %c0_i32_1 = arith.constant 0 : i32
    return %c0_i32, %c0_i32_0 : i32, i32
  }
  func.func @transform_3(%arg0: i32) -> (i32, i32) {
    %c0_i32 = arith.constant 0 : i32
    %c0_i32_0 = arith.constant 0 : i32
    %c0_i32_1 = arith.constant 0 : i32
    return %c0_i32, %c0_i32_0 : i32, i32
  }
  func.func @transform_4(%arg0: i32) -> (i32, i32) {
    %c0_i32 = arith.constant 0 : i32
    %c0_i32_0 = arith.constant 0 : i32
    %c0_i32_1 = arith.constant 0 : i32
    return %c0_i32, %c0_i32_0 : i32, i32
  }
  func.func @transform_5(%arg0: i32) -> (i32, i32, i32) {
    %c0_i32 = arith.constant 0 : i32
    %c0_i32_0 = arith.constant 0 : i32
    %c0_i32_1 = arith.constant 0 : i32
    %c0_i32_2 = arith.constant 0 : i32
    return %c0_i32, %c0_i32_0, %c0_i32_1 : i32, i32, i32
  }
  func.func @transform_6(%arg0: i32) -> (i32, i32) {
    %c0_i32 = arith.constant 0 : i32
    %c0_i32_0 = arith.constant 0 : i32
    %c0_i32_1 = arith.constant 0 : i32
    return %c0_i32, %c0_i32_0 : i32, i32
  }
  func.func @transform_7(%arg0: i32) -> (i32, i32) {
    %c0_i32 = arith.constant 0 : i32
    %c0_i32_0 = arith.constant 0 : i32
    %c0_i32_1 = arith.constant 0 : i32
    return %c0_i32, %c0_i32_0 : i32, i32
  }
  func.func @transform_8(%arg0: i32) -> (i32, i32) {
    %c0_i32 = arith.constant 0 : i32
    %c0_i32_0 = arith.constant 0 : i32
    %c0_i32_1 = arith.constant 0 : i32
    return %c0_i32, %c0_i32_0 : i32, i32
  }
  func.func @transform_9(%arg0: i32) -> (i32, i32, i32) {
    %c0_i32 = arith.constant 0 : i32
    %c0_i32_0 = arith.constant 0 : i32
    %c0_i32_1 = arith.constant 0 : i32
    %c0_i32_2 = arith.constant 0 : i32
    return %c0_i32, %c0_i32_0, %c0_i32_1 : i32, i32, i32
  }
  func.func @transform_10(%arg0: i32) -> (i32, i32) {
    %c0_i32 = arith.constant 0 : i32
    %c0_i32_0 = arith.constant 0 : i32
    %c0_i32_1 = arith.constant 0 : i32
    return %c0_i32, %c0_i32_0 : i32, i32
  }
  func.func @transform_11(%arg0: i32) -> (i32, i32) {
    %c0_i32 = arith.constant 0 : i32
    %c0_i32_0 = arith.constant 0 : i32
    %c0_i32_1 = arith.constant 0 : i32
    return %c0_i32, %c0_i32_0 : i32, i32
  }
  func.func @transform_12(%arg0: i32) -> (i32, i32) {
    %c0_i32 = arith.constant 0 : i32
    %c0_i32_0 = arith.constant 0 : i32
    %c0_i32_1 = arith.constant 0 : i32
    return %c0_i32, %c0_i32_0 : i32, i32
  }
  func.func @transform_13(%arg0: i32) -> (i32, i32) {
    %c0_i32 = arith.constant 0 : i32
    %c0_i32_0 = arith.constant 0 : i32
    %c0_i32_1 = arith.constant 0 : i32
    return %c0_i32, %c0_i32_0 : i32, i32
  }
  func.func @transform_14(%arg0: i32) -> (i32, i32) {
    %c0_i32 = arith.constant 0 : i32
    %c0_i32_0 = arith.constant 0 : i32
    %c0_i32_1 = arith.constant 0 : i32
    return %c0_i32, %c0_i32_0 : i32, i32
  }
  func.func @transform_15(%arg0: i32) -> (i32, i32) {
    %c0_i32 = arith.constant 0 : i32
    %c0_i32_0 = arith.constant 0 : i32
    return %arg0, %c0_i32 : i32, i32
  }
}

</mosaic_0001>

<llo_original>
// kernel: lenet_forward.1
$region0: #{lenet_forward.1}
  #allocation0 [shape = 'u32[]', space=smem, size = 0x4, offset = 0x4, fixed_abs, tag = 'smem constant byte address 0x4 - core index']
  #allocation1 [shape = 'u32[144,128]{1,0:T(1,128)}', space=vmem, size = 0x12000, scoped, tag = 'internal scratch']
  #allocation2 [shape = 'f32[136,128]{1,0:T(8,128)}', space=vmem, size = 0x11000, scoped, tag = 'scratch operand']
  %s0 = inlined_call_operand.vmem [shape: bf16[256,160], index: 0, kind: input, shape index: {}]
  %s1 = inlined_call_operand.vmem [shape: bf16[160,256], index: 1, kind: input, shape index: {}]
  %s2 = inlined_call_operand.vmem [shape: f32[1,256], index: 2, kind: input, shape index: {}]
  %s3 = inlined_call_operand.vmem [shape: bf16[128,256], index: 3, kind: input, shape index: {}]
  %s4 = inlined_call_operand.vmem [shape: bf16[128,256], index: 4, kind: input, shape index: {}]
  %s5 = inlined_call_operand.vmem [shape: bf16[5,128,256], index: 5, kind: input, shape index: {}]
  %s6 = inlined_call_operand.vmem [shape: f32[1,256], index: 6, kind: input, shape index: {}]
  %s7 = inlined_call_operand.vmem [shape: bf16[40,128], index: 7, kind: input, shape index: {}]
  %s8 = inlined_call_operand.vmem [shape: bf16[40,128], index: 8, kind: input, shape index: {}]
  %s9 = inlined_call_operand.vmem [shape: bf16[5,128,128], index: 9, kind: input, shape index: {}]
  %s10 = inlined_call_operand.vmem [shape: f32[1,128], index: 10, kind: input, shape index: {}]
  %s11 = inlined_call_operand.vmem [shape: bf16[128,128], index: 11, kind: input, shape index: {}]
  %s12 = inlined_call_operand.vmem [shape: f32[1,128], index: 12, kind: input, shape index: {}]
  %s13 = inlined_call_operand.vmem [shape: bf16[128,128], index: 13, kind: input, shape index: {}]
  %s14 = inlined_call_operand.vmem [shape: f32[1,128], index: 14, kind: input, shape index: {}]
  %s15 = inlined_call_operand.vmem [shape: f32[8,128], index: 15, kind: output, shape index: {}]
  %s16 = sld [smem:[#allocation0]]
  $region70: #{lenet_forward.1} parent=0
    _
  %s18 = ssub.s32 1, %s16
  %s19 = scalar_select 0, %s18, %s16
  // Predicated region
  $region2: #{lenet_forward.1} parent=0 // pred_check
    _
  $region3: #{lenet_forward.1} parent=0 // pred_check_branch
    %21 = sbr.rel (0) target = $region5
  $region4: #{lenet_forward.1} parent=0 // pred_region
    _
  $region5: #{lenet_forward.1} parent=0 // pred_fallthru
    _
  // Predicated region
  $region6: #{lenet_forward.1} parent=0 // pred_check
    _
  $region7: #{lenet_forward.1} parent=0 // pred_check_branch
    %23 = sbr.rel (0) target = $region9
  $region8: #{lenet_forward.1} parent=0 // pred_region
    _
  $region9: #{lenet_forward.1} parent=0 // pred_fallthru
    _
  // Predicated region
  $region10: #{lenet_forward.1} parent=0 // pred_check
    _
  $region11: #{lenet_forward.1} parent=0 // pred_check_branch
    %25 = sbr.rel (0) target = $region13
  $region12: #{lenet_forward.1} parent=0 // pred_region
    _
  $region13: #{lenet_forward.1} parent=0 // pred_fallthru
    _
  // Predicated region
  $region14: #{lenet_forward.1} parent=0 // pred_check
    _
  $region15: #{lenet_forward.1} parent=0 // pred_check_branch
    %27 = sbr.rel (0) target = $region17
  $region16: #{lenet_forward.1} parent=0 // pred_region
    _
  $region17: #{lenet_forward.1} parent=0 // pred_fallthru
    _
  // Predicated region
  $region18: #{lenet_forward.1} parent=0 // pred_check
    _
  $region19: #{lenet_forward.1} parent=0 // pred_check_branch
    %29 = sbr.rel (0) target = $region21
  $region20: #{lenet_forward.1} parent=0 // pred_region
    _
  $region21: #{lenet_forward.1} parent=0 // pred_fallthru
    _
  // Predicated region
  $region22: #{lenet_forward.1} parent=0 // pred_check
    _
  $region23: #{lenet_forward.1} parent=0 // pred_check_branch
    %31 = sbr.rel (0) target = $region25
  $region24: #{lenet_forward.1} parent=0 // pred_region
    _
  $region25: #{lenet_forward.1} parent=0 // pred_fallthru
    _
  // Predicated region
  $region26: #{lenet_forward.1} parent=0 // pred_check
    _
  $region27: #{lenet_forward.1} parent=0 // pred_check_branch
    %33 = sbr.rel (0) target = $region29
  $region28: #{lenet_forward.1} parent=0 // pred_region
    _
  $region29: #{lenet_forward.1} parent=0 // pred_fallthru
    _
  // Predicated region
  $region30: #{lenet_forward.1} parent=0 // pred_check
    _
  $region31: #{lenet_forward.1} parent=0 // pred_check_branch
    %35 = sbr.rel (0) target = $region33
  $region32: #{lenet_forward.1} parent=0 // pred_region
    _
  $region33: #{lenet_forward.1} parent=0 // pred_fallthru
    _
  // Predicated region
  $region34: #{lenet_forward.1} parent=0 // pred_check
    _
  $region35: #{lenet_forward.1} parent=0 // pred_check_branch
    %37 = sbr.rel (0) target = $region37
  $region36: #{lenet_forward.1} parent=0 // pred_region
    _
  $region37: #{lenet_forward.1} parent=0 // pred_fallthru
    _
  // Predicated region
  $region38: #{lenet_forward.1} parent=0 // pred_check
    _
  $region39: #{lenet_forward.1} parent=0 // pred_check_branch
    %39 = sbr.rel (0) target = $region41
  $region40: #{lenet_forward.1} parent=0 // pred_region
    _
  $region41: #{lenet_forward.1} parent=0 // pred_fallthru
    _
  // Predicated region
  $region42: #{lenet_forward.1} parent=0 // pred_check
    _
  $region43: #{lenet_forward.1} parent=0 // pred_check_branch
    %41 = sbr.rel (0) target = $region45
  $region44: #{lenet_forward.1} parent=0 // pred_region
    _
  $region45: #{lenet_forward.1} parent=0 // pred_fallthru
    _
  // Predicated region
  $region46: #{lenet_forward.1} parent=0 // pred_check
    _
  $region47: #{lenet_forward.1} parent=0 // pred_check_branch
    %43 = sbr.rel (0) target = $region49
  $region48: #{lenet_forward.1} parent=0 // pred_region
    _
  $region49: #{lenet_forward.1} parent=0 // pred_fallthru
    _
  // Predicated region
  $region50: #{lenet_forward.1} parent=0 // pred_check
    _
  $region51: #{lenet_forward.1} parent=0 // pred_check_branch
    %45 = sbr.rel (0) target = $region53
  $region52: #{lenet_forward.1} parent=0 // pred_region
    _
  $region53: #{lenet_forward.1} parent=0 // pred_fallthru
    _
  // Predicated region
  $region54: #{lenet_forward.1} parent=0 // pred_check
    _
  $region55: #{lenet_forward.1} parent=0 // pred_check_branch
    %47 = sbr.rel (0) target = $region57
  $region56: #{lenet_forward.1} parent=0 // pred_region
    _
  $region57: #{lenet_forward.1} parent=0 // pred_fallthru
    _
  // Predicated region
  $region58: #{lenet_forward.1} parent=0 // pred_check
    _
  $region59: #{lenet_forward.1} parent=0 // pred_check_branch
    %49 = sbr.rel (0) target = $region61
  $region60: #{lenet_forward.1} parent=0 // pred_region
    _
  $region61: #{lenet_forward.1} parent=0 // pred_fallthru
    _
  %v51 = vld [vmem:[%s0] sm:$0xff]
  %v52 = vld [vmem:[%s0 + $0x8] sm:$0xff]
  %v53 = vld [vmem:[%s0 + $0x10] sm:$0xff]
  %v54 = vld [vmem:[%s0 + $0x18] sm:$0xff]
  %v55 = vld [vmem:[%s0 + $0x20] sm:$0xff]
  %v56 = vld [vmem:[%s0 + $0x28] sm:$0xff]
  %v57 = vld [vmem:[%s0 + $0x30] sm:$0xff]
  %v58 = vld [vmem:[%s0 + $0x38] sm:$0xff]
  %v59 = vld [vmem:[%s0 + $0x40] sm:$0xff]
  %v60 = vld [vmem:[%s0 + $0x48] sm:$0xff]
  %v61 = vld [vmem:[%s0 + $0x50] sm:$0xff]
  %v62 = vld [vmem:[%s0 + $0x58] sm:$0xff]
  %v63 = vld [vmem:[%s0 + $0x60] sm:$0xff]
  %v64 = vld [vmem:[%s0 + $0x68] sm:$0xff]
  %v65 = vld [vmem:[%s0 + $0x70] sm:$0xff]
  %v66 = vld [vmem:[%s0 + $0x78] sm:$0xff]
  %v67 = vld [vmem:[%s0 + $0x80] sm:$0xff]
  %v68 = vld [vmem:[%s0 + $0x88] sm:$0xff]
  %v69 = vld [vmem:[%s0 + $0x90] sm:$0xff]
  %v70 = vld [vmem:[%s0 + $0x98] sm:$0xff]
  %v71 = vld [vmem:[%s0 + $0xa0] sm:$0xff]
  %v72 = vld [vmem:[%s0 + $0xa8] sm:$0xff]
  %v73 = vld [vmem:[%s0 + $0xb0] sm:$0xff]
  %v74 = vld [vmem:[%s0 + $0xb8] sm:$0xff]
  %v75 = vld [vmem:[%s0 + $0xc0] sm:$0xff]
  %v76 = vld [vmem:[%s0 + $0xc8] sm:$0xff]
  %v77 = vld [vmem:[%s0 + $0xd0] sm:$0xff]
  %v78 = vld [vmem:[%s0 + $0xd8] sm:$0xff]
  %v79 = vld [vmem:[%s0 + $0xe0] sm:$0xff]
  %v80 = vld [vmem:[%s0 + $0xe8] sm:$0xff]
  %v81 = vld [vmem:[%s0 + $0xf0] sm:$0xff]
  %v82 = vld [vmem:[%s0 + $0xf8] sm:$0xff]
  %v83 = vld [vmem:[%s1] sm:$0xff]
  %v84 = vld [vmem:[%s1 + $0x8] sm:$0xff]
  %v85 = vld [vmem:[%s1 + $0x10] sm:$0xff]
  %v86 = vld [vmem:[%s1 + $0x18] sm:$0xff]
  %v87 = vld [vmem:[%s1 + $0x20] sm:$0xff]
  %v88 = vld [vmem:[%s1 + $0x28] sm:$0xff]
  %v89 = vld [vmem:[%s1 + $0x30] sm:$0xff]
  %v90 = vld [vmem:[%s1 + $0x38] sm:$0xff]
  %v91 = vld [vmem:[%s1 + $0x40] sm:$0xff]
  %v92 = vld [vmem:[%s1 + $0x48] sm:$0xff]
  %v93 = vld [vmem:[%s1 + $0x50] sm:$0xff]
  %v94 = vld [vmem:[%s1 + $0x58] sm:$0xff]
  %v95 = vld [vmem:[%s1 + $0x60] sm:$0xff]
  %v96 = vld [vmem:[%s1 + $0x68] sm:$0xff]
  %v97 = vld [vmem:[%s1 + $0x70] sm:$0xff]
  %v98 = vld [vmem:[%s1 + $0x78] sm:$0xff]
  %v99 = vld [vmem:[%s1 + $0x80] sm:$0xff]
  %v100 = vld [vmem:[%s1 + $0x88] sm:$0xff]
  %v101 = vld [vmem:[%s1 + $0x90] sm:$0xff]
  %v102 = vld [vmem:[%s1 + $0x98] sm:$0xff]
  %v103 = vld [vmem:[%s2] sm:$0x3]
  %v105 = vlaneseq
  %v106 = vshrl.u32 %v105, 7
  %v107 = vsub.s32 0, %v106
  %v108 = vrot.slane %v103, %v107
  %v109 = vlaneseq
  %v110 = vshrl.u32 %v109, 7
  %v111 = vsub.s32 1, %v110
  %v112 = vrot.slane %v103, %v111
  %v147 = vunpack.c.l.b16 %v51
  %v148 = vunpack.c.h.b16 %v51
  %v149 = vunpack.c.l.b16 %v52
  %v150 = vunpack.c.h.b16 %v52
  %v151 = vunpack.c.l.b16 %v53
  %v152 = vunpack.c.h.b16 %v53
  %v153 = vunpack.c.l.b16 %v54
  %v154 = vunpack.c.h.b16 %v54
  %v155 = vunpack.c.l.b16 %v55
  %v156 = vunpack.c.h.b16 %v55
  %v157 = vunpack.c.l.b16 %v56
  %v158 = vunpack.c.h.b16 %v56
  %v159 = vunpack.c.l.b16 %v57
  %v160 = vunpack.c.h.b16 %v57
  %v161 = vunpack.c.l.b16 %v58
  %v162 = vunpack.c.h.b16 %v58
  %v163 = vunpack.c.l.b16 %v59
  %v164 = vunpack.c.h.b16 %v59
  %v165 = vunpack.c.l.b16 %v60
  %v166 = vunpack.c.h.b16 %v60
  %v167 = vunpack.c.l.b16 %v61
  %v168 = vunpack.c.h.b16 %v61
  %v169 = vunpack.c.l.b16 %v62
  %v170 = vunpack.c.h.b16 %v62
  %v171 = vunpack.c.l.b16 %v63
  %v172 = vunpack.c.h.b16 %v63
  %v173 = vunpack.c.l.b16 %v64
  %v174 = vunpack.c.h.b16 %v64
  %v175 = vunpack.c.l.b16 %v65
  %v176 = vunpack.c.h.b16 %v65
  %v177 = vunpack.c.l.b16 %v66
  %v178 = vunpack.c.h.b16 %v66
  %v179 = vunpack.c.l.b16 %v67
  %v180 = vunpack.c.h.b16 %v67
  %v181 = vunpack.c.l.b16 %v68
  %v182 = vunpack.c.h.b16 %v68
  %v183 = vunpack.c.l.b16 %v69
  %v184 = vunpack.c.h.b16 %v69
  %v185 = vunpack.c.l.b16 %v70
  %v186 = vunpack.c.h.b16 %v70
  %v187 = vunpack.c.l.b16 %v71
  %v188 = vunpack.c.h.b16 %v71
  %v189 = vunpack.c.l.b16 %v72
  %v190 = vunpack.c.h.b16 %v72
  %v191 = vunpack.c.l.b16 %v73
  %v192 = vunpack.c.h.b16 %v73
  %v193 = vunpack.c.l.b16 %v74
  %v194 = vunpack.c.h.b16 %v74
  %v195 = vunpack.c.l.b16 %v75
  %v196 = vunpack.c.h.b16 %v75
  %v197 = vunpack.c.l.b16 %v76
  %v198 = vunpack.c.h.b16 %v76
  %v199 = vunpack.c.l.b16 %v77
  %v200 = vunpack.c.h.b16 %v77
  %v201 = vunpack.c.l.b16 %v78
  %v202 = vunpack.c.h.b16 %v78
  %v203 = vunpack.c.l.b16 %v79
  %v204 = vunpack.c.h.b16 %v79
  %v205 = vunpack.c.l.b16 %v80
  %v206 = vunpack.c.h.b16 %v80
  %v207 = vunpack.c.l.b16 %v81
  %v208 = vunpack.c.h.b16 %v81
  %v209 = vunpack.c.l.b16 %v82
  %v210 = vunpack.c.h.b16 %v82
  %v211 = vpack.c.b16 %v149, %v147
  %v212 = vpack.c.b16 %v150, %v148
  %v213 = vpack.c.b16 %v153, %v151
  %v214 = vpack.c.b16 %v154, %v152
  %v215 = vpack.c.b16 %v157, %v155
  %v216 = vpack.c.b16 %v158, %v156
  %v217 = vpack.c.b16 %v161, %v159
  %v218 = vpack.c.b16 %v162, %v160
  %v219 = vpack.c.b16 %v165, %v163
  %v220 = vpack.c.b16 %v166, %v164
  %v221 = vpack.c.b16 %v169, %v167
  %v222 = vpack.c.b16 %v170, %v168
  %v223 = vpack.c.b16 %v173, %v171
  %v224 = vpack.c.b16 %v174, %v172
  %v225 = vpack.c.b16 %v177, %v175
  %v226 = vpack.c.b16 %v178, %v176
  %v227 = vpack.c.b16 %v181, %v179
  %v228 = vpack.c.b16 %v182, %v180
  %v229 = vpack.c.b16 %v185, %v183
  %v230 = vpack.c.b16 %v186, %v184
  %v231 = vpack.c.b16 %v189, %v187
  %v232 = vpack.c.b16 %v190, %v188
  %v233 = vpack.c.b16 %v193, %v191
  %v234 = vpack.c.b16 %v194, %v192
  %v235 = vpack.c.b16 %v197, %v195
  %v236 = vpack.c.b16 %v198, %v196
  %v237 = vpack.c.b16 %v201, %v199
  %v238 = vpack.c.b16 %v202, %v200
  %v239 = vpack.c.b16 %v205, %v203
  %v240 = vpack.c.b16 %v206, %v204
  %v241 = vpack.c.b16 %v209, %v207
  %v242 = vpack.c.b16 %v210, %v208
  %v279 = vunpack.c.l.b16 %v83
  %v280 = vunpack.c.h.b16 %v83
  %v281 = vunpack.c.l.b16 %v84
  %v282 = vunpack.c.h.b16 %v84
  %v283 = vunpack.c.l.b16 %v85
  %v284 = vunpack.c.h.b16 %v85
  %v285 = vunpack.c.l.b16 %v86
  %v286 = vunpack.c.h.b16 %v86
  %v287 = vunpack.c.l.b16 %v87
  %v288 = vunpack.c.h.b16 %v87
  %v289 = vunpack.c.l.b16 %v88
  %v290 = vunpack.c.h.b16 %v88
  %v291 = vunpack.c.l.b16 %v89
  %v292 = vunpack.c.h.b16 %v89
  %v293 = vunpack.c.l.b16 %v90
  %v294 = vunpack.c.h.b16 %v90
  %v295 = vunpack.c.l.b16 %v91
  %v296 = vunpack.c.h.b16 %v91
  %v297 = vunpack.c.l.b16 %v92
  %v298 = vunpack.c.h.b16 %v92
  %v299 = vunpack.c.l.b16 %v93
  %v300 = vunpack.c.h.b16 %v93
  %v301 = vunpack.c.l.b16 %v94
  %v302 = vunpack.c.h.b16 %v94
  %v303 = vunpack.c.l.b16 %v95
  %v304 = vunpack.c.h.b16 %v95
  %v305 = vunpack.c.l.b16 %v96
  %v306 = vunpack.c.h.b16 %v96
  %v307 = vunpack.c.l.b16 %v97
  %v308 = vunpack.c.h.b16 %v97
  %v309 = vunpack.c.l.b16 %v98
  %v310 = vunpack.c.h.b16 %v98
  %v311 = vunpack.c.l.b16 %v99
  %v312 = vunpack.c.h.b16 %v99
  %v313 = vunpack.c.l.b16 %v100
  %v314 = vunpack.c.h.b16 %v100
  %v315 = vunpack.c.l.b16 %v101
  %v316 = vunpack.c.h.b16 %v101
  %v317 = vunpack.c.l.b16 %v102
  %v318 = vunpack.c.h.b16 %v102
  %v319 = vpack.c.b16 %v281, %v279
  %v320 = vpack.c.b16 %v282, %v280
  %v321 = vpack.c.b16 %v285, %v283
  %v322 = vpack.c.b16 %v286, %v284
  %v323 = vpack.c.b16 %v289, %v287
  %v324 = vpack.c.b16 %v290, %v288
  %v325 = vpack.c.b16 %v293, %v291
  %v326 = vpack.c.b16 %v294, %v292
  %v327 = vpack.c.b16 %v297, %v295
  %v328 = vpack.c.b16 %v298, %v296
  %v329 = vpack.c.b16 %v301, %v299
  %v330 = vpack.c.b16 %v302, %v300
  %v331 = vpack.c.b16 %v305, %v303
  %v332 = vpack.c.b16 %v306, %v304
  %v333 = vpack.c.b16 %v309, %v307
  %v334 = vpack.c.b16 %v310, %v308
  %v335 = vpack.c.b16 %v313, %v311
  %v336 = vpack.c.b16 %v314, %v312
  %v337 = vpack.c.b16 %v317, %v315
  %v338 = vpack.c.b16 %v318, %v316
  %vm359 = vcmask 261120
  %v361 = vsel %vm359, %v212, 0
  %v364 = vsel %vm359, %v214, 0
  %v367 = vsel %vm359, %v216, 0
  %v370 = vsel %vm359, %v218, 0
  %v373 = vsel %vm359, %v220, 0
  %v376 = vsel %vm359, %v222, 0
  %v379 = vsel %vm359, %v224, 0
  %v382 = vsel %vm359, %v226, 0
  %v385 = vsel %vm359, %v228, 0
  %v388 = vsel %vm359, %v230, 0
  %v391 = vsel %vm359, %v232, 0
  %v394 = vsel %vm359, %v234, 0
  %v397 = vsel %vm359, %v236, 0
  %v400 = vsel %vm359, %v238, 0
  %v403 = vsel %vm359, %v240, 0
  %v406 = vsel %vm359, %v242, 0
  %408 = vmatprep.subr.bf16.mxu0 %v334
  %409 = vmatpush1.bf16.msra.mxu0 %v333
  %410 = vmatprep.subr.bf16.mxu0 %v332
  %411 = vmatpush1.bf16.msra.mxu0 %v331
  %412 = vmatprep.subr.bf16.mxu0 %v330
  %413 = vmatpush1.bf16.msra.mxu0 %v329
  %414 = vmatprep.subr.bf16.mxu0 %v328
  %415 = vmatpush1.bf16.msra.mxu0 %v327
  %416 = vmatprep.subr.bf16.mxu0 %v326
  %417 = vmatpush1.bf16.msra.mxu0 %v325
  %418 = vmatprep.subr.bf16.mxu0 %v324
  %419 = vmatpush1.bf16.msra.mxu0 %v323
  %420 = vmatprep.subr.bf16.mxu0 %v322
  %421 = vmatpush1.bf16.msra.mxu0 %v321
  %422 = vmatprep.subr.bf16.mxu0 %v320
  %423 = vmatpush1.bf16.msra.mxu0 %v319
  %424 = vmatprep.subr.bf16.mxu0 0
  %425 = vmatpush2.bf16.msra.mxu0 0
  %426 = vmatprep.subr.bf16.mxu0 0
  %427 = vmatpush2.bf16.msra.mxu0 0
  %428 = vmatprep.subr.bf16.mxu0 0
  %429 = vmatpush2.bf16.msra.mxu0 0
  %430 = vmatprep.subr.bf16.mxu0 0
  %431 = vmatpush2.bf16.msra.mxu0 0
  %432 = vmatprep.subr.bf16.mxu0 0
  %433 = vmatpush2.bf16.msra.mxu0 0
  %434 = vmatprep.subr.bf16.mxu0 0
  %435 = vmatpush2.bf16.msra.mxu0 0
  %436 = vmatprep.subr.bf16.mxu0 %v338
  %437 = vmatpush2.bf16.msra.mxu0 %v337
  %438 = vmatprep.subr.bf16.mxu0 %v336
  %439 = vmatpush2.bf16.msra.mxu0 %v335
  %440 = vmatprep.mubr.bf16.mxu0 %v361
  %441 = vmatmul.mubr.bf16.gmra.mxu0 %v211
  %v442 = vpop.f32.mrf.mxu0
  %v443 = vadd.f32 %v108, %v442
  %v444 = vpop.f32.mrf.mxu0
  %v445 = vadd.f32 %v112, %v444
  %v446 = vpop.f32.mrf.mxu0
  %v447 = vadd.f32 %v108, %v446
  %v448 = vpop.f32.mrf.mxu0
  %v449 = vadd.f32 %v112, %v448
  %450 = vmatprep.mubr.bf16.mxu0 %v364
  %451 = vmatmul.mubr.bf16.gmra.mxu0 %v213
  %v452 = vpop.f32.mrf.mxu0
  %v453 = vadd.f32 %v108, %v452
  %v454 = vpop.f32.mrf.mxu0
  %v455 = vadd.f32 %v112, %v454
  %v456 = vpop.f32.mrf.mxu0
  %v457 = vadd.f32 %v108, %v456
  %v458 = vpop.f32.mrf.mxu0
  %v459 = vadd.f32 %v112, %v458
  %460 = vmatprep.mubr.bf16.mxu0 %v367
  %461 = vmatmul.mubr.bf16.gmra.mxu0 %v215
  %v462 = vpop.f32.mrf.mxu0
  %v463 = vadd.f32 %v108, %v462
  %v464 = vpop.f32.mrf.mxu0
  %v465 = vadd.f32 %v112, %v464
  %v466 = vpop.f32.mrf.mxu0
  %v467 = vadd.f32 %v108, %v466
  %v468 = vpop.f32.mrf.mxu0
  %v469 = vadd.f32 %v112, %v468
  %470 = vmatprep.mubr.bf16.mxu0 %v370
  %471 = vmatmul.mubr.bf16.gmra.mxu0 %v217
  %v472 = vpop.f32.mrf.mxu0
  %v473 = vadd.f32 %v108, %v472
  %v474 = vpop.f32.mrf.mxu0
  %v475 = vadd.f32 %v112, %v474
  %v476 = vpop.f32.mrf.mxu0
  %v477 = vadd.f32 %v108, %v476
  %v478 = vpop.f32.mrf.mxu0
  %v479 = vadd.f32 %v112, %v478
  %480 = vmatprep.mubr.bf16.mxu0 %v373
  %481 = vmatmul.mubr.bf16.gmra.mxu0 %v219
  %v482 = vpop.f32.mrf.mxu0
  %v483 = vadd.f32 %v108, %v482
  %v484 = vpop.f32.mrf.mxu0
  %v485 = vadd.f32 %v112, %v484
  %v486 = vpop.f32.mrf.mxu0
  %v487 = vadd.f32 %v108, %v486
  %v488 = vpop.f32.mrf.mxu0
  %v489 = vadd.f32 %v112, %v488
  %490 = vmatprep.mubr.bf16.mxu0 %v376
  %491 = vmatmul.mubr.bf16.gmra.mxu0 %v221
  %v492 = vpop.f32.mrf.mxu0
  %v493 = vadd.f32 %v108, %v492
  %v494 = vpop.f32.mrf.mxu0
  %v495 = vadd.f32 %v112, %v494
  %v496 = vpop.f32.mrf.mxu0
  %v497 = vadd.f32 %v108, %v496
  %v498 = vpop.f32.mrf.mxu0
  %v499 = vadd.f32 %v112, %v498
  %500 = vmatprep.mubr.bf16.mxu0 %v379
  %501 = vmatmul.mubr.bf16.gmra.mxu0 %v223
  %v502 = vpop.f32.mrf.mxu0
  %v503 = vadd.f32 %v108, %v502
  %v504 = vpop.f32.mrf.mxu0
  %v505 = vadd.f32 %v112, %v504
  %v506 = vpop.f32.mrf.mxu0
  %v507 = vadd.f32 %v108, %v506
  %v508 = vpop.f32.mrf.mxu0
  %v509 = vadd.f32 %v112, %v508
  %510 = vmatprep.mubr.bf16.mxu0 %v382
  %511 = vmatmul.mubr.bf16.gmra.mxu0 %v225
  %v512 = vpop.f32.mrf.mxu0
  %v513 = vadd.f32 %v108, %v512
  %v514 = vpop.f32.mrf.mxu0
  %v515 = vadd.f32 %v112, %v514
  %v516 = vpop.f32.mrf.mxu0
  %v517 = vadd.f32 %v108, %v516
  %v518 = vpop.f32.mrf.mxu0
  %v519 = vadd.f32 %v112, %v518
  %520 = vmatprep.mubr.bf16.mxu0 %v385
  %521 = vmatmul.mubr.bf16.gmra.mxu0 %v227
  %v522 = vpop.f32.mrf.mxu0
  %v523 = vadd.f32 %v108, %v522
  %v524 = vpop.f32.mrf.mxu0
  %v525 = vadd.f32 %v112, %v524
  %v526 = vpop.f32.mrf.mxu0
  %v527 = vadd.f32 %v108, %v526
  %v528 = vpop.f32.mrf.mxu0
  %v529 = vadd.f32 %v112, %v528
  %530 = vmatprep.mubr.bf16.mxu0 %v388
  %531 = vmatmul.mubr.bf16.gmra.mxu0 %v229
  %v532 = vpop.f32.mrf.mxu0
  %v533 = vadd.f32 %v108, %v532
  %v534 = vpop.f32.mrf.mxu0
  %v535 = vadd.f32 %v112, %v534
  %v536 = vpop.f32.mrf.mxu0
  %v537 = vadd.f32 %v108, %v536
  %v538 = vpop.f32.mrf.mxu0
  %v539 = vadd.f32 %v112, %v538
  %540 = vmatprep.mubr.bf16.mxu0 %v391
  %541 = vmatmul.mubr.bf16.gmra.mxu0 %v231
  %v542 = vpop.f32.mrf.mxu0
  %v543 = vadd.f32 %v108, %v542
  %v544 = vpop.f32.mrf.mxu0
  %v545 = vadd.f32 %v112, %v544
  %v546 = vpop.f32.mrf.mxu0
  %v547 = vadd.f32 %v108, %v546
  %v548 = vpop.f32.mrf.mxu0
  %v549 = vadd.f32 %v112, %v548
  %550 = vmatprep.mubr.bf16.mxu0 %v394
  %551 = vmatmul.mubr.bf16.gmra.mxu0 %v233
  %v552 = vpop.f32.mrf.mxu0
  %v553 = vadd.f32 %v108, %v552
  %v554 = vpop.f32.mrf.mxu0
  %v555 = vadd.f32 %v112, %v554
  %v556 = vpop.f32.mrf.mxu0
  %v557 = vadd.f32 %v108, %v556
  %v558 = vpop.f32.mrf.mxu0
  %v559 = vadd.f32 %v112, %v558
  %560 = vmatprep.mubr.bf16.mxu0 %v397
  %561 = vmatmul.mubr.bf16.gmra.mxu0 %v235
  %v562 = vpop.f32.mrf.mxu0
  %v563 = vadd.f32 %v108, %v562
  %v564 = vpop.f32.mrf.mxu0
  %v565 = vadd.f32 %v112, %v564
  %v566 = vpop.f32.mrf.mxu0
  %v567 = vadd.f32 %v108, %v566
  %v568 = vpop.f32.mrf.mxu0
  %v569 = vadd.f32 %v112, %v568
  %570 = vmatprep.mubr.bf16.mxu0 %v400
  %571 = vmatmul.mubr.bf16.gmra.mxu0 %v237
  %v572 = vpop.f32.mrf.mxu0
  %v573 = vadd.f32 %v108, %v572
  %v574 = vpop.f32.mrf.mxu0
  %v575 = vadd.f32 %v112, %v574
  %v576 = vpop.f32.mrf.mxu0
  %v577 = vadd.f32 %v108, %v576
  %v578 = vpop.f32.mrf.mxu0
  %v579 = vadd.f32 %v112, %v578
  %580 = vmatprep.mubr.bf16.mxu0 %v403
  %581 = vmatmul.mubr.bf16.gmra.mxu0 %v239
  %v582 = vpop.f32.mrf.mxu0
  %v583 = vadd.f32 %v108, %v582
  %v584 = vpop.f32.mrf.mxu0
  %v585 = vadd.f32 %v112, %v584
  %v586 = vpop.f32.mrf.mxu0
  %v587 = vadd.f32 %v108, %v586
  %v588 = vpop.f32.mrf.mxu0
  %v589 = vadd.f32 %v112, %v588
  %590 = vmatprep.mubr.bf16.mxu0 %v406
  %591 = vmatmul.mubr.bf16.gmra.mxu0 %v241
  %v592 = vpop.f32.mrf.mxu0
  %v593 = vadd.f32 %v108, %v592
  %v594 = vpop.f32.mrf.mxu0
  %v595 = vadd.f32 %v112, %v594
  %v596 = vpop.f32.mrf.mxu0
  %v597 = vadd.f32 %v108, %v596
  %v598 = vpop.f32.mrf.mxu0
  %v599 = vadd.f32 %v112, %v598
  %600 = vdwg.mxu0
  %v601 = vmax.f32 %v443, 0.0
  %v602 = vmax.f32 %v445, 0.0
  %v603 = vmax.f32 %v447, 0.0
  %v604 = vmax.f32 %v449, 0.0
  %v605 = vmax.f32 %v453, 0.0
  %v606 = vmax.f32 %v455, 0.0
  %v607 = vmax.f32 %v457, 0.0
  %v608 = vmax.f32 %v459, 0.0
  %v609 = vmax.f32 %v463, 0.0
  %v610 = vmax.f32 %v465, 0.0
  %v611 = vmax.f32 %v467, 0.0
  %v612 = vmax.f32 %v469, 0.0
  %v613 = vmax.f32 %v473, 0.0
  %v614 = vmax.f32 %v475, 0.0
  %v615 = vmax.f32 %v477, 0.0
  %v616 = vmax.f32 %v479, 0.0
  %v617 = vmax.f32 %v483, 0.0
  %v618 = vmax.f32 %v485, 0.0
  %v619 = vmax.f32 %v487, 0.0
  %v620 = vmax.f32 %v489, 0.0
  %v621 = vmax.f32 %v493, 0.0
  %v622 = vmax.f32 %v495, 0.0
  %v623 = vmax.f32 %v497, 0.0
  %v624 = vmax.f32 %v499, 0.0
  %v625 = vmax.f32 %v503, 0.0
  %v626 = vmax.f32 %v505, 0.0
  %v627 = vmax.f32 %v507, 0.0
  %v628 = vmax.f32 %v509, 0.0
  %v629 = vmax.f32 %v513, 0.0
  %v630 = vmax.f32 %v515, 0.0
  %v631 = vmax.f32 %v517, 0.0
  %v632 = vmax.f32 %v519, 0.0
  %v633 = vmax.f32 %v523, 0.0
  %v634 = vmax.f32 %v525, 0.0
  %v635 = vmax.f32 %v527, 0.0
  %v636 = vmax.f32 %v529, 0.0
  %v637 = vmax.f32 %v533, 0.0
  %v638 = vmax.f32 %v535, 0.0
  %v639 = vmax.f32 %v537, 0.0
  %v640 = vmax.f32 %v539, 0.0
  %v641 = vmax.f32 %v543, 0.0
  %v642 = vmax.f32 %v545, 0.0
  %v643 = vmax.f32 %v547, 0.0
  %v644 = vmax.f32 %v549, 0.0
  %v645 = vmax.f32 %v553, 0.0
  %v646 = vmax.f32 %v555, 0.0
  %v647 = vmax.f32 %v557, 0.0
  %v648 = vmax.f32 %v559, 0.0
  %v649 = vmax.f32 %v563, 0.0
  %v650 = vmax.f32 %v565, 0.0
  %v651 = vmax.f32 %v567, 0.0
  %v652 = vmax.f32 %v569, 0.0
  %v653 = vmax.f32 %v573, 0.0
  %v654 = vmax.f32 %v575, 0.0
  %v655 = vmax.f32 %v577, 0.0
  %v656 = vmax.f32 %v579, 0.0
  %v657 = vmax.f32 %v583, 0.0
  %v658 = vmax.f32 %v585, 0.0
  %v659 = vmax.f32 %v587, 0.0
  %v660 = vmax.f32 %v589, 0.0
  %v661 = vmax.f32 %v593, 0.0
  %v662 = vmax.f32 %v595, 0.0
  %v663 = vmax.f32 %v597, 0.0
  %v664 = vmax.f32 %v599, 0.0
  %v665 = vmax.f32 %v601, %v602
  %v666 = vmax.f32 %v603, %v604
  %v667 = vmax.f32 %v605, %v606
  %v668 = vmax.f32 %v607, %v608
  %v669 = vmax.f32 %v609, %v610
  %v670 = vmax.f32 %v611, %v612
  %v671 = vmax.f32 %v613, %v614
  %v672 = vmax.f32 %v615, %v616
  %v673 = vmax.f32 %v617, %v618
  %v674 = vmax.f32 %v619, %v620
  %v675 = vmax.f32 %v621, %v622
  %v676 = vmax.f32 %v623, %v624
  %v677 = vmax.f32 %v625, %v626
  %v678 = vmax.f32 %v627, %v628
  %v679 = vmax.f32 %v629, %v630
  %v680 = vmax.f32 %v631, %v632
  %v681 = vmax.f32 %v633, %v634
  %v682 = vmax.f32 %v635, %v636
  %v683 = vmax.f32 %v637, %v638
  %v684 = vmax.f32 %v639, %v640
  %v685 = vmax.f32 %v641, %v642
  %v686 = vmax.f32 %v643, %v644
  %v687 = vmax.f32 %v645, %v646
  %v688 = vmax.f32 %v647, %v648
  %v689 = vmax.f32 %v649, %v650
  %v690 = vmax.f32 %v651, %v652
  %v691 = vmax.f32 %v653, %v654
  %v692 = vmax.f32 %v655, %v656
  %v693 = vmax.f32 %v657, %v658
  %v694 = vmax.f32 %v659, %v660
  %v695 = vmax.f32 %v661, %v662
  %v696 = vmax.f32 %v663, %v664
  %v697 = vpack.c.bf16 %v666, %v665
  %v698 = vpack.c.bf16 %v668, %v667
  %v699 = vpack.c.bf16 %v670, %v669
  %v700 = vpack.c.bf16 %v672, %v671
  %v701 = vpack.c.bf16 %v674, %v673
  %v702 = vpack.c.bf16 %v676, %v675
  %v703 = vpack.c.bf16 %v678, %v677
  %v704 = vpack.c.bf16 %v680, %v679
  %v705 = vpack.c.bf16 %v682, %v681
  %v706 = vpack.c.bf16 %v684, %v683
  %v707 = vpack.c.bf16 %v686, %v685
  %v708 = vpack.c.bf16 %v688, %v687
  %v709 = vpack.c.bf16 %v690, %v689
  %v710 = vpack.c.bf16 %v692, %v691
  %v711 = vpack.c.bf16 %v694, %v693
  %v712 = vpack.c.bf16 %v696, %v695
  %v713 = vld [vmem:[%s3] sm:$0xff]
  %v714 = vld [vmem:[%s3 + $0x8] sm:$0xff]
  %v715 = vld [vmem:[%s3 + $0x10] sm:$0xff]
  %v716 = vld [vmem:[%s3 + $0x18] sm:$0xff]
  %v717 = vld [vmem:[%s3 + $0x20] sm:$0xff]
  %v718 = vld [vmem:[%s3 + $0x28] sm:$0xff]
  %v719 = vld [vmem:[%s3 + $0x30] sm:$0xff]
  %v720 = vld [vmem:[%s3 + $0x38] sm:$0xff]
  %v721 = vld [vmem:[%s3 + $0x40] sm:$0xff]
  %v722 = vld [vmem:[%s3 + $0x48] sm:$0xff]
  %v723 = vld [vmem:[%s3 + $0x50] sm:$0xff]
  %v724 = vld [vmem:[%s3 + $0x58] sm:$0xff]
  %v725 = vld [vmem:[%s3 + $0x60] sm:$0xff]
  %v726 = vld [vmem:[%s3 + $0x68] sm:$0xff]
  %v727 = vld [vmem:[%s3 + $0x70] sm:$0xff]
  %v728 = vld [vmem:[%s3 + $0x78] sm:$0xff]
  %v745 = vunpack.c.l.b16 %v713
  %v746 = vunpack.c.h.b16 %v713
  %v747 = vunpack.c.l.b16 %v714
  %v748 = vunpack.c.h.b16 %v714
  %v749 = vunpack.c.l.b16 %v715
  %v750 = vunpack.c.h.b16 %v715
  %v751 = vunpack.c.l.b16 %v716
  %v752 = vunpack.c.h.b16 %v716
  %v753 = vunpack.c.l.b16 %v717
  %v754 = vunpack.c.h.b16 %v717
  %v755 = vunpack.c.l.b16 %v718
  %v756 = vunpack.c.h.b16 %v718
  %v757 = vunpack.c.l.b16 %v719
  %v758 = vunpack.c.h.b16 %v719
  %v759 = vunpack.c.l.b16 %v720
  %v760 = vunpack.c.h.b16 %v720
  %v761 = vunpack.c.l.b16 %v721
  %v762 = vunpack.c.h.b16 %v721
  %v763 = vunpack.c.l.b16 %v722
  %v764 = vunpack.c.h.b16 %v722
  %v765 = vunpack.c.l.b16 %v723
  %v766 = vunpack.c.h.b16 %v723
  %v767 = vunpack.c.l.b16 %v724
  %v768 = vunpack.c.h.b16 %v724
  %v769 = vunpack.c.l.b16 %v725
  %v770 = vunpack.c.h.b16 %v725
  %v771 = vunpack.c.l.b16 %v726
  %v772 = vunpack.c.h.b16 %v726
  %v773 = vunpack.c.l.b16 %v727
  %v774 = vunpack.c.h.b16 %v727
  %v775 = vunpack.c.l.b16 %v728
  %v776 = vunpack.c.h.b16 %v728
  %v777 = vpack.c.b16 %v747, %v745
  %v778 = vpack.c.b16 %v748, %v746
  %v779 = vpack.c.b16 %v751, %v749
  %v780 = vpack.c.b16 %v752, %v750
  %v781 = vpack.c.b16 %v755, %v753
  %v782 = vpack.c.b16 %v756, %v754
  %v783 = vpack.c.b16 %v759, %v757
  %v784 = vpack.c.b16 %v760, %v758
  %v785 = vpack.c.b16 %v763, %v761
  %v786 = vpack.c.b16 %v764, %v762
  %v787 = vpack.c.b16 %v767, %v765
  %v788 = vpack.c.b16 %v768, %v766
  %v789 = vpack.c.b16 %v771, %v769
  %v790 = vpack.c.b16 %v772, %v770
  %v791 = vpack.c.b16 %v775, %v773
  %v792 = vpack.c.b16 %v776, %v774
  %809 = vmatprep.subr.bf16.mxu0 0
  %810 = vmatpush1.bf16.msra.mxu0 %v704
  %811 = vmatprep.subr.bf16.mxu0 0
  %812 = vmatpush1.bf16.msra.mxu0 %v703
  %813 = vmatprep.subr.bf16.mxu0 0
  %814 = vmatpush1.bf16.msra.mxu0 %v702
  %815 = vmatprep.subr.bf16.mxu0 0
  %816 = vmatpush1.bf16.msra.mxu0 %v701
  %817 = vmatprep.subr.bf16.mxu0 0
  %818 = vmatpush1.bf16.msra.mxu0 %v700
  %819 = vmatprep.subr.bf16.mxu0 0
  %820 = vmatpush1.bf16.msra.mxu0 %v699
  %821 = vmatprep.subr.bf16.mxu0 0
  %822 = vmatpush1.bf16.msra.mxu0 %v698
  %823 = vmatprep.subr.bf16.mxu0 0
  %824 = vmatpush1.bf16.msra.mxu0 %v697
  %825 = vmatprep.subr.bf16.mxu0 0
  %826 = vmatpush2.bf16.msra.mxu0 %v712
  %827 = vmatprep.subr.bf16.mxu0 0
  %828 = vmatpush2.bf16.msra.mxu0 %v711
  %829 = vmatprep.subr.bf16.mxu0 0
  %830 = vmatpush2.bf16.msra.mxu0 %v710
  %831 = vmatprep.subr.bf16.mxu0 0
  %832 = vmatpush2.bf16.msra.mxu0 %v709
  %833 = vmatprep.subr.bf16.mxu0 0
  %834 = vmatpush2.bf16.msra.mxu0 %v708
  %835 = vmatprep.subr.bf16.mxu0 0
  %836 = vmatpush2.bf16.msra.mxu0 %v707
  %837 = vmatprep.subr.bf16.mxu0 0
  %838 = vmatpush2.bf16.msra.mxu0 %v706
  %839 = vmatprep.subr.bf16.mxu0 0
  %840 = vmatpush2.bf16.msra.mxu0 %v705
  %841 = vmatprep.mubr.bf16.mxu0 %v778
  %842 = vmatmul.mubr.bf16.gmra.mxu0 %v777
  %v843 = vpop.f32.mrf.mxu0
  %v844 = vadd.f32 0.0, %v843
  %v845 = vpop.f32.mrf.mxu0
  %v846 = vpop.f32.mrf.mxu0
  %v847 = vadd.f32 0.0, %v846
  %v848 = vpop.f32.mrf.mxu0
  %849 = vmatprep.mubr.bf16.mxu0 %v780
  %850 = vmatmul.mubr.bf16.gmra.mxu0 %v779
  %v851 = vpop.f32.mrf.mxu0
  %v852 = vadd.f32 0.0, %v851
  %v853 = vpop.f32.mrf.mxu0
  %v854 = vpop.f32.mrf.mxu0
  %v855 = vadd.f32 0.0, %v854
  %v856 = vpop.f32.mrf.mxu0
  %857 = vmatprep.mubr.bf16.mxu0 %v782
  %858 = vmatmul.mubr.bf16.gmra.mxu0 %v781
  %v859 = vpop.f32.mrf.mxu0
  %v860 = vadd.f32 0.0, %v859
  %v861 = vpop.f32.mrf.mxu0
  %v862 = vpop.f32.mrf.mxu0
  %v863 = vadd.f32 0.0, %v862
  %v864 = vpop.f32.mrf.mxu0
  %865 = vmatprep.mubr.bf16.mxu0 %v784
  %866 = vmatmul.mubr.bf16.gmra.mxu0 %v783
  %v867 = vpop.f32.mrf.mxu0
  %v868 = vadd.f32 0.0, %v867
  %v869 = vpop.f32.mrf.mxu0
  %v870 = vpop.f32.mrf.mxu0
  %v871 = vadd.f32 0.0, %v870
  %v872 = vpop.f32.mrf.mxu0
  %873 = vmatprep.mubr.bf16.mxu0 %v786
  %874 = vmatmul.mubr.bf16.gmra.mxu0 %v785
  %v875 = vpop.f32.mrf.mxu0
  %v876 = vadd.f32 0.0, %v875
  %v877 = vpop.f32.mrf.mxu0
  %v878 = vpop.f32.mrf.mxu0
  %v879 = vadd.f32 0.0, %v878
  %v880 = vpop.f32.mrf.mxu0
  %881 = vmatprep.mubr.bf16.mxu0 %v788
  %882 = vmatmul.mubr.bf16.gmra.mxu0 %v787
  %v883 = vpop.f32.mrf.mxu0
  %v884 = vadd.f32 0.0, %v883
  %v885 = vpop.f32.mrf.mxu0
  %v886 = vpop.f32.mrf.mxu0
  %v887 = vadd.f32 0.0, %v886
  %v888 = vpop.f32.mrf.mxu0
  %889 = vmatprep.mubr.bf16.mxu0 %v790
  %890 = vmatmul.mubr.bf16.gmra.mxu0 %v789
  %v891 = vpop.f32.mrf.mxu0
  %v892 = vadd.f32 0.0, %v891
  %v893 = vpop.f32.mrf.mxu0
  %v894 = vpop.f32.mrf.mxu0
  %v895 = vadd.f32 0.0, %v894
  %v896 = vpop.f32.mrf.mxu0
  %897 = vmatprep.mubr.bf16.mxu0 %v792
  %898 = vmatmul.mubr.bf16.gmra.mxu0 %v791
  %v899 = vpop.f32.mrf.mxu0
  %v900 = vadd.f32 0.0, %v899
  %v901 = vpop.f32.mrf.mxu0
  %v902 = vpop.f32.mrf.mxu0
  %v903 = vadd.f32 0.0, %v902
  %v904 = vpop.f32.mrf.mxu0
  %905 = vdwg.mxu0
  %v906 = vld [vmem:[%s4] sm:$0xff]
  %v907 = vld [vmem:[%s4 + $0x8] sm:$0xff]
  %v908 = vld [vmem:[%s4 + $0x10] sm:$0xff]
  %v909 = vld [vmem:[%s4 + $0x18] sm:$0xff]
  %v910 = vld [vmem:[%s4 + $0x20] sm:$0xff]
  %v911 = vld [vmem:[%s4 + $0x28] sm:$0xff]
  %v912 = vld [vmem:[%s4 + $0x30] sm:$0xff]
  %v913 = vld [vmem:[%s4 + $0x38] sm:$0xff]
  %v914 = vld [vmem:[%s4 + $0x40] sm:$0xff]
  %v915 = vld [vmem:[%s4 + $0x48] sm:$0xff]
  %v916 = vld [vmem:[%s4 + $0x50] sm:$0xff]
  %v917 = vld [vmem:[%s4 + $0x58] sm:$0xff]
  %v918 = vld [vmem:[%s4 + $0x60] sm:$0xff]
  %v919 = vld [vmem:[%s4 + $0x68] sm:$0xff]
  %v920 = vld [vmem:[%s4 + $0x70] sm:$0xff]
  %v921 = vld [vmem:[%s4 + $0x78] sm:$0xff]
  %v938 = vunpack.c.l.b16 %v906
  %v939 = vunpack.c.h.b16 %v906
  %v940 = vunpack.c.l.b16 %v907
  %v941 = vunpack.c.h.b16 %v907
  %v942 = vunpack.c.l.b16 %v908
  %v943 = vunpack.c.h.b16 %v908
  %v944 = vunpack.c.l.b16 %v909
  %v945 = vunpack.c.h.b16 %v909
  %v946 = vunpack.c.l.b16 %v910
  %v947 = vunpack.c.h.b16 %v910
  %v948 = vunpack.c.l.b16 %v911
  %v949 = vunpack.c.h.b16 %v911
  %v950 = vunpack.c.l.b16 %v912
  %v951 = vunpack.c.h.b16 %v912
  %v952 = vunpack.c.l.b16 %v913
  %v953 = vunpack.c.h.b16 %v913
  %v954 = vunpack.c.l.b16 %v914
  %v955 = vunpack.c.h.b16 %v914
  %v956 = vunpack.c.l.b16 %v915
  %v957 = vunpack.c.h.b16 %v915
  %v958 = vunpack.c.l.b16 %v916
  %v959 = vunpack.c.h.b16 %v916
  %v960 = vunpack.c.l.b16 %v917
  %v961 = vunpack.c.h.b16 %v917
  %v962 = vunpack.c.l.b16 %v918
  %v963 = vunpack.c.h.b16 %v918
  %v964 = vunpack.c.l.b16 %v919
  %v965 = vunpack.c.h.b16 %v919
  %v966 = vunpack.c.l.b16 %v920
  %v967 = vunpack.c.h.b16 %v920
  %v968 = vunpack.c.l.b16 %v921
  %v969 = vunpack.c.h.b16 %v921
  %v970 = vpack.c.b16 %v940, %v938
  %v971 = vpack.c.b16 %v941, %v939
  %v972 = vpack.c.b16 %v944, %v942
  %v973 = vpack.c.b16 %v945, %v943
  %v974 = vpack.c.b16 %v948, %v946
  %v975 = vpack.c.b16 %v949, %v947
  %v976 = vpack.c.b16 %v952, %v950
  %v977 = vpack.c.b16 %v953, %v951
  %v978 = vpack.c.b16 %v956, %v954
  %v979 = vpack.c.b16 %v957, %v955
  %v980 = vpack.c.b16 %v960, %v958
  %v981 = vpack.c.b16 %v961, %v959
  %v982 = vpack.c.b16 %v964, %v962
  %v983 = vpack.c.b16 %v965, %v963
  %v984 = vpack.c.b16 %v968, %v966
  %v985 = vpack.c.b16 %v969, %v967
  %1002 = vmatprep.subr.bf16.mxu0 0
  %1003 = vmatpush1.bf16.msra.mxu0 %v704
  %1004 = vmatprep.subr.bf16.mxu0 0
  %1005 = vmatpush1.bf16.msra.mxu0 %v703
  %1006 = vmatprep.subr.bf16.mxu0 0
  %1007 = vmatpush1.bf16.msra.mxu0 %v702
  %1008 = vmatprep.subr.bf16.mxu0 0
  %1009 = vmatpush1.bf16.msra.mxu0 %v701
  %1010 = vmatprep.subr.bf16.mxu0 0
  %1011 = vmatpush1.bf16.msra.mxu0 %v700
  %1012 = vmatprep.subr.bf16.mxu0 0
  %1013 = vmatpush1.bf16.msra.mxu0 %v699
  %1014 = vmatprep.subr.bf16.mxu0 0
  %1015 = vmatpush1.bf16.msra.mxu0 %v698
  %1016 = vmatprep.subr.bf16.mxu0 0
  %1017 = vmatpush1.bf16.msra.mxu0 %v697
  %1018 = vmatprep.subr.bf16.mxu0 0
  %1019 = vmatpush2.bf16.msra.mxu0 %v712
  %1020 = vmatprep.subr.bf16.mxu0 0
  %1021 = vmatpush2.bf16.msra.mxu0 %v711
  %1022 = vmatprep.subr.bf16.mxu0 0
  %1023 = vmatpush2.bf16.msra.mxu0 %v710
  %1024 = vmatprep.subr.bf16.mxu0 0
  %1025 = vmatpush2.bf16.msra.mxu0 %v709
  %1026 = vmatprep.subr.bf16.mxu0 0
  %1027 = vmatpush2.bf16.msra.mxu0 %v708
  %1028 = vmatprep.subr.bf16.mxu0 0
  %1029 = vmatpush2.bf16.msra.mxu0 %v707
  %1030 = vmatprep.subr.bf16.mxu0 0
  %1031 = vmatpush2.bf16.msra.mxu0 %v706
  %1032 = vmatprep.subr.bf16.mxu0 0
  %1033 = vmatpush2.bf16.msra.mxu0 %v705
  %1034 = vmatprep.mubr.bf16.mxu0 %v971
  %1035 = vmatmul.mubr.bf16.gmra.mxu0 %v970
  %v1036 = vpop.f32.mrf.mxu0
  %v1037 = vadd.f32 0.0, %v1036
  %v1038 = vpop.f32.mrf.mxu0
  %v1039 = vpop.f32.mrf.mxu0
  %v1040 = vadd.f32 0.0, %v1039
  %v1041 = vpop.f32.mrf.mxu0
  %1042 = vmatprep.mubr.bf16.mxu0 %v973
  %1043 = vmatmul.mubr.bf16.gmra.mxu0 %v972
  %v1044 = vpop.f32.mrf.mxu0
  %v1045 = vadd.f32 0.0, %v1044
  %v1046 = vpop.f32.mrf.mxu0
  %v1047 = vpop.f32.mrf.mxu0
  %v1048 = vadd.f32 0.0, %v1047
  %v1049 = vpop.f32.mrf.mxu0
  %1050 = vmatprep.mubr.bf16.mxu0 %v975
  %1051 = vmatmul.mubr.bf16.gmra.mxu0 %v974
  %v1052 = vpop.f32.mrf.mxu0
  %v1053 = vadd.f32 0.0, %v1052
  %v1054 = vpop.f32.mrf.mxu0
  %v1055 = vpop.f32.mrf.mxu0
  %v1056 = vadd.f32 0.0, %v1055
  %v1057 = vpop.f32.mrf.mxu0
  %1058 = vmatprep.mubr.bf16.mxu0 %v977
  %1059 = vmatmul.mubr.bf16.gmra.mxu0 %v976
  %v1060 = vpop.f32.mrf.mxu0
  %v1061 = vadd.f32 0.0, %v1060
  %v1062 = vpop.f32.mrf.mxu0
  %v1063 = vpop.f32.mrf.mxu0
  %v1064 = vadd.f32 0.0, %v1063
  %v1065 = vpop.f32.mrf.mxu0
  %1066 = vmatprep.mubr.bf16.mxu0 %v979
  %1067 = vmatmul.mubr.bf16.gmra.mxu0 %v978
  %v1068 = vpop.f32.mrf.mxu0
  %v1069 = vadd.f32 0.0, %v1068
  %v1070 = vpop.f32.mrf.mxu0
  %v1071 = vpop.f32.mrf.mxu0
  %v1072 = vadd.f32 0.0, %v1071
  %v1073 = vpop.f32.mrf.mxu0
  %1074 = vmatprep.mubr.bf16.mxu0 %v981
  %1075 = vmatmul.mubr.bf16.gmra.mxu0 %v980
  %v1076 = vpop.f32.mrf.mxu0
  %v1077 = vadd.f32 0.0, %v1076
  %v1078 = vpop.f32.mrf.mxu0
  %v1079 = vpop.f32.mrf.mxu0
  %v1080 = vadd.f32 0.0, %v1079
  %v1081 = vpop.f32.mrf.mxu0
  %1082 = vmatprep.mubr.bf16.mxu0 %v983
  %1083 = vmatmul.mubr.bf16.gmra.mxu0 %v982
  %v1084 = vpop.f32.mrf.mxu0
  %v1085 = vadd.f32 0.0, %v1084
  %v1086 = vpop.f32.mrf.mxu0
  %v1087 = vpop.f32.mrf.mxu0
  %v1088 = vadd.f32 0.0, %v1087
  %v1089 = vpop.f32.mrf.mxu0
  %1090 = vmatprep.mubr.bf16.mxu0 %v985
  %1091 = vmatmul.mubr.bf16.gmra.mxu0 %v984
  %v1092 = vpop.f32.mrf.mxu0
  %v1093 = vadd.f32 0.0, %v1092
  %v1094 = vpop.f32.mrf.mxu0
  %v1095 = vpop.f32.mrf.mxu0
  %v1096 = vadd.f32 0.0, %v1095
  %v1097 = vpop.f32.mrf.mxu0
  %1098 = vdwg.mxu0
  %v1099 = vmax.f32 %v844, %v1037
  %v1100 = vmax.f32 %v847, %v1040
  %v1101 = vmax.f32 %v852, %v1045
  %v1102 = vmax.f32 %v855, %v1048
  %v1103 = vmax.f32 %v860, %v1053
  %v1104 = vmax.f32 %v863, %v1056
  %v1105 = vmax.f32 %v868, %v1061
  %v1106 = vmax.f32 %v871, %v1064
  %v1107 = vmax.f32 %v876, %v1069
  %v1108 = vmax.f32 %v879, %v1072
  %v1109 = vmax.f32 %v884, %v1077
  %v1110 = vmax.f32 %v887, %v1080
  %v1111 = vmax.f32 %v892, %v1085
  %v1112 = vmax.f32 %v895, %v1088
  %v1113 = vmax.f32 %v900, %v1093
  %v1114 = vmax.f32 %v903, %v1096
  %1115 = vst [vmem:[#allocation2] sm:$0xff] %v1099
  %1116 = vst [vmem:[#allocation2 + $0x8] sm:$0xff] %v1100
  %1117 = vst [vmem:[#allocation2 + $0x10] sm:$0xff] %v1101
  %1118 = vst [vmem:[#allocation2 + $0x18] sm:$0xff] %v1102
  %1119 = vst [vmem:[#allocation2 + $0x20] sm:$0xff] %v1103
  %1120 = vst [vmem:[#allocation2 + $0x28] sm:$0xff] %v1104
  %1121 = vst [vmem:[#allocation2 + $0x30] sm:$0xff] %v1105
  %1122 = vst [vmem:[#allocation2 + $0x38] sm:$0xff] %v1106
  %1123 = vst [vmem:[#allocation2 + $0x40] sm:$0xff] %v1107
  %1124 = vst [vmem:[#allocation2 + $0x48] sm:$0xff] %v1108
  %1125 = vst [vmem:[#allocation2 + $0x50] sm:$0xff] %v1109
  %1126 = vst [vmem:[#allocation2 + $0x58] sm:$0xff] %v1110
  %1127 = vst [vmem:[#allocation2 + $0x60] sm:$0xff] %v1111
  %1128 = vst [vmem:[#allocation2 + $0x68] sm:$0xff] %v1112
  %1129 = vst [vmem:[#allocation2 + $0x70] sm:$0xff] %v1113
  %1130 = vst [vmem:[#allocation2 + $0x78] sm:$0xff] %v1114
  %1131 = vst [vmem:[#allocation2 + $0x80] sm:$0xff] 0.0
  %v1132 = vld [vmem:[#allocation2] sm:$0xff]
  %v1133 = vld [vmem:[#allocation2 + $0x8] sm:$0xff]
  %v1134 = vld [vmem:[#allocation2 + $0x10] sm:$0xff]
  %v1135 = vld [vmem:[#allocation2 + $0x18] sm:$0xff]
  %v1136 = vld [vmem:[#allocation2 + $0x20] sm:$0xff]
  %v1137 = vld [vmem:[#allocation2 + $0x28] sm:$0xff]
  %v1138 = vld [vmem:[#allocation2 + $0x30] sm:$0xff]
  %v1139 = vld [vmem:[#allocation2 + $0x38] sm:$0xff]
  %v1140 = vld [vmem:[#allocation2 + $0x40] sm:$0xff]
  %v1141 = vld [vmem:[#allocation2 + $0x48] sm:$0xff]
  %v1142 = vld [vmem:[#allocation2 + $0x50] sm:$0xff]
  %v1143 = vld [vmem:[#allocation2 + $0x58] sm:$0xff]
  %v1144 = vld [vmem:[#allocation2 + $0x60] sm:$0xff]
  %v1145 = vld [vmem:[#allocation2 + $0x68] sm:$0xff]
  %v1146 = vld [vmem:[#allocation2 + $0x70] sm:$0xff]
  %v1147 = vld [vmem:[#allocation2 + $0x78] sm:$0xff]
  %v1148 = vpack.c.bf16 %v1133, %v1132
  %v1149 = vpack.c.bf16 %v1135, %v1134
  %v1150 = vpack.c.bf16 %v1137, %v1136
  %v1151 = vpack.c.bf16 %v1139, %v1138
  %v1152 = vpack.c.bf16 %v1141, %v1140
  %v1153 = vpack.c.bf16 %v1143, %v1142
  %v1154 = vpack.c.bf16 %v1145, %v1144
  %v1155 = vpack.c.bf16 %v1147, %v1146
  %v1156 = vld [vmem:[%s5] sm:$0xff]
  %v1157 = vld [vmem:[%s5 + $0x8] sm:$0xff]
  %v1158 = vld [vmem:[%s5 + $0x10] sm:$0xff]
  %v1159 = vld [vmem:[%s5 + $0x18] sm:$0xff]
  %v1160 = vld [vmem:[%s5 + $0x20] sm:$0xff]
  %v1161 = vld [vmem:[%s5 + $0x28] sm:$0xff]
  %v1162 = vld [vmem:[%s5 + $0x30] sm:$0xff]
  %v1163 = vld [vmem:[%s5 + $0x38] sm:$0xff]
  %v1164 = vld [vmem:[%s5 + $0x40] sm:$0xff]
  %v1165 = vld [vmem:[%s5 + $0x48] sm:$0xff]
  %v1166 = vld [vmem:[%s5 + $0x50] sm:$0xff]
  %v1167 = vld [vmem:[%s5 + $0x58] sm:$0xff]
  %v1168 = vld [vmem:[%s5 + $0x60] sm:$0xff]
  %v1169 = vld [vmem:[%s5 + $0x68] sm:$0xff]
  %v1170 = vld [vmem:[%s5 + $0x70] sm:$0xff]
  %v1171 = vld [vmem:[%s5 + $0x78] sm:$0xff]
  %v1172 = vld [vmem:[#allocation2 + $0x1] sm:$0xff]
  %v1173 = vld [vmem:[#allocation2 + $0x9] sm:$0xff]
  %v1174 = vld [vmem:[#allocation2 + $0x11] sm:$0xff]
  %v1175 = vld [vmem:[#allocation2 + $0x19] sm:$0xff]
  %v1176 = vld [vmem:[#allocation2 + $0x21] sm:$0xff]
  %v1177 = vld [vmem:[#allocation2 + $0x29] sm:$0xff]
  %v1178 = vld [vmem:[#allocation2 + $0x31] sm:$0xff]
  %v1179 = vld [vmem:[#allocation2 + $0x39] sm:$0xff]
  %v1180 = vld [vmem:[#allocation2 + $0x41] sm:$0xff]
  %v1181 = vld [vmem:[#allocation2 + $0x49] sm:$0xff]
  %v1182 = vld [vmem:[#allocation2 + $0x51] sm:$0xff]
  %v1183 = vld [vmem:[#allocation2 + $0x59] sm:$0xff]
  %v1184 = vld [vmem:[#allocation2 + $0x61] sm:$0xff]
  %v1185 = vld [vmem:[#allocation2 + $0x69] sm:$0xff]
  %v1186 = vld [vmem:[#allocation2 + $0x71] sm:$0xff]
  %v1187 = vld [vmem:[#allocation2 + $0x79] sm:$0xff]
  %v1188 = vpack.c.bf16 %v1173, %v1172
  %v1189 = vpack.c.bf16 %v1175, %v1174
  %v1190 = vpack.c.bf16 %v1177, %v1176
  %v1191 = vpack.c.bf16 %v1179, %v1178
  %v1192 = vpack.c.bf16 %v1181, %v1180
  %v1193 = vpack.c.bf16 %v1183, %v1182
  %v1194 = vpack.c.bf16 %v1185, %v1184
  %v1195 = vpack.c.bf16 %v1187, %v1186
  %s1196 = scalar_lea.vmem %s5, 128
  %v1197 = vld [vmem:[%s1196] sm:$0xff]
  %v1198 = vld [vmem:[%s1196 + $0x8] sm:$0xff]
  %v1199 = vld [vmem:[%s1196 + $0x10] sm:$0xff]
  %v1200 = vld [vmem:[%s1196 + $0x18] sm:$0xff]
  %v1201 = vld [vmem:[%s1196 + $0x20] sm:$0xff]
  %v1202 = vld [vmem:[%s1196 + $0x28] sm:$0xff]
  %v1203 = vld [vmem:[%s1196 + $0x30] sm:$0xff]
  %v1204 = vld [vmem:[%s1196 + $0x38] sm:$0xff]
  %v1205 = vld [vmem:[%s1196 + $0x40] sm:$0xff]
  %v1206 = vld [vmem:[%s1196 + $0x48] sm:$0xff]
  %v1207 = vld [vmem:[%s1196 + $0x50] sm:$0xff]
  %v1208 = vld [vmem:[%s1196 + $0x58] sm:$0xff]
  %v1209 = vld [vmem:[%s1196 + $0x60] sm:$0xff]
  %v1210 = vld [vmem:[%s1196 + $0x68] sm:$0xff]
  %v1211 = vld [vmem:[%s1196 + $0x70] sm:$0xff]
  %v1212 = vld [vmem:[%s1196 + $0x78] sm:$0xff]
  %v1229 = vunpack.c.l.b16 %v1197
  %v1230 = vunpack.c.h.b16 %v1197
  %v1231 = vunpack.c.l.b16 %v1198
  %v1232 = vunpack.c.h.b16 %v1198
  %v1233 = vunpack.c.l.b16 %v1199
  %v1234 = vunpack.c.h.b16 %v1199
  %v1235 = vunpack.c.l.b16 %v1200
  %v1236 = vunpack.c.h.b16 %v1200
  %v1237 = vunpack.c.l.b16 %v1201
  %v1238 = vunpack.c.h.b16 %v1201
  %v1239 = vunpack.c.l.b16 %v1202
  %v1240 = vunpack.c.h.b16 %v1202
  %v1241 = vunpack.c.l.b16 %v1203
  %v1242 = vunpack.c.h.b16 %v1203
  %v1243 = vunpack.c.l.b16 %v1204
  %v1244 = vunpack.c.h.b16 %v1204
  %v1245 = vunpack.c.l.b16 %v1205
  %v1246 = vunpack.c.h.b16 %v1205
  %v1247 = vunpack.c.l.b16 %v1206
  %v1248 = vunpack.c.h.b16 %v1206
  %v1249 = vunpack.c.l.b16 %v1207
  %v1250 = vunpack.c.h.b16 %v1207
  %v1251 = vunpack.c.l.b16 %v1208
  %v1252 = vunpack.c.h.b16 %v1208
  %v1253 = vunpack.c.l.b16 %v1209
  %v1254 = vunpack.c.h.b16 %v1209
  %v1255 = vunpack.c.l.b16 %v1210
  %v1256 = vunpack.c.h.b16 %v1210
  %v1257 = vunpack.c.l.b16 %v1211
  %v1258 = vunpack.c.h.b16 %v1211
  %v1259 = vunpack.c.l.b16 %v1212
  %v1260 = vunpack.c.h.b16 %v1212
  %v1261 = vpack.c.b16 %v1231, %v1229
  %v1262 = vpack.c.b16 %v1232, %v1230
  %v1263 = vpack.c.b16 %v1235, %v1233
  %v1264 = vpack.c.b16 %v1236, %v1234
  %v1265 = vpack.c.b16 %v1239, %v1237
  %v1266 = vpack.c.b16 %v1240, %v1238
  %v1267 = vpack.c.b16 %v1243, %v1241
  %v1268 = vpack.c.b16 %v1244, %v1242
  %v1269 = vpack.c.b16 %v1247, %v1245
  %v1270 = vpack.c.b16 %v1248, %v1246
  %v1271 = vpack.c.b16 %v1251, %v1249
  %v1272 = vpack.c.b16 %v1252, %v1250
  %v1273 = vpack.c.b16 %v1255, %v1253
  %v1274 = vpack.c.b16 %v1256, %v1254
  %v1275 = vpack.c.b16 %v1259, %v1257
  %v1276 = vpack.c.b16 %v1260, %v1258
  %1293 = vmatprep.subr.bf16.mxu0 %v1276
  %1294 = vmatpush1.bf16.msra.mxu0 %v1275
  %1295 = vmatprep.subr.bf16.mxu0 %v1274
  %1296 = vmatpush1.bf16.msra.mxu0 %v1273
  %1297 = vmatprep.subr.bf16.mxu0 %v1272
  %1298 = vmatpush1.bf16.msra.mxu0 %v1271
  %1299 = vmatprep.subr.bf16.mxu0 %v1270
  %1300 = vmatpush1.bf16.msra.mxu0 %v1269
  %1301 = vmatprep.subr.bf16.mxu0 %v1268
  %1302 = vmatpush1.bf16.msra.mxu0 %v1267
  %1303 = vmatprep.subr.bf16.mxu0 %v1266
  %1304 = vmatpush1.bf16.msra.mxu0 %v1265
  %1305 = vmatprep.subr.bf16.mxu0 %v1264
  %1306 = vmatpush1.bf16.msra.mxu0 %v1263
  %1307 = vmatprep.subr.bf16.mxu0 %v1262
  %1308 = vmatpush1.bf16.msra.mxu0 %v1261
  %1309 = vmatprep.subr.bf16.mxu0 0
  %1310 = vmatpush2.bf16.msra.mxu0 0
  %1311 = vmatprep.subr.bf16.mxu0 0
  %1312 = vmatpush2.bf16.msra.mxu0 0
  %1313 = vmatprep.subr.bf16.mxu0 0
  %1314 = vmatpush2.bf16.msra.mxu0 0
  %1315 = vmatprep.subr.bf16.mxu0 0
  %1316 = vmatpush2.bf16.msra.mxu0 0
  %1317 = vmatprep.subr.bf16.mxu0 0
  %1318 = vmatpush2.bf16.msra.mxu0 0
  %1319 = vmatprep.subr.bf16.mxu0 0
  %1320 = vmatpush2.bf16.msra.mxu0 0
  %1321 = vmatprep.subr.bf16.mxu0 0
  %1322 = vmatpush2.bf16.msra.mxu0 0
  %1323 = vmatprep.subr.bf16.mxu0 0
  %1324 = vmatpush2.bf16.msra.mxu0 0
  %1325 = vmatprep.mubr.bf16.mxu0 0
  %1326 = vmatmul.mubr.bf16.gmra.mxu0 %v1188
  %v1327 = vpop.f32.mrf.mxu0
  %v1328 = vadd.f32 0.0, %v1327
  %v1329 = vpop.f32.mrf.mxu0
  %v1330 = vadd.f32 0.0, %v1329
  %v1331 = vpop.f32.mrf.mxu0
  %v1332 = vadd.f32 0.0, %v1331
  %v1333 = vpop.f32.mrf.mxu0
  %v1334 = vadd.f32 0.0, %v1333
  %1335 = vmatprep.mubr.bf16.mxu0 0
  %1336 = vmatmul.mubr.bf16.gmra.mxu0 %v1189
  %v1337 = vpop.f32.mrf.mxu0
  %v1338 = vadd.f32 0.0, %v1337
  %v1339 = vpop.f32.mrf.mxu0
  %v1340 = vadd.f32 0.0, %v1339
  %v1341 = vpop.f32.mrf.mxu0
  %v1342 = vadd.f32 0.0, %v1341
  %v1343 = vpop.f32.mrf.mxu0
  %v1344 = vadd.f32 0.0, %v1343
  %1345 = vmatprep.mubr.bf16.mxu0 0
  %1346 = vmatmul.mubr.bf16.gmra.mxu0 %v1190
  %v1347 = vpop.f32.mrf.mxu0
  %v1348 = vadd.f32 0.0, %v1347
  %v1349 = vpop.f32.mrf.mxu0
  %v1350 = vadd.f32 0.0, %v1349
  %v1351 = vpop.f32.mrf.mxu0
  %v1352 = vadd.f32 0.0, %v1351
  %v1353 = vpop.f32.mrf.mxu0
  %v1354 = vadd.f32 0.0, %v1353
  %1355 = vmatprep.mubr.bf16.mxu0 0
  %1356 = vmatmul.mubr.bf16.gmra.mxu0 %v1191
  %v1357 = vpop.f32.mrf.mxu0
  %v1358 = vadd.f32 0.0, %v1357
  %v1359 = vpop.f32.mrf.mxu0
  %v1360 = vadd.f32 0.0, %v1359
  %v1361 = vpop.f32.mrf.mxu0
  %v1362 = vadd.f32 0.0, %v1361
  %v1363 = vpop.f32.mrf.mxu0
  %v1364 = vadd.f32 0.0, %v1363
  %1365 = vmatprep.mubr.bf16.mxu0 0
  %1366 = vmatmul.mubr.bf16.gmra.mxu0 %v1192
  %v1367 = vpop.f32.mrf.mxu0
  %v1368 = vadd.f32 0.0, %v1367
  %v1369 = vpop.f32.mrf.mxu0
  %v1370 = vadd.f32 0.0, %v1369
  %v1371 = vpop.f32.mrf.mxu0
  %v1372 = vadd.f32 0.0, %v1371
  %v1373 = vpop.f32.mrf.mxu0
  %v1374 = vadd.f32 0.0, %v1373
  %1375 = vmatprep.mubr.bf16.mxu0 0
  %1376 = vmatmul.mubr.bf16.gmra.mxu0 %v1193
  %v1377 = vpop.f32.mrf.mxu0
  %v1378 = vadd.f32 0.0, %v1377
  %v1379 = vpop.f32.mrf.mxu0
  %v1380 = vadd.f32 0.0, %v1379
  %v1381 = vpop.f32.mrf.mxu0
  %v1382 = vadd.f32 0.0, %v1381
  %v1383 = vpop.f32.mrf.mxu0
  %v1384 = vadd.f32 0.0, %v1383
  %1385 = vmatprep.mubr.bf16.mxu0 0
  %1386 = vmatmul.mubr.bf16.gmra.mxu0 %v1194
  %v1387 = vpop.f32.mrf.mxu0
  %v1388 = vadd.f32 0.0, %v1387
  %v1389 = vpop.f32.mrf.mxu0
  %v1390 = vadd.f32 0.0, %v1389
  %v1391 = vpop.f32.mrf.mxu0
  %v1392 = vadd.f32 0.0, %v1391
  %v1393 = vpop.f32.mrf.mxu0
  %v1394 = vadd.f32 0.0, %v1393
  %1395 = vmatprep.mubr.bf16.mxu0 0
  %1396 = vmatmul.mubr.bf16.gmra.mxu0 %v1195
  %v1397 = vpop.f32.mrf.mxu0
  %v1398 = vadd.f32 0.0, %v1397
  %v1399 = vpop.f32.mrf.mxu0
  %v1400 = vadd.f32 0.0, %v1399
  %v1401 = vpop.f32.mrf.mxu0
  %v1402 = vadd.f32 0.0, %v1401
  %v1403 = vpop.f32.mrf.mxu0
  %v1404 = vadd.f32 0.0, %v1403
  %1405 = vdwg.mxu0
  %v1422 = vunpack.c.l.b16 %v1156
  %v1423 = vunpack.c.h.b16 %v1156
  %v1424 = vunpack.c.l.b16 %v1157
  %v1425 = vunpack.c.h.b16 %v1157
  %v1426 = vunpack.c.l.b16 %v1158
  %v1427 = vunpack.c.h.b16 %v1158
  %v1428 = vunpack.c.l.b16 %v1159
  %v1429 = vunpack.c.h.b16 %v1159
  %v1430 = vunpack.c.l.b16 %v1160
  %v1431 = vunpack.c.h.b16 %v1160
  %v1432 = vunpack.c.l.b16 %v1161
  %v1433 = vunpack.c.h.b16 %v1161
  %v1434 = vunpack.c.l.b16 %v1162
  %v1435 = vunpack.c.h.b16 %v1162
  %v1436 = vunpack.c.l.b16 %v1163
  %v1437 = vunpack.c.h.b16 %v1163
  %v1438 = vunpack.c.l.b16 %v1164
  %v1439 = vunpack.c.h.b16 %v1164
  %v1440 = vunpack.c.l.b16 %v1165
  %v1441 = vunpack.c.h.b16 %v1165
  %v1442 = vunpack.c.l.b16 %v1166
  %v1443 = vunpack.c.h.b16 %v1166
  %v1444 = vunpack.c.l.b16 %v1167
  %v1445 = vunpack.c.h.b16 %v1167
  %v1446 = vunpack.c.l.b16 %v1168
  %v1447 = vunpack.c.h.b16 %v1168
  %v1448 = vunpack.c.l.b16 %v1169
  %v1449 = vunpack.c.h.b16 %v1169
  %v1450 = vunpack.c.l.b16 %v1170
  %v1451 = vunpack.c.h.b16 %v1170
  %v1452 = vunpack.c.l.b16 %v1171
  %v1453 = vunpack.c.h.b16 %v1171
  %v1454 = vpack.c.b16 %v1424, %v1422
  %v1455 = vpack.c.b16 %v1425, %v1423
  %v1456 = vpack.c.b16 %v1428, %v1426
  %v1457 = vpack.c.b16 %v1429, %v1427
  %v1458 = vpack.c.b16 %v1432, %v1430
  %v1459 = vpack.c.b16 %v1433, %v1431
  %v1460 = vpack.c.b16 %v1436, %v1434
  %v1461 = vpack.c.b16 %v1437, %v1435
  %v1462 = vpack.c.b16 %v1440, %v1438
  %v1463 = vpack.c.b16 %v1441, %v1439
  %v1464 = vpack.c.b16 %v1444, %v1442
  %v1465 = vpack.c.b16 %v1445, %v1443
  %v1466 = vpack.c.b16 %v1448, %v1446
  %v1467 = vpack.c.b16 %v1449, %v1447
  %v1468 = vpack.c.b16 %v1452, %v1450
  %v1469 = vpack.c.b16 %v1453, %v1451
  %1486 = vmatprep.subr.bf16.mxu0 %v1469
  %1487 = vmatpush1.bf16.msra.mxu0 %v1468
  %1488 = vmatprep.subr.bf16.mxu0 %v1467
  %1489 = vmatpush1.bf16.msra.mxu0 %v1466
  %1490 = vmatprep.subr.bf16.mxu0 %v1465
  %1491 = vmatpush1.bf16.msra.mxu0 %v1464
  %1492 = vmatprep.subr.bf16.mxu0 %v1463
  %1493 = vmatpush1.bf16.msra.mxu0 %v1462
  %1494 = vmatprep.subr.bf16.mxu0 %v1461
  %1495 = vmatpush1.bf16.msra.mxu0 %v1460
  %1496 = vmatprep.subr.bf16.mxu0 %v1459
  %1497 = vmatpush1.bf16.msra.mxu0 %v1458
  %1498 = vmatprep.subr.bf16.mxu0 %v1457
  %1499 = vmatpush1.bf16.msra.mxu0 %v1456
  %1500 = vmatprep.subr.bf16.mxu0 %v1455
  %1501 = vmatpush1.bf16.msra.mxu0 %v1454
  %1502 = vmatprep.subr.bf16.mxu0 0
  %1503 = vmatpush2.bf16.msra.mxu0 0
  %1504 = vmatprep.subr.bf16.mxu0 0
  %1505 = vmatpush2.bf16.msra.mxu0 0
  %1506 = vmatprep.subr.bf16.mxu0 0
  %1507 = vmatpush2.bf16.msra.mxu0 0
  %1508 = vmatprep.subr.bf16.mxu0 0
  %1509 = vmatpush2.bf16.msra.mxu0 0
  %1510 = vmatprep.subr.bf16.mxu0 0
  %1511 = vmatpush2.bf16.msra.mxu0 0
  %1512 = vmatprep.subr.bf16.mxu0 0
  %1513 = vmatpush2.bf16.msra.mxu0 0
  %1514 = vmatprep.subr.bf16.mxu0 0
  %1515 = vmatpush2.bf16.msra.mxu0 0
  %1516 = vmatprep.subr.bf16.mxu0 0
  %1517 = vmatpush2.bf16.msra.mxu0 0
  %1518 = vmatprep.mubr.bf16.mxu0 0
  %1519 = vmatmul.mubr.bf16.gmra.mxu0 %v1148
  %v1520 = vpop.f32.mrf.mxu0
  %v1521 = vadd.f32 %v1328, %v1520
  %v1522 = vpop.f32.mrf.mxu0
  %v1523 = vadd.f32 %v1330, %v1522
  %v1524 = vpop.f32.mrf.mxu0
  %v1525 = vadd.f32 %v1332, %v1524
  %v1526 = vpop.f32.mrf.mxu0
  %v1527 = vadd.f32 %v1334, %v1526
  %1528 = vmatprep.mubr.bf16.mxu0 0
  %1529 = vmatmul.mubr.bf16.gmra.mxu0 %v1149
  %v1530 = vpop.f32.mrf.mxu0
  %v1531 = vadd.f32 %v1338, %v1530
  %v1532 = vpop.f32.mrf.mxu0
  %v1533 = vadd.f32 %v1340, %v1532
  %v1534 = vpop.f32.mrf.mxu0
  %v1535 = vadd.f32 %v1342, %v1534
  %v1536 = vpop.f32.mrf.mxu0
  %v1537 = vadd.f32 %v1344, %v1536
  %1538 = vmatprep.mubr.bf16.mxu0 0
  %1539 = vmatmul.mubr.bf16.gmra.mxu0 %v1150
  %v1540 = vpop.f32.mrf.mxu0
  %v1541 = vadd.f32 %v1348, %v1540
  %v1542 = vpop.f32.mrf.mxu0
  %v1543 = vadd.f32 %v1350, %v1542
  %v1544 = vpop.f32.mrf.mxu0
  %v1545 = vadd.f32 %v1352, %v1544
  %v1546 = vpop.f32.mrf.mxu0
  %v1547 = vadd.f32 %v1354, %v1546
  %1548 = vmatprep.mubr.bf16.mxu0 0
  %1549 = vmatmul.mubr.bf16.gmra.mxu0 %v1151
  %v1550 = vpop.f32.mrf.mxu0
  %v1551 = vadd.f32 %v1358, %v1550
  %v1552 = vpop.f32.mrf.mxu0
  %v1553 = vadd.f32 %v1360, %v1552
  %v1554 = vpop.f32.mrf.mxu0
  %v1555 = vadd.f32 %v1362, %v1554
  %v1556 = vpop.f32.mrf.mxu0
  %v1557 = vadd.f32 %v1364, %v1556
  %1558 = vmatprep.mubr.bf16.mxu0 0
  %1559 = vmatmul.mubr.bf16.gmra.mxu0 %v1152
  %v1560 = vpop.f32.mrf.mxu0
  %v1561 = vadd.f32 %v1368, %v1560
  %v1562 = vpop.f32.mrf.mxu0
  %v1563 = vadd.f32 %v1370, %v1562
  %v1564 = vpop.f32.mrf.mxu0
  %v1565 = vadd.f32 %v1372, %v1564
  %v1566 = vpop.f32.mrf.mxu0
  %v1567 = vadd.f32 %v1374, %v1566
  %1568 = vmatprep.mubr.bf16.mxu0 0
  %1569 = vmatmul.mubr.bf16.gmra.mxu0 %v1153
  %v1570 = vpop.f32.mrf.mxu0
  %v1571 = vadd.f32 %v1378, %v1570
  %v1572 = vpop.f32.mrf.mxu0
  %v1573 = vadd.f32 %v1380, %v1572
  %v1574 = vpop.f32.mrf.mxu0
  %v1575 = vadd.f32 %v1382, %v1574
  %v1576 = vpop.f32.mrf.mxu0
  %v1577 = vadd.f32 %v1384, %v1576
  %1578 = vmatprep.mubr.bf16.mxu0 0
  %1579 = vmatmul.mubr.bf16.gmra.mxu0 %v1154
  %v1580 = vpop.f32.mrf.mxu0
  %v1581 = vadd.f32 %v1388, %v1580
  %v1582 = vpop.f32.mrf.mxu0
  %v1583 = vadd.f32 %v1390, %v1582
  %v1584 = vpop.f32.mrf.mxu0
  %v1585 = vadd.f32 %v1392, %v1584
  %v1586 = vpop.f32.mrf.mxu0
  %v1587 = vadd.f32 %v1394, %v1586
  %1588 = vmatprep.mubr.bf16.mxu0 0
  %1589 = vmatmul.mubr.bf16.gmra.mxu0 %v1155
  %v1590 = vpop.f32.mrf.mxu0
  %v1591 = vadd.f32 %v1398, %v1590
  %v1592 = vpop.f32.mrf.mxu0
  %v1593 = vadd.f32 %v1400, %v1592
  %v1594 = vpop.f32.mrf.mxu0
  %v1595 = vadd.f32 %v1402, %v1594
  %v1596 = vpop.f32.mrf.mxu0
  %v1597 = vadd.f32 %v1404, %v1596
  %1598 = vdwg.mxu0
  %v1599 = vld [vmem:[#allocation2 + $0x2] sm:$0xff]
  %v1600 = vld [vmem:[#allocation2 + $0xa] sm:$0xff]
  %v1601 = vld [vmem:[#allocation2 + $0x12] sm:$0xff]
  %v1602 = vld [vmem:[#allocation2 + $0x1a] sm:$0xff]
  %v1603 = vld [vmem:[#allocation2 + $0x22] sm:$0xff]
  %v1604 = vld [vmem:[#allocation2 + $0x2a] sm:$0xff]
  %v1605 = vld [vmem:[#allocation2 + $0x32] sm:$0xff]
  %v1606 = vld [vmem:[#allocation2 + $0x3a] sm:$0xff]
  %v1607 = vld [vmem:[#allocation2 + $0x42] sm:$0xff]
  %v1608 = vld [vmem:[#allocation2 + $0x4a] sm:$0xff]
  %v1609 = vld [vmem:[#allocation2 + $0x52] sm:$0xff]
  %v1610 = vld [vmem:[#allocation2 + $0x5a] sm:$0xff]
  %v1611 = vld [vmem:[#allocation2 + $0x62] sm:$0xff]
  %v1612 = vld [vmem:[#allocation2 + $0x6a] sm:$0xff]
  %v1613 = vld [vmem:[#allocation2 + $0x72] sm:$0xff]
  %v1614 = vld [vmem:[#allocation2 + $0x7a] sm:$0xff]
  %v1615 = vpack.c.bf16 %v1600, %v1599
  %v1616 = vpack.c.bf16 %v1602, %v1601
  %v1617 = vpack.c.bf16 %v1604, %v1603
  %v1618 = vpack.c.bf16 %v1606, %v1605
  %v1619 = vpack.c.bf16 %v1608, %v1607
  %v1620 = vpack.c.bf16 %v1610, %v1609
  %v1621 = vpack.c.bf16 %v1612, %v1611
  %v1622 = vpack.c.bf16 %v1614, %v1613
  %s1623 = scalar_lea.vmem %s5, 256
  %v1624 = vld [vmem:[%s1623] sm:$0xff]
  %v1625 = vld [vmem:[%s1623 + $0x8] sm:$0xff]
  %v1626 = vld [vmem:[%s1623 + $0x10] sm:$0xff]
  %v1627 = vld [vmem:[%s1623 + $0x18] sm:$0xff]
  %v1628 = vld [vmem:[%s1623 + $0x20] sm:$0xff]
  %v1629 = vld [vmem:[%s1623 + $0x28] sm:$0xff]
  %v1630 = vld [vmem:[%s1623 + $0x30] sm:$0xff]
  %v1631 = vld [vmem:[%s1623 + $0x38] sm:$0xff]
  %v1632 = vld [vmem:[%s1623 + $0x40] sm:$0xff]
  %v1633 = vld [vmem:[%s1623 + $0x48] sm:$0xff]
  %v1634 = vld [vmem:[%s1623 + $0x50] sm:$0xff]
  %v1635 = vld [vmem:[%s1623 + $0x58] sm:$0xff]
  %v1636 = vld [vmem:[%s1623 + $0x60] sm:$0xff]
  %v1637 = vld [vmem:[%s1623 + $0x68] sm:$0xff]
  %v1638 = vld [vmem:[%s1623 + $0x70] sm:$0xff]
  %v1639 = vld [vmem:[%s1623 + $0x78] sm:$0xff]
  %v1656 = vunpack.c.l.b16 %v1624
  %v1657 = vunpack.c.h.b16 %v1624
  %v1658 = vunpack.c.l.b16 %v1625
  %v1659 = vunpack.c.h.b16 %v1625
  %v1660 = vunpack.c.l.b16 %v1626
  %v1661 = vunpack.c.h.b16 %v1626
  %v1662 = vunpack.c.l.b16 %v1627
  %v1663 = vunpack.c.h.b16 %v1627
  %v1664 = vunpack.c.l.b16 %v1628
  %v1665 = vunpack.c.h.b16 %v1628
  %v1666 = vunpack.c.l.b16 %v1629
  %v1667 = vunpack.c.h.b16 %v1629
  %v1668 = vunpack.c.l.b16 %v1630
  %v1669 = vunpack.c.h.b16 %v1630
  %v1670 = vunpack.c.l.b16 %v1631
  %v1671 = vunpack.c.h.b16 %v1631
  %v1672 = vunpack.c.l.b16 %v1632
  %v1673 = vunpack.c.h.b16 %v1632
  %v1674 = vunpack.c.l.b16 %v1633
  %v1675 = vunpack.c.h.b16 %v1633
  %v1676 = vunpack.c.l.b16 %v1634
  %v1677 = vunpack.c.h.b16 %v1634
  %v1678 = vunpack.c.l.b16 %v1635
  %v1679 = vunpack.c.h.b16 %v1635
  %v1680 = vunpack.c.l.b16 %v1636
  %v1681 = vunpack.c.h.b16 %v1636
  %v1682 = vunpack.c.l.b16 %v1637
  %v1683 = vunpack.c.h.b16 %v1637
  %v1684 = vunpack.c.l.b16 %v1638
  %v1685 = vunpack.c.h.b16 %v1638
  %v1686 = vunpack.c.l.b16 %v1639
  %v1687 = vunpack.c.h.b16 %v1639
  %v1688 = vpack.c.b16 %v1658, %v1656
  %v1689 = vpack.c.b16 %v1659, %v1657
  %v1690 = vpack.c.b16 %v1662, %v1660
  %v1691 = vpack.c.b16 %v1663, %v1661
  %v1692 = vpack.c.b16 %v1666, %v1664
  %v1693 = vpack.c.b16 %v1667, %v1665
  %v1694 = vpack.c.b16 %v1670, %v1668
  %v1695 = vpack.c.b16 %v1671, %v1669
  %v1696 = vpack.c.b16 %v1674, %v1672
  %v1697 = vpack.c.b16 %v1675, %v1673
  %v1698 = vpack.c.b16 %v1678, %v1676
  %v1699 = vpack.c.b16 %v1679, %v1677
  %v1700 = vpack.c.b16 %v1682, %v1680
  %v1701 = vpack.c.b16 %v1683, %v1681
  %v1702 = vpack.c.b16 %v1686, %v1684
  %v1703 = vpack.c.b16 %v1687, %v1685
  %1720 = vmatprep.subr.bf16.mxu0 %v1703
  %1721 = vmatpush1.bf16.msra.mxu0 %v1702
  %1722 = vmatprep.subr.bf16.mxu0 %v1701
  %1723 = vmatpush1.bf16.msra.mxu0 %v1700
  %1724 = vmatprep.subr.bf16.mxu0 %v1699
  %1725 = vmatpush1.bf16.msra.mxu0 %v1698
  %1726 = vmatprep.subr.bf16.mxu0 %v1697
  %1727 = vmatpush1.bf16.msra.mxu0 %v1696
  %1728 = vmatprep.subr.bf16.mxu0 %v1695
  %1729 = vmatpush1.bf16.msra.mxu0 %v1694
  %1730 = vmatprep.subr.bf16.mxu0 %v1693
  %1731 = vmatpush1.bf16.msra.mxu0 %v1692
  %1732 = vmatprep.subr.bf16.mxu0 %v1691
  %1733 = vmatpush1.bf16.msra.mxu0 %v1690
  %1734 = vmatprep.subr.bf16.mxu0 %v1689
  %1735 = vmatpush1.bf16.msra.mxu0 %v1688
  %1736 = vmatprep.subr.bf16.mxu0 0
  %1737 = vmatpush2.bf16.msra.mxu0 0
  %1738 = vmatprep.subr.bf16.mxu0 0
  %1739 = vmatpush2.bf16.msra.mxu0 0
  %1740 = vmatprep.subr.bf16.mxu0 0
  %1741 = vmatpush2.bf16.msra.mxu0 0
  %1742 = vmatprep.subr.bf16.mxu0 0
  %1743 = vmatpush2.bf16.msra.mxu0 0
  %1744 = vmatprep.subr.bf16.mxu0 0
  %1745 = vmatpush2.bf16.msra.mxu0 0
  %1746 = vmatprep.subr.bf16.mxu0 0
  %1747 = vmatpush2.bf16.msra.mxu0 0
  %1748 = vmatprep.subr.bf16.mxu0 0
  %1749 = vmatpush2.bf16.msra.mxu0 0
  %1750 = vmatprep.subr.bf16.mxu0 0
  %1751 = vmatpush2.bf16.msra.mxu0 0
  %1752 = vmatprep.mubr.bf16.mxu0 0
  %1753 = vmatmul.mubr.bf16.gmra.mxu0 %v1615
  %v1754 = vpop.f32.mrf.mxu0
  %v1755 = vadd.f32 0.0, %v1754
  %v1756 = vpop.f32.mrf.mxu0
  %v1757 = vadd.f32 0.0, %v1756
  %v1758 = vpop.f32.mrf.mxu0
  %v1759 = vadd.f32 0.0, %v1758
  %v1760 = vpop.f32.mrf.mxu0
  %v1761 = vadd.f32 0.0, %v1760
  %1762 = vmatprep.mubr.bf16.mxu0 0
  %1763 = vmatmul.mubr.bf16.gmra.mxu0 %v1616
  %v1764 = vpop.f32.mrf.mxu0
  %v1765 = vadd.f32 0.0, %v1764
  %v1766 = vpop.f32.mrf.mxu0
  %v1767 = vadd.f32 0.0, %v1766
  %v1768 = vpop.f32.mrf.mxu0
  %v1769 = vadd.f32 0.0, %v1768
  %v1770 = vpop.f32.mrf.mxu0
  %v1771 = vadd.f32 0.0, %v1770
  %1772 = vmatprep.mubr.bf16.mxu0 0
  %1773 = vmatmul.mubr.bf16.gmra.mxu0 %v1617
  %v1774 = vpop.f32.mrf.mxu0
  %v1775 = vadd.f32 0.0, %v1774
  %v1776 = vpop.f32.mrf.mxu0
  %v1777 = vadd.f32 0.0, %v1776
  %v1778 = vpop.f32.mrf.mxu0
  %v1779 = vadd.f32 0.0, %v1778
  %v1780 = vpop.f32.mrf.mxu0
  %v1781 = vadd.f32 0.0, %v1780
  %1782 = vmatprep.mubr.bf16.mxu0 0
  %1783 = vmatmul.mubr.bf16.gmra.mxu0 %v1618
  %v1784 = vpop.f32.mrf.mxu0
  %v1785 = vadd.f32 0.0, %v1784
  %v1786 = vpop.f32.mrf.mxu0
  %v1787 = vadd.f32 0.0, %v1786
  %v1788 = vpop.f32.mrf.mxu0
  %v1789 = vadd.f32 0.0, %v1788
  %v1790 = vpop.f32.mrf.mxu0
  %v1791 = vadd.f32 0.0, %v1790
  %1792 = vmatprep.mubr.bf16.mxu0 0
  %1793 = vmatmul.mubr.bf16.gmra.mxu0 %v1619
  %v1794 = vpop.f32.mrf.mxu0
  %v1795 = vadd.f32 0.0, %v1794
  %v1796 = vpop.f32.mrf.mxu0
  %v1797 = vadd.f32 0.0, %v1796
  %v1798 = vpop.f32.mrf.mxu0
  %v1799 = vadd.f32 0.0, %v1798
  %v1800 = vpop.f32.mrf.mxu0
  %v1801 = vadd.f32 0.0, %v1800
  %1802 = vmatprep.mubr.bf16.mxu0 0
  %1803 = vmatmul.mubr.bf16.gmra.mxu0 %v1620
  %v1804 = vpop.f32.mrf.mxu0
  %v1805 = vadd.f32 0.0, %v1804
  %v1806 = vpop.f32.mrf.mxu0
  %v1807 = vadd.f32 0.0, %v1806
  %v1808 = vpop.f32.mrf.mxu0
  %v1809 = vadd.f32 0.0, %v1808
  %v1810 = vpop.f32.mrf.mxu0
  %v1811 = vadd.f32 0.0, %v1810
  %1812 = vmatprep.mubr.bf16.mxu0 0
  %1813 = vmatmul.mubr.bf16.gmra.mxu0 %v1621
  %v1814 = vpop.f32.mrf.mxu0
  %v1815 = vadd.f32 0.0, %v1814
  %v1816 = vpop.f32.mrf.mxu0
  %v1817 = vadd.f32 0.0, %v1816
  %v1818 = vpop.f32.mrf.mxu0
  %v1819 = vadd.f32 0.0, %v1818
  %v1820 = vpop.f32.mrf.mxu0
  %v1821 = vadd.f32 0.0, %v1820
  %1822 = vmatprep.mubr.bf16.mxu0 0
  %1823 = vmatmul.mubr.bf16.gmra.mxu0 %v1622
  %v1824 = vpop.f32.mrf.mxu0
  %v1825 = vadd.f32 0.0, %v1824
  %v1826 = vpop.f32.mrf.mxu0
  %v1827 = vadd.f32 0.0, %v1826
  %v1828 = vpop.f32.mrf.mxu0
  %v1829 = vadd.f32 0.0, %v1828
  %v1830 = vpop.f32.mrf.mxu0
  %v1831 = vadd.f32 0.0, %v1830
  %1832 = vdwg.mxu0
  %v1833 = vadd.f32 %v1521, %v1755
  %v1834 = vadd.f32 %v1523, %v1757
  %v1835 = vadd.f32 %v1525, %v1759
  %v1836 = vadd.f32 %v1527, %v1761
  %v1837 = vadd.f32 %v1531, %v1765
  %v1838 = vadd.f32 %v1533, %v1767
  %v1839 = vadd.f32 %v1535, %v1769
  %v1840 = vadd.f32 %v1537, %v1771
  %v1841 = vadd.f32 %v1541, %v1775
  %v1842 = vadd.f32 %v1543, %v1777
  %v1843 = vadd.f32 %v1545, %v1779
  %v1844 = vadd.f32 %v1547, %v1781
  %v1845 = vadd.f32 %v1551, %v1785
  %v1846 = vadd.f32 %v1553, %v1787
  %v1847 = vadd.f32 %v1555, %v1789
  %v1848 = vadd.f32 %v1557, %v1791
  %v1849 = vadd.f32 %v1561, %v1795
  %v1850 = vadd.f32 %v1563, %v1797
  %v1851 = vadd.f32 %v1565, %v1799
  %v1852 = vadd.f32 %v1567, %v1801
  %v1853 = vadd.f32 %v1571, %v1805
  %v1854 = vadd.f32 %v1573, %v1807
  %v1855 = vadd.f32 %v1575, %v1809
  %v1856 = vadd.f32 %v1577, %v1811
  %v1857 = vadd.f32 %v1581, %v1815
  %v1858 = vadd.f32 %v1583, %v1817
  %v1859 = vadd.f32 %v1585, %v1819
  %v1860 = vadd.f32 %v1587, %v1821
  %v1861 = vadd.f32 %v1591, %v1825
  %v1862 = vadd.f32 %v1593, %v1827
  %v1863 = vadd.f32 %v1595, %v1829
  %v1864 = vadd.f32 %v1597, %v1831
  %v1865 = vld [vmem:[#allocation2 + $0x3] sm:$0xff]
  %v1866 = vld [vmem:[#allocation2 + $0xb] sm:$0xff]
  %v1867 = vld [vmem:[#allocation2 + $0x13] sm:$0xff]
  %v1868 = vld [vmem:[#allocation2 + $0x1b] sm:$0xff]
  %v1869 = vld [vmem:[#allocation2 + $0x23] sm:$0xff]
  %v1870 = vld [vmem:[#allocation2 + $0x2b] sm:$0xff]
  %v1871 = vld [vmem:[#allocation2 + $0x33] sm:$0xff]
  %v1872 = vld [vmem:[#allocation2 + $0x3b] sm:$0xff]
  %v1873 = vld [vmem:[#allocation2 + $0x43] sm:$0xff]
  %v1874 = vld [vmem:[#allocation2 + $0x4b] sm:$0xff]
  %v1875 = vld [vmem:[#allocation2 + $0x53] sm:$0xff]
  %v1876 = vld [vmem:[#allocation2 + $0x5b] sm:$0xff]
  %v1877 = vld [vmem:[#allocation2 + $0x63] sm:$0xff]
  %v1878 = vld [vmem:[#allocation2 + $0x6b] sm:$0xff]
  %v1879 = vld [vmem:[#allocation2 + $0x73] sm:$0xff]
  %v1880 = vld [vmem:[#allocation2 + $0x7b] sm:$0xff]
  %v1881 = vpack.c.bf16 %v1866, %v1865
  %v1882 = vpack.c.bf16 %v1868, %v1867
  %v1883 = vpack.c.bf16 %v1870, %v1869
  %v1884 = vpack.c.bf16 %v1872, %v1871
  %v1885 = vpack.c.bf16 %v1874, %v1873
  %v1886 = vpack.c.bf16 %v1876, %v1875
  %v1887 = vpack.c.bf16 %v1878, %v1877
  %v1888 = vpack.c.bf16 %v1880, %v1879
  %s1889 = scalar_lea.vmem %s5, 384
  %v1890 = vld [vmem:[%s1889] sm:$0xff]
  %v1891 = vld [vmem:[%s1889 + $0x8] sm:$0xff]
  %v1892 = vld [vmem:[%s1889 + $0x10] sm:$0xff]
  %v1893 = vld [vmem:[%s1889 + $0x18] sm:$0xff]
  %v1894 = vld [vmem:[%s1889 + $0x20] sm:$0xff]
  %v1895 = vld [vmem:[%s1889 + $0x28] sm:$0xff]
  %v1896 = vld [vmem:[%s1889 + $0x30] sm:$0xff]
  %v1897 = vld [vmem:[%s1889 + $0x38] sm:$0xff]
  %v1898 = vld [vmem:[%s1889 + $0x40] sm:$0xff]
  %v1899 = vld [vmem:[%s1889 + $0x48] sm:$0xff]
  %v1900 = vld [vmem:[%s1889 + $0x50] sm:$0xff]
  %v1901 = vld [vmem:[%s1889 + $0x58] sm:$0xff]
  %v1902 = vld [vmem:[%s1889 + $0x60] sm:$0xff]
  %v1903 = vld [vmem:[%s1889 + $0x68] sm:$0xff]
  %v1904 = vld [vmem:[%s1889 + $0x70] sm:$0xff]
  %v1905 = vld [vmem:[%s1889 + $0x78] sm:$0xff]
  %v1922 = vunpack.c.l.b16 %v1890
  %v1923 = vunpack.c.h.b16 %v1890
  %v1924 = vunpack.c.l.b16 %v1891
  %v1925 = vunpack.c.h.b16 %v1891
  %v1926 = vunpack.c.l.b16 %v1892
  %v1927 = vunpack.c.h.b16 %v1892
  %v1928 = vunpack.c.l.b16 %v1893
  %v1929 = vunpack.c.h.b16 %v1893
  %v1930 = vunpack.c.l.b16 %v1894
  %v1931 = vunpack.c.h.b16 %v1894
  %v1932 = vunpack.c.l.b16 %v1895
  %v1933 = vunpack.c.h.b16 %v1895
  %v1934 = vunpack.c.l.b16 %v1896
  %v1935 = vunpack.c.h.b16 %v1896
  %v1936 = vunpack.c.l.b16 %v1897
  %v1937 = vunpack.c.h.b16 %v1897
  %v1938 = vunpack.c.l.b16 %v1898
  %v1939 = vunpack.c.h.b16 %v1898
  %v1940 = vunpack.c.l.b16 %v1899
  %v1941 = vunpack.c.h.b16 %v1899
  %v1942 = vunpack.c.l.b16 %v1900
  %v1943 = vunpack.c.h.b16 %v1900
  %v1944 = vunpack.c.l.b16 %v1901
  %v1945 = vunpack.c.h.b16 %v1901
  %v1946 = vunpack.c.l.b16 %v1902
  %v1947 = vunpack.c.h.b16 %v1902
  %v1948 = vunpack.c.l.b16 %v1903
  %v1949 = vunpack.c.h.b16 %v1903
  %v1950 = vunpack.c.l.b16 %v1904
  %v1951 = vunpack.c.h.b16 %v1904
  %v1952 = vunpack.c.l.b16 %v1905
  %v1953 = vunpack.c.h.b16 %v1905
  %v1954 = vpack.c.b16 %v1924, %v1922
  %v1955 = vpack.c.b16 %v1925, %v1923
  %v1956 = vpack.c.b16 %v1928, %v1926
  %v1957 = vpack.c.b16 %v1929, %v1927
  %v1958 = vpack.c.b16 %v1932, %v1930
  %v1959 = vpack.c.b16 %v1933, %v1931
  %v1960 = vpack.c.b16 %v1936, %v1934
  %v1961 = vpack.c.b16 %v1937, %v1935
  %v1962 = vpack.c.b16 %v1940, %v1938
  %v1963 = vpack.c.b16 %v1941, %v1939
  %v1964 = vpack.c.b16 %v1944, %v1942
  %v1965 = vpack.c.b16 %v1945, %v1943
  %v1966 = vpack.c.b16 %v1948, %v1946
  %v1967 = vpack.c.b16 %v1949, %v1947
  %v1968 = vpack.c.b16 %v1952, %v1950
  %v1969 = vpack.c.b16 %v1953, %v1951
  %1986 = vmatprep.subr.bf16.mxu0 %v1969
  %1987 = vmatpush1.bf16.msra.mxu0 %v1968
  %1988 = vmatprep.subr.bf16.mxu0 %v1967
  %1989 = vmatpush1.bf16.msra.mxu0 %v1966
  %1990 = vmatprep.subr.bf16.mxu0 %v1965
  %1991 = vmatpush1.bf16.msra.mxu0 %v1964
  %1992 = vmatprep.subr.bf16.mxu0 %v1963
  %1993 = vmatpush1.bf16.msra.mxu0 %v1962
  %1994 = vmatprep.subr.bf16.mxu0 %v1961
  %1995 = vmatpush1.bf16.msra.mxu0 %v1960
  %1996 = vmatprep.subr.bf16.mxu0 %v1959
  %1997 = vmatpush1.bf16.msra.mxu0 %v1958
  %1998 = vmatprep.subr.bf16.mxu0 %v1957
  %1999 = vmatpush1.bf16.msra.mxu0 %v1956
  %2000 = vmatprep.subr.bf16.mxu0 %v1955
  %2001 = vmatpush1.bf16.msra.mxu0 %v1954
  %2002 = vmatprep.subr.bf16.mxu0 0
  %2003 = vmatpush2.bf16.msra.mxu0 0
  %2004 = vmatprep.subr.bf16.mxu0 0
  %2005 = vmatpush2.bf16.msra.mxu0 0
  %2006 = vmatprep.subr.bf16.mxu0 0
  %2007 = vmatpush2.bf16.msra.mxu0 0
  %2008 = vmatprep.subr.bf16.mxu0 0
  %2009 = vmatpush2.bf16.msra.mxu0 0
  %2010 = vmatprep.subr.bf16.mxu0 0
  %2011 = vmatpush2.bf16.msra.mxu0 0
  %2012 = vmatprep.subr.bf16.mxu0 0
  %2013 = vmatpush2.bf16.msra.mxu0 0
  %2014 = vmatprep.subr.bf16.mxu0 0
  %2015 = vmatpush2.bf16.msra.mxu0 0
  %2016 = vmatprep.subr.bf16.mxu0 0
  %2017 = vmatpush2.bf16.msra.mxu0 0
  %2018 = vmatprep.mubr.bf16.mxu0 0
  %2019 = vmatmul.mubr.bf16.gmra.mxu0 %v1881
  %v2020 = vpop.f32.mrf.mxu0
  %v2021 = vadd.f32 0.0, %v2020
  %v2022 = vpop.f32.mrf.mxu0
  %v2023 = vadd.f32 0.0, %v2022
  %v2024 = vpop.f32.mrf.mxu0
  %v2025 = vadd.f32 0.0, %v2024
  %v2026 = vpop.f32.mrf.mxu0
  %v2027 = vadd.f32 0.0, %v2026
  %2028 = vmatprep.mubr.bf16.mxu0 0
  %2029 = vmatmul.mubr.bf16.gmra.mxu0 %v1882
  %v2030 = vpop.f32.mrf.mxu0
  %v2031 = vadd.f32 0.0, %v2030
  %v2032 = vpop.f32.mrf.mxu0
  %v2033 = vadd.f32 0.0, %v2032
  %v2034 = vpop.f32.mrf.mxu0
  %v2035 = vadd.f32 0.0, %v2034
  %v2036 = vpop.f32.mrf.mxu0
  %v2037 = vadd.f32 0.0, %v2036
  %2038 = vmatprep.mubr.bf16.mxu0 0
  %2039 = vmatmul.mubr.bf16.gmra.mxu0 %v1883
  %v2040 = vpop.f32.mrf.mxu0
  %v2041 = vadd.f32 0.0, %v2040
  %v2042 = vpop.f32.mrf.mxu0
  %v2043 = vadd.f32 0.0, %v2042
  %v2044 = vpop.f32.mrf.mxu0
  %v2045 = vadd.f32 0.0, %v2044
  %v2046 = vpop.f32.mrf.mxu0
  %v2047 = vadd.f32 0.0, %v2046
  %2048 = vmatprep.mubr.bf16.mxu0 0
  %2049 = vmatmul.mubr.bf16.gmra.mxu0 %v1884
  %v2050 = vpop.f32.mrf.mxu0
  %v2051 = vadd.f32 0.0, %v2050
  %v2052 = vpop.f32.mrf.mxu0
  %v2053 = vadd.f32 0.0, %v2052
  %v2054 = vpop.f32.mrf.mxu0
  %v2055 = vadd.f32 0.0, %v2054
  %v2056 = vpop.f32.mrf.mxu0
  %v2057 = vadd.f32 0.0, %v2056
  %2058 = vmatprep.mubr.bf16.mxu0 0
  %2059 = vmatmul.mubr.bf16.gmra.mxu0 %v1885
  %v2060 = vpop.f32.mrf.mxu0
  %v2061 = vadd.f32 0.0, %v2060
  %v2062 = vpop.f32.mrf.mxu0
  %v2063 = vadd.f32 0.0, %v2062
  %v2064 = vpop.f32.mrf.mxu0
  %v2065 = vadd.f32 0.0, %v2064
  %v2066 = vpop.f32.mrf.mxu0
  %v2067 = vadd.f32 0.0, %v2066
  %2068 = vmatprep.mubr.bf16.mxu0 0
  %2069 = vmatmul.mubr.bf16.gmra.mxu0 %v1886
  %v2070 = vpop.f32.mrf.mxu0
  %v2071 = vadd.f32 0.0, %v2070
  %v2072 = vpop.f32.mrf.mxu0
  %v2073 = vadd.f32 0.0, %v2072
  %v2074 = vpop.f32.mrf.mxu0
  %v2075 = vadd.f32 0.0, %v2074
  %v2076 = vpop.f32.mrf.mxu0
  %v2077 = vadd.f32 0.0, %v2076
  %2078 = vmatprep.mubr.bf16.mxu0 0
  %2079 = vmatmul.mubr.bf16.gmra.mxu0 %v1887
  %v2080 = vpop.f32.mrf.mxu0
  %v2081 = vadd.f32 0.0, %v2080
  %v2082 = vpop.f32.mrf.mxu0
  %v2083 = vadd.f32 0.0, %v2082
  %v2084 = vpop.f32.mrf.mxu0
  %v2085 = vadd.f32 0.0, %v2084
  %v2086 = vpop.f32.mrf.mxu0
  %v2087 = vadd.f32 0.0, %v2086
  %2088 = vmatprep.mubr.bf16.mxu0 0
  %2089 = vmatmul.mubr.bf16.gmra.mxu0 %v1888
  %v2090 = vpop.f32.mrf.mxu0
  %v2091 = vadd.f32 0.0, %v2090
  %v2092 = vpop.f32.mrf.mxu0
  %v2093 = vadd.f32 0.0, %v2092
  %v2094 = vpop.f32.mrf.mxu0
  %v2095 = vadd.f32 0.0, %v2094
  %v2096 = vpop.f32.mrf.mxu0
  %v2097 = vadd.f32 0.0, %v2096
  %2098 = vdwg.mxu0
  %v2099 = vadd.f32 %v1833, %v2021
  %v2100 = vadd.f32 %v1834, %v2023
  %v2101 = vadd.f32 %v1835, %v2025
  %v2102 = vadd.f32 %v1836, %v2027
  %v2103 = vadd.f32 %v1837, %v2031
  %v2104 = vadd.f32 %v1838, %v2033
  %v2105 = vadd.f32 %v1839, %v2035
  %v2106 = vadd.f32 %v1840, %v2037
  %v2107 = vadd.f32 %v1841, %v2041
  %v2108 = vadd.f32 %v1842, %v2043
  %v2109 = vadd.f32 %v1843, %v2045
  %v2110 = vadd.f32 %v1844, %v2047
  %v2111 = vadd.f32 %v1845, %v2051
  %v2112 = vadd.f32 %v1846, %v2053
  %v2113 = vadd.f32 %v1847, %v2055
  %v2114 = vadd.f32 %v1848, %v2057
  %v2115 = vadd.f32 %v1849, %v2061
  %v2116 = vadd.f32 %v1850, %v2063
  %v2117 = vadd.f32 %v1851, %v2065
  %v2118 = vadd.f32 %v1852, %v2067
  %v2119 = vadd.f32 %v1853, %v2071
  %v2120 = vadd.f32 %v1854, %v2073
  %v2121 = vadd.f32 %v1855, %v2075
  %v2122 = vadd.f32 %v1856, %v2077
  %v2123 = vadd.f32 %v1857, %v2081
  %v2124 = vadd.f32 %v1858, %v2083
  %v2125 = vadd.f32 %v1859, %v2085
  %v2126 = vadd.f32 %v1860, %v2087
  %v2127 = vadd.f32 %v1861, %v2091
  %v2128 = vadd.f32 %v1862, %v2093
  %v2129 = vadd.f32 %v1863, %v2095
  %v2130 = vadd.f32 %v1864, %v2097
  %v2131 = vld [vmem:[#allocation2 + $0x4] sm:$0xff]
  %v2132 = vld [vmem:[#allocation2 + $0xc] sm:$0xff]
  %v2133 = vld [vmem:[#allocation2 + $0x14] sm:$0xff]
  %v2134 = vld [vmem:[#allocation2 + $0x1c] sm:$0xff]
  %v2135 = vld [vmem:[#allocation2 + $0x24] sm:$0xff]
  %v2136 = vld [vmem:[#allocation2 + $0x2c] sm:$0xff]
  %v2137 = vld [vmem:[#allocation2 + $0x34] sm:$0xff]
  %v2138 = vld [vmem:[#allocation2 + $0x3c] sm:$0xff]
  %v2139 = vld [vmem:[#allocation2 + $0x44] sm:$0xff]
  %v2140 = vld [vmem:[#allocation2 + $0x4c] sm:$0xff]
  %v2141 = vld [vmem:[#allocation2 + $0x54] sm:$0xff]
  %v2142 = vld [vmem:[#allocation2 + $0x5c] sm:$0xff]
  %v2143 = vld [vmem:[#allocation2 + $0x64] sm:$0xff]
  %v2144 = vld [vmem:[#allocation2 + $0x6c] sm:$0xff]
  %v2145 = vld [vmem:[#allocation2 + $0x74] sm:$0xff]
  %v2146 = vld [vmem:[#allocation2 + $0x7c] sm:$0xff]
  %v2147 = vpack.c.bf16 %v2132, %v2131
  %v2148 = vpack.c.bf16 %v2134, %v2133
  %v2149 = vpack.c.bf16 %v2136, %v2135
  %v2150 = vpack.c.bf16 %v2138, %v2137
  %v2151 = vpack.c.bf16 %v2140, %v2139
  %v2152 = vpack.c.bf16 %v2142, %v2141
  %v2153 = vpack.c.bf16 %v2144, %v2143
  %v2154 = vpack.c.bf16 %v2146, %v2145
  %s2155 = scalar_lea.vmem %s5, 512
  %v2156 = vld [vmem:[%s2155] sm:$0xff]
  %v2157 = vld [vmem:[%s2155 + $0x8] sm:$0xff]
  %v2158 = vld [vmem:[%s2155 + $0x10] sm:$0xff]
  %v2159 = vld [vmem:[%s2155 + $0x18] sm:$0xff]
  %v2160 = vld [vmem:[%s2155 + $0x20] sm:$0xff]
  %v2161 = vld [vmem:[%s2155 + $0x28] sm:$0xff]
  %v2162 = vld [vmem:[%s2155 + $0x30] sm:$0xff]
  %v2163 = vld [vmem:[%s2155 + $0x38] sm:$0xff]
  %v2164 = vld [vmem:[%s2155 + $0x40] sm:$0xff]
  %v2165 = vld [vmem:[%s2155 + $0x48] sm:$0xff]
  %v2166 = vld [vmem:[%s2155 + $0x50] sm:$0xff]
  %v2167 = vld [vmem:[%s2155 + $0x58] sm:$0xff]
  %v2168 = vld [vmem:[%s2155 + $0x60] sm:$0xff]
  %v2169 = vld [vmem:[%s2155 + $0x68] sm:$0xff]
  %v2170 = vld [vmem:[%s2155 + $0x70] sm:$0xff]
  %v2171 = vld [vmem:[%s2155 + $0x78] sm:$0xff]
  %v2188 = vunpack.c.l.b16 %v2156
  %v2189 = vunpack.c.h.b16 %v2156
  %v2190 = vunpack.c.l.b16 %v2157
  %v2191 = vunpack.c.h.b16 %v2157
  %v2192 = vunpack.c.l.b16 %v2158
  %v2193 = vunpack.c.h.b16 %v2158
  %v2194 = vunpack.c.l.b16 %v2159
  %v2195 = vunpack.c.h.b16 %v2159
  %v2196 = vunpack.c.l.b16 %v2160
  %v2197 = vunpack.c.h.b16 %v2160
  %v2198 = vunpack.c.l.b16 %v2161
  %v2199 = vunpack.c.h.b16 %v2161
  %v2200 = vunpack.c.l.b16 %v2162
  %v2201 = vunpack.c.h.b16 %v2162
  %v2202 = vunpack.c.l.b16 %v2163
  %v2203 = vunpack.c.h.b16 %v2163
  %v2204 = vunpack.c.l.b16 %v2164
  %v2205 = vunpack.c.h.b16 %v2164
  %v2206 = vunpack.c.l.b16 %v2165
  %v2207 = vunpack.c.h.b16 %v2165
  %v2208 = vunpack.c.l.b16 %v2166
  %v2209 = vunpack.c.h.b16 %v2166
  %v2210 = vunpack.c.l.b16 %v2167
  %v2211 = vunpack.c.h.b16 %v2167
  %v2212 = vunpack.c.l.b16 %v2168
  %v2213 = vunpack.c.h.b16 %v2168
  %v2214 = vunpack.c.l.b16 %v2169
  %v2215 = vunpack.c.h.b16 %v2169
  %v2216 = vunpack.c.l.b16 %v2170
  %v2217 = vunpack.c.h.b16 %v2170
  %v2218 = vunpack.c.l.b16 %v2171
  %v2219 = vunpack.c.h.b16 %v2171
  %v2220 = vpack.c.b16 %v2190, %v2188
  %v2221 = vpack.c.b16 %v2191, %v2189
  %v2222 = vpack.c.b16 %v2194, %v2192
  %v2223 = vpack.c.b16 %v2195, %v2193
  %v2224 = vpack.c.b16 %v2198, %v2196
  %v2225 = vpack.c.b16 %v2199, %v2197
  %v2226 = vpack.c.b16 %v2202, %v2200
  %v2227 = vpack.c.b16 %v2203, %v2201
  %v2228 = vpack.c.b16 %v2206, %v2204
  %v2229 = vpack.c.b16 %v2207, %v2205
  %v2230 = vpack.c.b16 %v2210, %v2208
  %v2231 = vpack.c.b16 %v2211, %v2209
  %v2232 = vpack.c.b16 %v2214, %v2212
  %v2233 = vpack.c.b16 %v2215, %v2213
  %v2234 = vpack.c.b16 %v2218, %v2216
  %v2235 = vpack.c.b16 %v2219, %v2217
  %2252 = vmatprep.subr.bf16.mxu0 %v2235
  %2253 = vmatpush1.bf16.msra.mxu0 %v2234
  %2254 = vmatprep.subr.bf16.mxu0 %v2233
  %2255 = vmatpush1.bf16.msra.mxu0 %v2232
  %2256 = vmatprep.subr.bf16.mxu0 %v2231
  %2257 = vmatpush1.bf16.msra.mxu0 %v2230
  %2258 = vmatprep.subr.bf16.mxu0 %v2229
  %2259 = vmatpush1.bf16.msra.mxu0 %v2228
  %2260 = vmatprep.subr.bf16.mxu0 %v2227
  %2261 = vmatpush1.bf16.msra.mxu0 %v2226
  %2262 = vmatprep.subr.bf16.mxu0 %v2225
  %2263 = vmatpush1.bf16.msra.mxu0 %v2224
  %2264 = vmatprep.subr.bf16.mxu0 %v2223
  %2265 = vmatpush1.bf16.msra.mxu0 %v2222
  %2266 = vmatprep.subr.bf16.mxu0 %v2221
  %2267 = vmatpush1.bf16.msra.mxu0 %v2220
  %2268 = vmatprep.subr.bf16.mxu0 0
  %2269 = vmatpush2.bf16.msra.mxu0 0
  %2270 = vmatprep.subr.bf16.mxu0 0
  %2271 = vmatpush2.bf16.msra.mxu0 0
  %2272 = vmatprep.subr.bf16.mxu0 0
  %2273 = vmatpush2.bf16.msra.mxu0 0
  %2274 = vmatprep.subr.bf16.mxu0 0
  %2275 = vmatpush2.bf16.msra.mxu0 0
  %2276 = vmatprep.subr.bf16.mxu0 0
  %2277 = vmatpush2.bf16.msra.mxu0 0
  %2278 = vmatprep.subr.bf16.mxu0 0
  %2279 = vmatpush2.bf16.msra.mxu0 0
  %2280 = vmatprep.subr.bf16.mxu0 0
  %2281 = vmatpush2.bf16.msra.mxu0 0
  %2282 = vmatprep.subr.bf16.mxu0 0
  %2283 = vmatpush2.bf16.msra.mxu0 0
  %2284 = vmatprep.mubr.bf16.mxu0 0
  %2285 = vmatmul.mubr.bf16.gmra.mxu0 %v2147
  %v2286 = vpop.f32.mrf.mxu0
  %v2287 = vadd.f32 0.0, %v2286
  %v2288 = vpop.f32.mrf.mxu0
  %v2289 = vadd.f32 0.0, %v2288
  %v2290 = vpop.f32.mrf.mxu0
  %v2291 = vadd.f32 0.0, %v2290
  %v2292 = vpop.f32.mrf.mxu0
  %v2293 = vadd.f32 0.0, %v2292
  %2294 = vmatprep.mubr.bf16.mxu0 0
  %2295 = vmatmul.mubr.bf16.gmra.mxu0 %v2148
  %v2296 = vpop.f32.mrf.mxu0
  %v2297 = vadd.f32 0.0, %v2296
  %v2298 = vpop.f32.mrf.mxu0
  %v2299 = vadd.f32 0.0, %v2298
  %v2300 = vpop.f32.mrf.mxu0
  %v2301 = vadd.f32 0.0, %v2300
  %v2302 = vpop.f32.mrf.mxu0
  %v2303 = vadd.f32 0.0, %v2302
  %2304 = vmatprep.mubr.bf16.mxu0 0
  %2305 = vmatmul.mubr.bf16.gmra.mxu0 %v2149
  %v2306 = vpop.f32.mrf.mxu0
  %v2307 = vadd.f32 0.0, %v2306
  %v2308 = vpop.f32.mrf.mxu0
  %v2309 = vadd.f32 0.0, %v2308
  %v2310 = vpop.f32.mrf.mxu0
  %v2311 = vadd.f32 0.0, %v2310
  %v2312 = vpop.f32.mrf.mxu0
  %v2313 = vadd.f32 0.0, %v2312
  %2314 = vmatprep.mubr.bf16.mxu0 0
  %2315 = vmatmul.mubr.bf16.gmra.mxu0 %v2150
  %v2316 = vpop.f32.mrf.mxu0
  %v2317 = vadd.f32 0.0, %v2316
  %v2318 = vpop.f32.mrf.mxu0
  %v2319 = vadd.f32 0.0, %v2318
  %v2320 = vpop.f32.mrf.mxu0
  %v2321 = vadd.f32 0.0, %v2320
  %v2322 = vpop.f32.mrf.mxu0
  %v2323 = vadd.f32 0.0, %v2322
  %2324 = vmatprep.mubr.bf16.mxu0 0
  %2325 = vmatmul.mubr.bf16.gmra.mxu0 %v2151
  %v2326 = vpop.f32.mrf.mxu0
  %v2327 = vadd.f32 0.0, %v2326
  %v2328 = vpop.f32.mrf.mxu0
  %v2329 = vadd.f32 0.0, %v2328
  %v2330 = vpop.f32.mrf.mxu0
  %v2331 = vadd.f32 0.0, %v2330
  %v2332 = vpop.f32.mrf.mxu0
  %v2333 = vadd.f32 0.0, %v2332
  %2334 = vmatprep.mubr.bf16.mxu0 0
  %2335 = vmatmul.mubr.bf16.gmra.mxu0 %v2152
  %v2336 = vpop.f32.mrf.mxu0
  %v2337 = vadd.f32 0.0, %v2336
  %v2338 = vpop.f32.mrf.mxu0
  %v2339 = vadd.f32 0.0, %v2338
  %v2340 = vpop.f32.mrf.mxu0
  %v2341 = vadd.f32 0.0, %v2340
  %v2342 = vpop.f32.mrf.mxu0
  %v2343 = vadd.f32 0.0, %v2342
  %2344 = vmatprep.mubr.bf16.mxu0 0
  %2345 = vmatmul.mubr.bf16.gmra.mxu0 %v2153
  %v2346 = vpop.f32.mrf.mxu0
  %v2347 = vadd.f32 0.0, %v2346
  %v2348 = vpop.f32.mrf.mxu0
  %v2349 = vadd.f32 0.0, %v2348
  %v2350 = vpop.f32.mrf.mxu0
  %v2351 = vadd.f32 0.0, %v2350
  %v2352 = vpop.f32.mrf.mxu0
  %v2353 = vadd.f32 0.0, %v2352
  %2354 = vmatprep.mubr.bf16.mxu0 0
  %2355 = vmatmul.mubr.bf16.gmra.mxu0 %v2154
  %v2356 = vpop.f32.mrf.mxu0
  %v2357 = vadd.f32 0.0, %v2356
  %v2358 = vpop.f32.mrf.mxu0
  %v2359 = vadd.f32 0.0, %v2358
  %v2360 = vpop.f32.mrf.mxu0
  %v2361 = vadd.f32 0.0, %v2360
  %v2362 = vpop.f32.mrf.mxu0
  %v2363 = vadd.f32 0.0, %v2362
  %2364 = vdwg.mxu0
  %v2365 = vadd.f32 %v2099, %v2287
  %v2366 = vadd.f32 %v2100, %v2289
  %v2367 = vadd.f32 %v2101, %v2291
  %v2368 = vadd.f32 %v2102, %v2293
  %v2369 = vadd.f32 %v2103, %v2297
  %v2370 = vadd.f32 %v2104, %v2299
  %v2371 = vadd.f32 %v2105, %v2301
  %v2372 = vadd.f32 %v2106, %v2303
  %v2373 = vadd.f32 %v2107, %v2307
  %v2374 = vadd.f32 %v2108, %v2309
  %v2375 = vadd.f32 %v2109, %v2311
  %v2376 = vadd.f32 %v2110, %v2313
  %v2377 = vadd.f32 %v2111, %v2317
  %v2378 = vadd.f32 %v2112, %v2319
  %v2379 = vadd.f32 %v2113, %v2321
  %v2380 = vadd.f32 %v2114, %v2323
  %v2381 = vadd.f32 %v2115, %v2327
  %v2382 = vadd.f32 %v2116, %v2329
  %v2383 = vadd.f32 %v2117, %v2331
  %v2384 = vadd.f32 %v2118, %v2333
  %v2385 = vadd.f32 %v2119, %v2337
  %v2386 = vadd.f32 %v2120, %v2339
  %v2387 = vadd.f32 %v2121, %v2341
  %v2388 = vadd.f32 %v2122, %v2343
  %v2389 = vadd.f32 %v2123, %v2347
  %v2390 = vadd.f32 %v2124, %v2349
  %v2391 = vadd.f32 %v2125, %v2351
  %v2392 = vadd.f32 %v2126, %v2353
  %v2393 = vadd.f32 %v2127, %v2357
  %v2394 = vadd.f32 %v2128, %v2359
  %v2395 = vadd.f32 %v2129, %v2361
  %v2396 = vadd.f32 %v2130, %v2363
  %v2397 = vld [vmem:[%s6] sm:$0x3]
  %v2399 = vlaneseq
  %v2400 = vshrl.u32 %v2399, 7
  %v2401 = vsub.s32 0, %v2400
  %v2402 = vrot.slane %v2397, %v2401
  %v2403 = vlaneseq
  %v2404 = vshrl.u32 %v2403, 7
  %v2405 = vsub.s32 1, %v2404
  %v2406 = vrot.slane %v2397, %v2405
  %v2409 = vadd.f32 %v2365, %v2402
  %v2410 = vadd.f32 %v2366, %v2406
  %v2411 = vadd.f32 %v2367, %v2402
  %v2412 = vadd.f32 %v2368, %v2406
  %v2413 = vadd.f32 %v2369, %v2402
  %v2414 = vadd.f32 %v2370, %v2406
  %v2415 = vadd.f32 %v2371, %v2402
  %v2416 = vadd.f32 %v2372, %v2406
  %v2417 = vadd.f32 %v2373, %v2402
  %v2418 = vadd.f32 %v2374, %v2406
  %v2419 = vadd.f32 %v2375, %v2402
  %v2420 = vadd.f32 %v2376, %v2406
  %v2421 = vadd.f32 %v2377, %v2402
  %v2422 = vadd.f32 %v2378, %v2406
  %v2423 = vadd.f32 %v2379, %v2402
  %v2424 = vadd.f32 %v2380, %v2406
  %v2425 = vadd.f32 %v2381, %v2402
  %v2426 = vadd.f32 %v2382, %v2406
  %v2427 = vadd.f32 %v2383, %v2402
  %v2428 = vadd.f32 %v2384, %v2406
  %v2429 = vadd.f32 %v2385, %v2402
  %v2430 = vadd.f32 %v2386, %v2406
  %v2431 = vadd.f32 %v2387, %v2402
  %v2432 = vadd.f32 %v2388, %v2406
  %v2433 = vadd.f32 %v2389, %v2402
  %v2434 = vadd.f32 %v2390, %v2406
  %v2435 = vadd.f32 %v2391, %v2402
  %v2436 = vadd.f32 %v2392, %v2406
  %v2437 = vadd.f32 %v2393, %v2402
  %v2438 = vadd.f32 %v2394, %v2406
  %v2439 = vadd.f32 %v2395, %v2402
  %v2440 = vadd.f32 %v2396, %v2406
  %v2441 = vmax.f32 %v2409, 0.0
  %v2442 = vmax.f32 %v2410, 0.0
  %v2443 = vmax.f32 %v2411, 0.0
  %v2444 = vmax.f32 %v2412, 0.0
  %v2445 = vmax.f32 %v2413, 0.0
  %v2446 = vmax.f32 %v2414, 0.0
  %v2447 = vmax.f32 %v2415, 0.0
  %v2448 = vmax.f32 %v2416, 0.0
  %v2449 = vmax.f32 %v2417, 0.0
  %v2450 = vmax.f32 %v2418, 0.0
  %v2451 = vmax.f32 %v2419, 0.0
  %v2452 = vmax.f32 %v2420, 0.0
  %v2453 = vmax.f32 %v2421, 0.0
  %v2454 = vmax.f32 %v2422, 0.0
  %v2455 = vmax.f32 %v2423, 0.0
  %v2456 = vmax.f32 %v2424, 0.0
  %v2457 = vmax.f32 %v2425, 0.0
  %v2458 = vmax.f32 %v2426, 0.0
  %v2459 = vmax.f32 %v2427, 0.0
  %v2460 = vmax.f32 %v2428, 0.0
  %v2461 = vmax.f32 %v2429, 0.0
  %v2462 = vmax.f32 %v2430, 0.0
  %v2463 = vmax.f32 %v2431, 0.0
  %v2464 = vmax.f32 %v2432, 0.0
  %v2465 = vmax.f32 %v2433, 0.0
  %v2466 = vmax.f32 %v2434, 0.0
  %v2467 = vmax.f32 %v2435, 0.0
  %v2468 = vmax.f32 %v2436, 0.0
  %v2469 = vmax.f32 %v2437, 0.0
  %v2470 = vmax.f32 %v2438, 0.0
  %v2471 = vmax.f32 %v2439, 0.0
  %v2472 = vmax.f32 %v2440, 0.0
  %v2473 = vmax.f32 %v2441, %v2442
  %v2474 = vmax.f32 %v2443, %v2444
  %v2475 = vmax.f32 %v2445, %v2446
  %v2476 = vmax.f32 %v2447, %v2448
  %v2477 = vmax.f32 %v2449, %v2450
  %v2478 = vmax.f32 %v2451, %v2452
  %v2479 = vmax.f32 %v2453, %v2454
  %v2480 = vmax.f32 %v2455, %v2456
  %v2481 = vmax.f32 %v2457, %v2458
  %v2482 = vmax.f32 %v2459, %v2460
  %v2483 = vmax.f32 %v2461, %v2462
  %v2484 = vmax.f32 %v2463, %v2464
  %v2485 = vmax.f32 %v2465, %v2466
  %v2486 = vmax.f32 %v2467, %v2468
  %v2487 = vmax.f32 %v2469, %v2470
  %v2488 = vmax.f32 %v2471, %v2472
  %v2489 = vpack.c.bf16 %v2474, %v2473
  %v2490 = vpack.c.bf16 %v2476, %v2475
  %v2491 = vpack.c.bf16 %v2478, %v2477
  %v2492 = vpack.c.bf16 %v2480, %v2479
  %v2493 = vpack.c.bf16 %v2482, %v2481
  %v2494 = vpack.c.bf16 %v2484, %v2483
  %v2495 = vpack.c.bf16 %v2486, %v2485
  %v2496 = vpack.c.bf16 %v2488, %v2487
  %v2497 = vld [vmem:[%s7] sm:$0xf]
  %v2498 = vld [vmem:[%s7 + $0x4] sm:$0xf]
  %v2499 = vld [vmem:[%s7 + $0x8] sm:$0xf]
  %v2500 = vld [vmem:[%s7 + $0xc] sm:$0xf]
  %v2501 = vld [vmem:[%s7 + $0x10] sm:$0xf]
  %v2507 = vunpack.c.l.b16 %v2497
  %v2508 = vunpack.c.l.b16 %v2498
  %v2509 = vunpack.c.l.b16 %v2499
  %v2510 = vunpack.c.l.b16 %v2500
  %v2511 = vunpack.c.l.b16 %v2501
  %v2512 = vpack.c.b16 %v2508, %v2507
  %v2513 = vpack.c.b16 %v2510, %v2509
  %v2514 = vpack.c.b16 %v2511, %v2511
  %2518 = vmatprep.subr.bf16.mxu0 0
  %2519 = vmatpush1.bf16.msra.mxu0 %v2496
  %2520 = vmatprep.subr.bf16.mxu0 0
  %2521 = vmatpush1.bf16.msra.mxu0 %v2495
  %2522 = vmatprep.subr.bf16.mxu0 0
  %2523 = vmatpush1.bf16.msra.mxu0 %v2494
  %2524 = vmatprep.subr.bf16.mxu0 0
  %2525 = vmatpush1.bf16.msra.mxu0 %v2493
  %2526 = vmatprep.subr.bf16.mxu0 0
  %2527 = vmatpush1.bf16.msra.mxu0 %v2492
  %2528 = vmatprep.subr.bf16.mxu0 0
  %2529 = vmatpush1.bf16.msra.mxu0 %v2491
  %2530 = vmatprep.subr.bf16.mxu0 0
  %2531 = vmatpush1.bf16.msra.mxu0 %v2490
  %2532 = vmatprep.subr.bf16.mxu0 0
  %2533 = vmatpush1.bf16.msra.mxu0 %v2489
  %2534 = vmatprep.subr.bf16.mxu0 0
  %2535 = vmatpush2.bf16.msra.mxu0 0
  %2536 = vmatprep.subr.bf16.mxu0 0
  %2537 = vmatpush2.bf16.msra.mxu0 0
  %2538 = vmatprep.subr.bf16.mxu0 0
  %2539 = vmatpush2.bf16.msra.mxu0 0
  %2540 = vmatprep.subr.bf16.mxu0 0
  %2541 = vmatpush2.bf16.msra.mxu0 0
  %2542 = vmatprep.subr.bf16.mxu0 0
  %2543 = vmatpush2.bf16.msra.mxu0 0
  %2544 = vmatprep.subr.bf16.mxu0 0
  %2545 = vmatpush2.bf16.msra.mxu0 0
  %2546 = vmatprep.subr.bf16.mxu0 0
  %2547 = vmatpush2.bf16.msra.mxu0 0
  %2548 = vmatprep.subr.bf16.mxu0 0
  %2549 = vmatpush2.bf16.msra.mxu0 0
  %2550 = vmatprep.mubr.bf16.mxu0 0
  %2551 = vmatmul.mubr.bf16.gmra.mxu0 %v2512
  %v2552 = vpop.f32.mrf.mxu0
  %v2553 = vadd.f32 0.0, %v2552
  %v2554 = vpop.f32.mrf.mxu0
  %v2555 = vpop.f32.mrf.mxu0
  %v2556 = vadd.f32 0.0, %v2555
  %v2557 = vpop.f32.mrf.mxu0
  %2558 = vmatprep.mubr.bf16.mxu0 0
  %2559 = vmatmul.mubr.bf16.gmra.mxu0 %v2513
  %v2560 = vpop.f32.mrf.mxu0
  %v2561 = vadd.f32 0.0, %v2560
  %v2562 = vpop.f32.mrf.mxu0
  %v2563 = vpop.f32.mrf.mxu0
  %v2564 = vadd.f32 0.0, %v2563
  %v2565 = vpop.f32.mrf.mxu0
  %2566 = vmatprep.mubr.bf16.mxu0 0
  %2567 = vmatmul.mubr.bf16.gmra.mxu0 %v2514
  %v2568 = vpop.f32.mrf.mxu0
  %v2569 = vadd.f32 0.0, %v2568
  %v2570 = vpop.f32.mrf.mxu0
  %v2571 = vpop.f32.mrf.mxu0
  %v2572 = vpop.f32.mrf.mxu0
  %2573 = vdwg.mxu0
  %v2574 = vld [vmem:[%s8] sm:$0xf]
  %v2575 = vld [vmem:[%s8 + $0x4] sm:$0xf]
  %v2576 = vld [vmem:[%s8 + $0x8] sm:$0xf]
  %v2577 = vld [vmem:[%s8 + $0xc] sm:$0xf]
  %v2578 = vld [vmem:[%s8 + $0x10] sm:$0xf]
  %v2584 = vunpack.c.l.b16 %v2574
  %v2585 = vunpack.c.l.b16 %v2575
  %v2586 = vunpack.c.l.b16 %v2576
  %v2587 = vunpack.c.l.b16 %v2577
  %v2588 = vunpack.c.l.b16 %v2578
  %v2589 = vpack.c.b16 %v2585, %v2584
  %v2590 = vpack.c.b16 %v2587, %v2586
  %v2591 = vpack.c.b16 %v2588, %v2588
  %2595 = vmatprep.subr.bf16.mxu0 0
  %2596 = vmatpush1.bf16.msra.mxu0 %v2496
  %2597 = vmatprep.subr.bf16.mxu0 0
  %2598 = vmatpush1.bf16.msra.mxu0 %v2495
  %2599 = vmatprep.subr.bf16.mxu0 0
  %2600 = vmatpush1.bf16.msra.mxu0 %v2494
  %2601 = vmatprep.subr.bf16.mxu0 0
  %2602 = vmatpush1.bf16.msra.mxu0 %v2493
  %2603 = vmatprep.subr.bf16.mxu0 0
  %2604 = vmatpush1.bf16.msra.mxu0 %v2492
  %2605 = vmatprep.subr.bf16.mxu0 0
  %2606 = vmatpush1.bf16.msra.mxu0 %v2491
  %2607 = vmatprep.subr.bf16.mxu0 0
  %2608 = vmatpush1.bf16.msra.mxu0 %v2490
  %2609 = vmatprep.subr.bf16.mxu0 0
  %2610 = vmatpush1.bf16.msra.mxu0 %v2489
  %2611 = vmatprep.subr.bf16.mxu0 0
  %2612 = vmatpush2.bf16.msra.mxu0 0
  %2613 = vmatprep.subr.bf16.mxu0 0
  %2614 = vmatpush2.bf16.msra.mxu0 0
  %2615 = vmatprep.subr.bf16.mxu0 0
  %2616 = vmatpush2.bf16.msra.mxu0 0
  %2617 = vmatprep.subr.bf16.mxu0 0
  %2618 = vmatpush2.bf16.msra.mxu0 0
  %2619 = vmatprep.subr.bf16.mxu0 0
  %2620 = vmatpush2.bf16.msra.mxu0 0
  %2621 = vmatprep.subr.bf16.mxu0 0
  %2622 = vmatpush2.bf16.msra.mxu0 0
  %2623 = vmatprep.subr.bf16.mxu0 0
  %2624 = vmatpush2.bf16.msra.mxu0 0
  %2625 = vmatprep.subr.bf16.mxu0 0
  %2626 = vmatpush2.bf16.msra.mxu0 0
  %2627 = vmatprep.mubr.bf16.mxu0 0
  %2628 = vmatmul.mubr.bf16.gmra.mxu0 %v2589
  %v2629 = vpop.f32.mrf.mxu0
  %v2630 = vadd.f32 0.0, %v2629
  %v2631 = vpop.f32.mrf.mxu0
  %v2632 = vpop.f32.mrf.mxu0
  %v2633 = vadd.f32 0.0, %v2632
  %v2634 = vpop.f32.mrf.mxu0
  %2635 = vmatprep.mubr.bf16.mxu0 0
  %2636 = vmatmul.mubr.bf16.gmra.mxu0 %v2590
  %v2637 = vpop.f32.mrf.mxu0
  %v2638 = vadd.f32 0.0, %v2637
  %v2639 = vpop.f32.mrf.mxu0
  %v2640 = vpop.f32.mrf.mxu0
  %v2641 = vadd.f32 0.0, %v2640
  %v2642 = vpop.f32.mrf.mxu0
  %2643 = vmatprep.mubr.bf16.mxu0 0
  %2644 = vmatmul.mubr.bf16.gmra.mxu0 %v2591
  %v2645 = vpop.f32.mrf.mxu0
  %v2646 = vadd.f32 0.0, %v2645
  %v2647 = vpop.f32.mrf.mxu0
  %v2648 = vpop.f32.mrf.mxu0
  %v2649 = vpop.f32.mrf.mxu0
  %2650 = vdwg.mxu0
  %v2651 = vmax.f32 %v2553, %v2630
  %v2652 = vmax.f32 %v2556, %v2633
  %v2653 = vmax.f32 %v2561, %v2638
  %v2654 = vmax.f32 %v2564, %v2641
  %v2655 = vmax.f32 %v2569, %v2646
  %v2656 = vpack.c.bf16 %v2652, %v2651
  %v2657 = vpack.c.bf16 %v2654, %v2653
  %v2658 = vpack.c.bf16 %v2655, %v2655
  %v2659 = vld [vmem:[%s9] sm:$0xf]
  %v2660 = vld [vmem:[%s9 + $0x4] sm:$0xf]
  %v2661 = vld [vmem:[%s9 + $0x8] sm:$0xf]
  %v2662 = vld [vmem:[%s9 + $0xc] sm:$0xf]
  %v2663 = vld [vmem:[%s9 + $0x10] sm:$0xf]
  %v2664 = vld [vmem:[%s9 + $0x14] sm:$0xf]
  %v2665 = vld [vmem:[%s9 + $0x18] sm:$0xf]
  %v2666 = vld [vmem:[%s9 + $0x1c] sm:$0xf]
  %v2667 = vld [vmem:[%s9 + $0x20] sm:$0xf]
  %v2668 = vld [vmem:[%s9 + $0x24] sm:$0xf]
  %v2669 = vld [vmem:[%s9 + $0x28] sm:$0xf]
  %v2670 = vld [vmem:[%s9 + $0x2c] sm:$0xf]
  %v2671 = vld [vmem:[%s9 + $0x30] sm:$0xf]
  %v2672 = vld [vmem:[%s9 + $0x34] sm:$0xf]
  %v2673 = vld [vmem:[%s9 + $0x38] sm:$0xf]
  %v2674 = vld [vmem:[%s9 + $0x3c] sm:$0xf]
  %s2675 = scalar_lea.vmem %s9, 64
  %v2676 = vld [vmem:[%s2675] sm:$0xf]
  %v2677 = vld [vmem:[%s2675 + $0x4] sm:$0xf]
  %v2678 = vld [vmem:[%s2675 + $0x8] sm:$0xf]
  %v2679 = vld [vmem:[%s2675 + $0xc] sm:$0xf]
  %v2680 = vld [vmem:[%s2675 + $0x10] sm:$0xf]
  %v2681 = vld [vmem:[%s2675 + $0x14] sm:$0xf]
  %v2682 = vld [vmem:[%s2675 + $0x18] sm:$0xf]
  %v2683 = vld [vmem:[%s2675 + $0x1c] sm:$0xf]
  %v2684 = vld [vmem:[%s2675 + $0x20] sm:$0xf]
  %v2685 = vld [vmem:[%s2675 + $0x24] sm:$0xf]
  %v2686 = vld [vmem:[%s2675 + $0x28] sm:$0xf]
  %v2687 = vld [vmem:[%s2675 + $0x2c] sm:$0xf]
  %v2688 = vld [vmem:[%s2675 + $0x30] sm:$0xf]
  %v2689 = vld [vmem:[%s2675 + $0x34] sm:$0xf]
  %v2690 = vld [vmem:[%s2675 + $0x38] sm:$0xf]
  %v2691 = vld [vmem:[%s2675 + $0x3c] sm:$0xf]
  %v2693 = vrot.slane %v2656, 4
  %v2711 = vunpack.c.l.b16 %v2676
  %v2712 = vunpack.c.l.b16 %v2677
  %v2713 = vunpack.c.l.b16 %v2678
  %v2714 = vunpack.c.l.b16 %v2679
  %v2715 = vunpack.c.l.b16 %v2680
  %v2716 = vunpack.c.l.b16 %v2681
  %v2717 = vunpack.c.l.b16 %v2682
  %v2718 = vunpack.c.l.b16 %v2683
  %v2719 = vunpack.c.l.b16 %v2684
  %v2720 = vunpack.c.l.b16 %v2685
  %v2721 = vunpack.c.l.b16 %v2686
  %v2722 = vunpack.c.l.b16 %v2687
  %v2723 = vunpack.c.l.b16 %v2688
  %v2724 = vunpack.c.l.b16 %v2689
  %v2725 = vunpack.c.l.b16 %v2690
  %v2726 = vunpack.c.l.b16 %v2691
  %v2727 = vpack.c.b16 %v2712, %v2711
  %v2728 = vpack.c.b16 %v2714, %v2713
  %v2729 = vpack.c.b16 %v2716, %v2715
  %v2730 = vpack.c.b16 %v2718, %v2717
  %v2731 = vpack.c.b16 %v2720, %v2719
  %v2732 = vpack.c.b16 %v2722, %v2721
  %v2733 = vpack.c.b16 %v2724, %v2723
  %v2734 = vpack.c.b16 %v2726, %v2725
  %2743 = vmatprep.subr.bf16.mxu0 0
  %2744 = vmatpush1.bf16.msra.mxu0 %v2734
  %2745 = vmatprep.subr.bf16.mxu0 0
  %2746 = vmatpush1.bf16.msra.mxu0 %v2733
  %2747 = vmatprep.subr.bf16.mxu0 0
  %2748 = vmatpush1.bf16.msra.mxu0 %v2732
  %2749 = vmatprep.subr.bf16.mxu0 0
  %2750 = vmatpush1.bf16.msra.mxu0 %v2731
  %2751 = vmatprep.subr.bf16.mxu0 0
  %2752 = vmatpush1.bf16.msra.mxu0 %v2730
  %2753 = vmatprep.subr.bf16.mxu0 0
  %2754 = vmatpush1.bf16.msra.mxu0 %v2729
  %2755 = vmatprep.subr.bf16.mxu0 0
  %2756 = vmatpush1.bf16.msra.mxu0 %v2728
  %2757 = vmatprep.subr.bf16.mxu0 0
  %2758 = vmatpush1.bf16.msra.mxu0 %v2727
  %2759 = vmatprep.subr.bf16.mxu0 0
  %2760 = vmatpush2.bf16.msra.mxu0 0
  %2761 = vmatprep.subr.bf16.mxu0 0
  %2762 = vmatpush2.bf16.msra.mxu0 0
  %2763 = vmatprep.subr.bf16.mxu0 0
  %2764 = vmatpush2.bf16.msra.mxu0 0
  %2765 = vmatprep.subr.bf16.mxu0 0
  %2766 = vmatpush2.bf16.msra.mxu0 0
  %2767 = vmatprep.subr.bf16.mxu0 0
  %2768 = vmatpush2.bf16.msra.mxu0 0
  %2769 = vmatprep.subr.bf16.mxu0 0
  %2770 = vmatpush2.bf16.msra.mxu0 0
  %2771 = vmatprep.subr.bf16.mxu0 0
  %2772 = vmatpush2.bf16.msra.mxu0 0
  %2773 = vmatprep.subr.bf16.mxu0 0
  %2774 = vmatpush2.bf16.msra.mxu0 0
  %2775 = vmatprep.mubr.bf16.mxu0 0
  %2776 = vmatmul.mubr.bf16.gmra.mxu0 %v2693
  %v2777 = vpop.f32.mrf.mxu0
  %v2778 = vadd.f32 0.0, %v2777
  %v2779 = vpop.f32.mrf.mxu0
  %v2780 = vpop.f32.mrf.mxu0
  %v2781 = vpop.f32.mrf.mxu0
  %2782 = vdwg.mxu0
  %v2799 = vunpack.c.l.b16 %v2659
  %v2800 = vunpack.c.l.b16 %v2660
  %v2801 = vunpack.c.l.b16 %v2661
  %v2802 = vunpack.c.l.b16 %v2662
  %v2803 = vunpack.c.l.b16 %v2663
  %v2804 = vunpack.c.l.b16 %v2664
  %v2805 = vunpack.c.l.b16 %v2665
  %v2806 = vunpack.c.l.b16 %v2666
  %v2807 = vunpack.c.l.b16 %v2667
  %v2808 = vunpack.c.l.b16 %v2668
  %v2809 = vunpack.c.l.b16 %v2669
  %v2810 = vunpack.c.l.b16 %v2670
  %v2811 = vunpack.c.l.b16 %v2671
  %v2812 = vunpack.c.l.b16 %v2672
  %v2813 = vunpack.c.l.b16 %v2673
  %v2814 = vunpack.c.l.b16 %v2674
  %v2815 = vpack.c.b16 %v2800, %v2799
  %v2816 = vpack.c.b16 %v2802, %v2801
  %v2817 = vpack.c.b16 %v2804, %v2803
  %v2818 = vpack.c.b16 %v2806, %v2805
  %v2819 = vpack.c.b16 %v2808, %v2807
  %v2820 = vpack.c.b16 %v2810, %v2809
  %v2821 = vpack.c.b16 %v2812, %v2811
  %v2822 = vpack.c.b16 %v2814, %v2813
  %2831 = vmatprep.subr.bf16.mxu0 0
  %2832 = vmatpush1.bf16.msra.mxu0 %v2822
  %2833 = vmatprep.subr.bf16.mxu0 0
  %2834 = vmatpush1.bf16.msra.mxu0 %v2821
  %2835 = vmatprep.subr.bf16.mxu0 0
  %2836 = vmatpush1.bf16.msra.mxu0 %v2820
  %2837 = vmatprep.subr.bf16.mxu0 0
  %2838 = vmatpush1.bf16.msra.mxu0 %v2819
  %2839 = vmatprep.subr.bf16.mxu0 0
  %2840 = vmatpush1.bf16.msra.mxu0 %v2818
  %2841 = vmatprep.subr.bf16.mxu0 0
  %2842 = vmatpush1.bf16.msra.mxu0 %v2817
  %2843 = vmatprep.subr.bf16.mxu0 0
  %2844 = vmatpush1.bf16.msra.mxu0 %v2816
  %2845 = vmatprep.subr.bf16.mxu0 0
  %2846 = vmatpush1.bf16.msra.mxu0 %v2815
  %2847 = vmatprep.subr.bf16.mxu0 0
  %2848 = vmatpush2.bf16.msra.mxu0 0
  %2849 = vmatprep.subr.bf16.mxu0 0
  %2850 = vmatpush2.bf16.msra.mxu0 0
  %2851 = vmatprep.subr.bf16.mxu0 0
  %2852 = vmatpush2.bf16.msra.mxu0 0
  %2853 = vmatprep.subr.bf16.mxu0 0
  %2854 = vmatpush2.bf16.msra.mxu0 0
  %2855 = vmatprep.subr.bf16.mxu0 0
  %2856 = vmatpush2.bf16.msra.mxu0 0
  %2857 = vmatprep.subr.bf16.mxu0 0
  %2858 = vmatpush2.bf16.msra.mxu0 0
  %2859 = vmatprep.subr.bf16.mxu0 0
  %2860 = vmatpush2.bf16.msra.mxu0 0
  %2861 = vmatprep.subr.bf16.mxu0 0
  %2862 = vmatpush2.bf16.msra.mxu0 0
  %2863 = vmatprep.mubr.bf16.mxu0 0
  %2864 = vmatmul.mubr.bf16.gmra.mxu0 %v2656
  %v2865 = vpop.f32.mrf.mxu0
  %v2866 = vadd.f32 %v2778, %v2865
  %v2867 = vpop.f32.mrf.mxu0
  %v2868 = vpop.f32.mrf.mxu0
  %v2869 = vpop.f32.mrf.mxu0
  %2870 = vdwg.mxu0
  %s2871 = scalar_lea.vmem %s9, 128
  %v2872 = vld [vmem:[%s2871] sm:$0xf]
  %v2873 = vld [vmem:[%s2871 + $0x4] sm:$0xf]
  %v2874 = vld [vmem:[%s2871 + $0x8] sm:$0xf]
  %v2875 = vld [vmem:[%s2871 + $0xc] sm:$0xf]
  %v2876 = vld [vmem:[%s2871 + $0x10] sm:$0xf]
  %v2877 = vld [vmem:[%s2871 + $0x14] sm:$0xf]
  %v2878 = vld [vmem:[%s2871 + $0x18] sm:$0xf]
  %v2879 = vld [vmem:[%s2871 + $0x1c] sm:$0xf]
  %v2880 = vld [vmem:[%s2871 + $0x20] sm:$0xf]
  %v2881 = vld [vmem:[%s2871 + $0x24] sm:$0xf]
  %v2882 = vld [vmem:[%s2871 + $0x28] sm:$0xf]
  %v2883 = vld [vmem:[%s2871 + $0x2c] sm:$0xf]
  %v2884 = vld [vmem:[%s2871 + $0x30] sm:$0xf]
  %v2885 = vld [vmem:[%s2871 + $0x34] sm:$0xf]
  %v2886 = vld [vmem:[%s2871 + $0x38] sm:$0xf]
  %v2887 = vld [vmem:[%s2871 + $0x3c] sm:$0xf]
  %v2904 = vunpack.c.l.b16 %v2872
  %v2905 = vunpack.c.l.b16 %v2873
  %v2906 = vunpack.c.l.b16 %v2874
  %v2907 = vunpack.c.l.b16 %v2875
  %v2908 = vunpack.c.l.b16 %v2876
  %v2909 = vunpack.c.l.b16 %v2877
  %v2910 = vunpack.c.l.b16 %v2878
  %v2911 = vunpack.c.l.b16 %v2879
  %v2912 = vunpack.c.l.b16 %v2880
  %v2913 = vunpack.c.l.b16 %v2881
  %v2914 = vunpack.c.l.b16 %v2882
  %v2915 = vunpack.c.l.b16 %v2883
  %v2916 = vunpack.c.l.b16 %v2884
  %v2917 = vunpack.c.l.b16 %v2885
  %v2918 = vunpack.c.l.b16 %v2886
  %v2919 = vunpack.c.l.b16 %v2887
  %v2920 = vpack.c.b16 %v2905, %v2904
  %v2921 = vpack.c.b16 %v2907, %v2906
  %v2922 = vpack.c.b16 %v2909, %v2908
  %v2923 = vpack.c.b16 %v2911, %v2910
  %v2924 = vpack.c.b16 %v2913, %v2912
  %v2925 = vpack.c.b16 %v2915, %v2914
  %v2926 = vpack.c.b16 %v2917, %v2916
  %v2927 = vpack.c.b16 %v2919, %v2918
  %2936 = vmatprep.subr.bf16.mxu0 0
  %2937 = vmatpush1.bf16.msra.mxu0 %v2927
  %2938 = vmatprep.subr.bf16.mxu0 0
  %2939 = vmatpush1.bf16.msra.mxu0 %v2926
  %2940 = vmatprep.subr.bf16.mxu0 0
  %2941 = vmatpush1.bf16.msra.mxu0 %v2925
  %2942 = vmatprep.subr.bf16.mxu0 0
  %2943 = vmatpush1.bf16.msra.mxu0 %v2924
  %2944 = vmatprep.subr.bf16.mxu0 0
  %2945 = vmatpush1.bf16.msra.mxu0 %v2923
  %2946 = vmatprep.subr.bf16.mxu0 0
  %2947 = vmatpush1.bf16.msra.mxu0 %v2922
  %2948 = vmatprep.subr.bf16.mxu0 0
  %2949 = vmatpush1.bf16.msra.mxu0 %v2921
  %2950 = vmatprep.subr.bf16.mxu0 0
  %2951 = vmatpush1.bf16.msra.mxu0 %v2920
  %2952 = vmatprep.subr.bf16.mxu0 0
  %2953 = vmatpush2.bf16.msra.mxu0 0
  %2954 = vmatprep.subr.bf16.mxu0 0
  %2955 = vmatpush2.bf16.msra.mxu0 0
  %2956 = vmatprep.subr.bf16.mxu0 0
  %2957 = vmatpush2.bf16.msra.mxu0 0
  %2958 = vmatprep.subr.bf16.mxu0 0
  %2959 = vmatpush2.bf16.msra.mxu0 0
  %2960 = vmatprep.subr.bf16.mxu0 0
  %2961 = vmatpush2.bf16.msra.mxu0 0
  %2962 = vmatprep.subr.bf16.mxu0 0
  %2963 = vmatpush2.bf16.msra.mxu0 0
  %2964 = vmatprep.subr.bf16.mxu0 0
  %2965 = vmatpush2.bf16.msra.mxu0 0
  %2966 = vmatprep.subr.bf16.mxu0 0
  %2967 = vmatpush2.bf16.msra.mxu0 0
  %2968 = vmatprep.mubr.bf16.mxu0 0
  %2969 = vmatmul.mubr.bf16.gmra.mxu0 %v2657
  %v2970 = vpop.f32.mrf.mxu0
  %v2971 = vadd.f32 0.0, %v2970
  %v2972 = vpop.f32.mrf.mxu0
  %v2973 = vpop.f32.mrf.mxu0
  %v2974 = vpop.f32.mrf.mxu0
  %2975 = vdwg.mxu0
  %v2976 = vadd.f32 %v2866, %v2971
  %s2977 = scalar_lea.vmem %s9, 192
  %v2978 = vld [vmem:[%s2977] sm:$0xf]
  %v2979 = vld [vmem:[%s2977 + $0x4] sm:$0xf]
  %v2980 = vld [vmem:[%s2977 + $0x8] sm:$0xf]
  %v2981 = vld [vmem:[%s2977 + $0xc] sm:$0xf]
  %v2982 = vld [vmem:[%s2977 + $0x10] sm:$0xf]
  %v2983 = vld [vmem:[%s2977 + $0x14] sm:$0xf]
  %v2984 = vld [vmem:[%s2977 + $0x18] sm:$0xf]
  %v2985 = vld [vmem:[%s2977 + $0x1c] sm:$0xf]
  %v2986 = vld [vmem:[%s2977 + $0x20] sm:$0xf]
  %v2987 = vld [vmem:[%s2977 + $0x24] sm:$0xf]
  %v2988 = vld [vmem:[%s2977 + $0x28] sm:$0xf]
  %v2989 = vld [vmem:[%s2977 + $0x2c] sm:$0xf]
  %v2990 = vld [vmem:[%s2977 + $0x30] sm:$0xf]
  %v2991 = vld [vmem:[%s2977 + $0x34] sm:$0xf]
  %v2992 = vld [vmem:[%s2977 + $0x38] sm:$0xf]
  %v2993 = vld [vmem:[%s2977 + $0x3c] sm:$0xf]
  %v2995 = vrot.slane %v2657, 4
  %v3013 = vunpack.c.l.b16 %v2978
  %v3014 = vunpack.c.l.b16 %v2979
  %v3015 = vunpack.c.l.b16 %v2980
  %v3016 = vunpack.c.l.b16 %v2981
  %v3017 = vunpack.c.l.b16 %v2982
  %v3018 = vunpack.c.l.b16 %v2983
  %v3019 = vunpack.c.l.b16 %v2984
  %v3020 = vunpack.c.l.b16 %v2985
  %v3021 = vunpack.c.l.b16 %v2986
  %v3022 = vunpack.c.l.b16 %v2987
  %v3023 = vunpack.c.l.b16 %v2988
  %v3024 = vunpack.c.l.b16 %v2989
  %v3025 = vunpack.c.l.b16 %v2990
  %v3026 = vunpack.c.l.b16 %v2991
  %v3027 = vunpack.c.l.b16 %v2992
  %v3028 = vunpack.c.l.b16 %v2993
  %v3029 = vpack.c.b16 %v3014, %v3013
  %v3030 = vpack.c.b16 %v3016, %v3015
  %v3031 = vpack.c.b16 %v3018, %v3017
  %v3032 = vpack.c.b16 %v3020, %v3019
  %v3033 = vpack.c.b16 %v3022, %v3021
  %v3034 = vpack.c.b16 %v3024, %v3023
  %v3035 = vpack.c.b16 %v3026, %v3025
  %v3036 = vpack.c.b16 %v3028, %v3027
  %3045 = vmatprep.subr.bf16.mxu0 0
  %3046 = vmatpush1.bf16.msra.mxu0 %v3036
  %3047 = vmatprep.subr.bf16.mxu0 0
  %3048 = vmatpush1.bf16.msra.mxu0 %v3035
  %3049 = vmatprep.subr.bf16.mxu0 0
  %3050 = vmatpush1.bf16.msra.mxu0 %v3034
  %3051 = vmatprep.subr.bf16.mxu0 0
  %3052 = vmatpush1.bf16.msra.mxu0 %v3033
  %3053 = vmatprep.subr.bf16.mxu0 0
  %3054 = vmatpush1.bf16.msra.mxu0 %v3032
  %3055 = vmatprep.subr.bf16.mxu0 0
  %3056 = vmatpush1.bf16.msra.mxu0 %v3031
  %3057 = vmatprep.subr.bf16.mxu0 0
  %3058 = vmatpush1.bf16.msra.mxu0 %v3030
  %3059 = vmatprep.subr.bf16.mxu0 0
  %3060 = vmatpush1.bf16.msra.mxu0 %v3029
  %3061 = vmatprep.subr.bf16.mxu0 0
  %3062 = vmatpush2.bf16.msra.mxu0 0
  %3063 = vmatprep.subr.bf16.mxu0 0
  %3064 = vmatpush2.bf16.msra.mxu0 0
  %3065 = vmatprep.subr.bf16.mxu0 0
  %3066 = vmatpush2.bf16.msra.mxu0 0
  %3067 = vmatprep.subr.bf16.mxu0 0
  %3068 = vmatpush2.bf16.msra.mxu0 0
  %3069 = vmatprep.subr.bf16.mxu0 0
  %3070 = vmatpush2.bf16.msra.mxu0 0
  %3071 = vmatprep.subr.bf16.mxu0 0
  %3072 = vmatpush2.bf16.msra.mxu0 0
  %3073 = vmatprep.subr.bf16.mxu0 0
  %3074 = vmatpush2.bf16.msra.mxu0 0
  %3075 = vmatprep.subr.bf16.mxu0 0
  %3076 = vmatpush2.bf16.msra.mxu0 0
  %3077 = vmatprep.mubr.bf16.mxu0 0
  %3078 = vmatmul.mubr.bf16.gmra.mxu0 %v2995
  %v3079 = vpop.f32.mrf.mxu0
  %v3080 = vadd.f32 0.0, %v3079
  %v3081 = vpop.f32.mrf.mxu0
  %v3082 = vpop.f32.mrf.mxu0
  %v3083 = vpop.f32.mrf.mxu0
  %3084 = vdwg.mxu0
  %v3085 = vadd.f32 %v2976, %v3080
  %s3086 = scalar_lea.vmem %s9, 256
  %v3087 = vld [vmem:[%s3086] sm:$0xf]
  %v3088 = vld [vmem:[%s3086 + $0x4] sm:$0xf]
  %v3089 = vld [vmem:[%s3086 + $0x8] sm:$0xf]
  %v3090 = vld [vmem:[%s3086 + $0xc] sm:$0xf]
  %v3091 = vld [vmem:[%s3086 + $0x10] sm:$0xf]
  %v3092 = vld [vmem:[%s3086 + $0x14] sm:$0xf]
  %v3093 = vld [vmem:[%s3086 + $0x18] sm:$0xf]
  %v3094 = vld [vmem:[%s3086 + $0x1c] sm:$0xf]
  %v3095 = vld [vmem:[%s3086 + $0x20] sm:$0xf]
  %v3096 = vld [vmem:[%s3086 + $0x24] sm:$0xf]
  %v3097 = vld [vmem:[%s3086 + $0x28] sm:$0xf]
  %v3098 = vld [vmem:[%s3086 + $0x2c] sm:$0xf]
  %v3099 = vld [vmem:[%s3086 + $0x30] sm:$0xf]
  %v3100 = vld [vmem:[%s3086 + $0x34] sm:$0xf]
  %v3101 = vld [vmem:[%s3086 + $0x38] sm:$0xf]
  %v3102 = vld [vmem:[%s3086 + $0x3c] sm:$0xf]
  %v3119 = vunpack.c.l.b16 %v3087
  %v3120 = vunpack.c.l.b16 %v3088
  %v3121 = vunpack.c.l.b16 %v3089
  %v3122 = vunpack.c.l.b16 %v3090
  %v3123 = vunpack.c.l.b16 %v3091
  %v3124 = vunpack.c.l.b16 %v3092
  %v3125 = vunpack.c.l.b16 %v3093
  %v3126 = vunpack.c.l.b16 %v3094
  %v3127 = vunpack.c.l.b16 %v3095
  %v3128 = vunpack.c.l.b16 %v3096
  %v3129 = vunpack.c.l.b16 %v3097
  %v3130 = vunpack.c.l.b16 %v3098
  %v3131 = vunpack.c.l.b16 %v3099
  %v3132 = vunpack.c.l.b16 %v3100
  %v3133 = vunpack.c.l.b16 %v3101
  %v3134 = vunpack.c.l.b16 %v3102
  %v3135 = vpack.c.b16 %v3120, %v3119
  %v3136 = vpack.c.b16 %v3122, %v3121
  %v3137 = vpack.c.b16 %v3124, %v3123
  %v3138 = vpack.c.b16 %v3126, %v3125
  %v3139 = vpack.c.b16 %v3128, %v3127
  %v3140 = vpack.c.b16 %v3130, %v3129
  %v3141 = vpack.c.b16 %v3132, %v3131
  %v3142 = vpack.c.b16 %v3134, %v3133
  %3151 = vmatprep.subr.bf16.mxu0 0
  %3152 = vmatpush1.bf16.msra.mxu0 %v3142
  %3153 = vmatprep.subr.bf16.mxu0 0
  %3154 = vmatpush1.bf16.msra.mxu0 %v3141
  %3155 = vmatprep.subr.bf16.mxu0 0
  %3156 = vmatpush1.bf16.msra.mxu0 %v3140
  %3157 = vmatprep.subr.bf16.mxu0 0
  %3158 = vmatpush1.bf16.msra.mxu0 %v3139
  %3159 = vmatprep.subr.bf16.mxu0 0
  %3160 = vmatpush1.bf16.msra.mxu0 %v3138
  %3161 = vmatprep.subr.bf16.mxu0 0
  %3162 = vmatpush1.bf16.msra.mxu0 %v3137
  %3163 = vmatprep.subr.bf16.mxu0 0
  %3164 = vmatpush1.bf16.msra.mxu0 %v3136
  %3165 = vmatprep.subr.bf16.mxu0 0
  %3166 = vmatpush1.bf16.msra.mxu0 %v3135
  %3167 = vmatprep.subr.bf16.mxu0 0
  %3168 = vmatpush2.bf16.msra.mxu0 0
  %3169 = vmatprep.subr.bf16.mxu0 0
  %3170 = vmatpush2.bf16.msra.mxu0 0
  %3171 = vmatprep.subr.bf16.mxu0 0
  %3172 = vmatpush2.bf16.msra.mxu0 0
  %3173 = vmatprep.subr.bf16.mxu0 0
  %3174 = vmatpush2.bf16.msra.mxu0 0
  %3175 = vmatprep.subr.bf16.mxu0 0
  %3176 = vmatpush2.bf16.msra.mxu0 0
  %3177 = vmatprep.subr.bf16.mxu0 0
  %3178 = vmatpush2.bf16.msra.mxu0 0
  %3179 = vmatprep.subr.bf16.mxu0 0
  %3180 = vmatpush2.bf16.msra.mxu0 0
  %3181 = vmatprep.subr.bf16.mxu0 0
  %3182 = vmatpush2.bf16.msra.mxu0 0
  %3183 = vmatprep.mubr.bf16.mxu0 0
  %3184 = vmatmul.mubr.bf16.gmra.mxu0 %v2658
  %v3185 = vpop.f32.mrf.mxu0
  %v3186 = vadd.f32 0.0, %v3185
  %v3187 = vpop.f32.mrf.mxu0
  %v3188 = vpop.f32.mrf.mxu0
  %v3189 = vpop.f32.mrf.mxu0
  %3190 = vdwg.mxu0
  %v3191 = vadd.f32 %v3085, %v3186
  %v3192 = vld [vmem:[%s10] sm:$0x1]
  %v3194 = vlaneseq
  %v3195 = vshrl.u32 %v3194, 7
  %v3196 = vsub.s32 0, %v3195
  %v3197 = vrot.slane %v3192, %v3196
  %v3199 = vadd.f32 %v3191, %v3197
  %v3200 = vmax.f32 %v3199, 0.0
  %v3201 = vpack.c.bf16 %v3200, %v3200
  %v3202 = vld [vmem:[%s11] sm:$0xf]
  %v3203 = vld [vmem:[%s11 + $0x4] sm:$0xf]
  %v3204 = vld [vmem:[%s11 + $0x8] sm:$0xf]
  %v3205 = vld [vmem:[%s11 + $0xc] sm:$0xf]
  %v3206 = vld [vmem:[%s11 + $0x10] sm:$0xf]
  %v3207 = vld [vmem:[%s11 + $0x14] sm:$0xf]
  %v3208 = vld [vmem:[%s11 + $0x18] sm:$0xf]
  %v3209 = vld [vmem:[%s11 + $0x1c] sm:$0xf]
  %v3210 = vld [vmem:[%s11 + $0x20] sm:$0xf]
  %v3211 = vld [vmem:[%s11 + $0x24] sm:$0xf]
  %v3212 = vld [vmem:[%s11 + $0x28] sm:$0xf]
  %v3213 = vld [vmem:[%s11 + $0x2c] sm:$0xf]
  %v3214 = vld [vmem:[%s11 + $0x30] sm:$0xf]
  %v3215 = vld [vmem:[%s11 + $0x34] sm:$0xf]
  %v3216 = vld [vmem:[%s11 + $0x38] sm:$0xf]
  %v3217 = vld [vmem:[%s11 + $0x3c] sm:$0xf]
  %v3218 = vld [vmem:[%s12] sm:$0x1]
  %v3220 = vlaneseq
  %v3221 = vshrl.u32 %v3220, 7
  %v3222 = vsub.s32 0, %v3221
  %v3223 = vrot.slane %v3218, %v3222
  %v3241 = vunpack.c.l.b16 %v3202
  %v3242 = vunpack.c.l.b16 %v3203
  %v3243 = vunpack.c.l.b16 %v3204
  %v3244 = vunpack.c.l.b16 %v3205
  %v3245 = vunpack.c.l.b16 %v3206
  %v3246 = vunpack.c.l.b16 %v3207
  %v3247 = vunpack.c.l.b16 %v3208
  %v3248 = vunpack.c.l.b16 %v3209
  %v3249 = vunpack.c.l.b16 %v3210
  %v3250 = vunpack.c.l.b16 %v3211
  %v3251 = vunpack.c.l.b16 %v3212
  %v3252 = vunpack.c.l.b16 %v3213
  %v3253 = vunpack.c.l.b16 %v3214
  %v3254 = vunpack.c.l.b16 %v3215
  %v3255 = vunpack.c.l.b16 %v3216
  %v3256 = vunpack.c.l.b16 %v3217
  %v3257 = vpack.c.b16 %v3242, %v3241
  %v3258 = vpack.c.b16 %v3244, %v3243
  %v3259 = vpack.c.b16 %v3246, %v3245
  %v3260 = vpack.c.b16 %v3248, %v3247
  %v3261 = vpack.c.b16 %v3250, %v3249
  %v3262 = vpack.c.b16 %v3252, %v3251
  %v3263 = vpack.c.b16 %v3254, %v3253
  %v3264 = vpack.c.b16 %v3256, %v3255
  %3273 = vmatprep.subr.bf16.mxu0 0
  %3274 = vmatpush1.bf16.msra.mxu0 %v3264
  %3275 = vmatprep.subr.bf16.mxu0 0
  %3276 = vmatpush1.bf16.msra.mxu0 %v3263
  %3277 = vmatprep.subr.bf16.mxu0 0
  %3278 = vmatpush1.bf16.msra.mxu0 %v3262
  %3279 = vmatprep.subr.bf16.mxu0 0
  %3280 = vmatpush1.bf16.msra.mxu0 %v3261
  %3281 = vmatprep.subr.bf16.mxu0 0
  %3282 = vmatpush1.bf16.msra.mxu0 %v3260
  %3283 = vmatprep.subr.bf16.mxu0 0
  %3284 = vmatpush1.bf16.msra.mxu0 %v3259
  %3285 = vmatprep.subr.bf16.mxu0 0
  %3286 = vmatpush1.bf16.msra.mxu0 %v3258
  %3287 = vmatprep.subr.bf16.mxu0 0
  %3288 = vmatpush1.bf16.msra.mxu0 %v3257
  %3289 = vmatprep.subr.bf16.mxu0 0
  %3290 = vmatpush2.bf16.msra.mxu0 0
  %3291 = vmatprep.subr.bf16.mxu0 0
  %3292 = vmatpush2.bf16.msra.mxu0 0
  %3293 = vmatprep.subr.bf16.mxu0 0
  %3294 = vmatpush2.bf16.msra.mxu0 0
  %3295 = vmatprep.subr.bf16.mxu0 0
  %3296 = vmatpush2.bf16.msra.mxu0 0
  %3297 = vmatprep.subr.bf16.mxu0 0
  %3298 = vmatpush2.bf16.msra.mxu0 0
  %3299 = vmatprep.subr.bf16.mxu0 0
  %3300 = vmatpush2.bf16.msra.mxu0 0
  %3301 = vmatprep.subr.bf16.mxu0 0
  %3302 = vmatpush2.bf16.msra.mxu0 0
  %3303 = vmatprep.subr.bf16.mxu0 0
  %3304 = vmatpush2.bf16.msra.mxu0 0
  %3305 = vmatprep.mubr.bf16.mxu0 0
  %3306 = vmatmul.mubr.bf16.gmra.mxu0 %v3201
  %v3307 = vpop.f32.mrf.mxu0
  %v3308 = vadd.f32 %v3223, %v3307
  %v3309 = vpop.f32.mrf.mxu0
  %v3310 = vpop.f32.mrf.mxu0
  %v3311 = vpop.f32.mrf.mxu0
  %3312 = vdwg.mxu0
  %v3313 = vmax.f32 %v3308, 0.0
  %v3314 = vpack.c.bf16 %v3313, %v3313
  %v3315 = vld [vmem:[%s13] sm:$0xf]
  %v3316 = vld [vmem:[%s13 + $0x4] sm:$0xf]
  %v3317 = vld [vmem:[%s13 + $0x8] sm:$0xf]
  %v3318 = vld [vmem:[%s13 + $0xc] sm:$0xf]
  %v3319 = vld [vmem:[%s13 + $0x10] sm:$0xf]
  %v3320 = vld [vmem:[%s13 + $0x14] sm:$0xf]
  %v3321 = vld [vmem:[%s13 + $0x18] sm:$0xf]
  %v3322 = vld [vmem:[%s13 + $0x1c] sm:$0xf]
  %v3323 = vld [vmem:[%s13 + $0x20] sm:$0xf]
  %v3324 = vld [vmem:[%s13 + $0x24] sm:$0xf]
  %v3325 = vld [vmem:[%s13 + $0x28] sm:$0xf]
  %v3326 = vld [vmem:[%s13 + $0x2c] sm:$0xf]
  %v3327 = vld [vmem:[%s13 + $0x30] sm:$0xf]
  %v3328 = vld [vmem:[%s13 + $0x34] sm:$0xf]
  %v3329 = vld [vmem:[%s13 + $0x38] sm:$0xf]
  %v3330 = vld [vmem:[%s13 + $0x3c] sm:$0xf]
  %v3331 = vld [vmem:[%s14] sm:$0x1]
  %v3333 = vlaneseq
  %v3334 = vshrl.u32 %v3333, 7
  %v3335 = vsub.s32 0, %v3334
  %v3336 = vrot.slane %v3331, %v3335
  %v3354 = vunpack.c.l.b16 %v3315
  %v3355 = vunpack.c.l.b16 %v3316
  %v3356 = vunpack.c.l.b16 %v3317
  %v3357 = vunpack.c.l.b16 %v3318
  %v3358 = vunpack.c.l.b16 %v3319
  %v3359 = vunpack.c.l.b16 %v3320
  %v3360 = vunpack.c.l.b16 %v3321
  %v3361 = vunpack.c.l.b16 %v3322
  %v3362 = vunpack.c.l.b16 %v3323
  %v3363 = vunpack.c.l.b16 %v3324
  %v3364 = vunpack.c.l.b16 %v3325
  %v3365 = vunpack.c.l.b16 %v3326
  %v3366 = vunpack.c.l.b16 %v3327
  %v3367 = vunpack.c.l.b16 %v3328
  %v3368 = vunpack.c.l.b16 %v3329
  %v3369 = vunpack.c.l.b16 %v3330
  %v3370 = vpack.c.b16 %v3355, %v3354
  %v3371 = vpack.c.b16 %v3357, %v3356
  %v3372 = vpack.c.b16 %v3359, %v3358
  %v3373 = vpack.c.b16 %v3361, %v3360
  %v3374 = vpack.c.b16 %v3363, %v3362
  %v3375 = vpack.c.b16 %v3365, %v3364
  %v3376 = vpack.c.b16 %v3367, %v3366
  %v3377 = vpack.c.b16 %v3369, %v3368
  %3386 = vmatprep.subr.bf16.mxu0 0
  %3387 = vmatpush1.bf16.msra.mxu0 %v3377
  %3388 = vmatprep.subr.bf16.mxu0 0
  %3389 = vmatpush1.bf16.msra.mxu0 %v3376
  %3390 = vmatprep.subr.bf16.mxu0 0
  %3391 = vmatpush1.bf16.msra.mxu0 %v3375
  %3392 = vmatprep.subr.bf16.mxu0 0
  %3393 = vmatpush1.bf16.msra.mxu0 %v3374
  %3394 = vmatprep.subr.bf16.mxu0 0
  %3395 = vmatpush1.bf16.msra.mxu0 %v3373
  %3396 = vmatprep.subr.bf16.mxu0 0
  %3397 = vmatpush1.bf16.msra.mxu0 %v3372
  %3398 = vmatprep.subr.bf16.mxu0 0
  %3399 = vmatpush1.bf16.msra.mxu0 %v3371
  %3400 = vmatprep.subr.bf16.mxu0 0
  %3401 = vmatpush1.bf16.msra.mxu0 %v3370
  %3402 = vmatprep.subr.bf16.mxu0 0
  %3403 = vmatpush2.bf16.msra.mxu0 0
  %3404 = vmatprep.subr.bf16.mxu0 0
  %3405 = vmatpush2.bf16.msra.mxu0 0
  %3406 = vmatprep.subr.bf16.mxu0 0
  %3407 = vmatpush2.bf16.msra.mxu0 0
  %3408 = vmatprep.subr.bf16.mxu0 0
  %3409 = vmatpush2.bf16.msra.mxu0 0
  %3410 = vmatprep.subr.bf16.mxu0 0
  %3411 = vmatpush2.bf16.msra.mxu0 0
  %3412 = vmatprep.subr.bf16.mxu0 0
  %3413 = vmatpush2.bf16.msra.mxu0 0
  %3414 = vmatprep.subr.bf16.mxu0 0
  %3415 = vmatpush2.bf16.msra.mxu0 0
  %3416 = vmatprep.subr.bf16.mxu0 0
  %3417 = vmatpush2.bf16.msra.mxu0 0
  %3418 = vmatprep.mubr.bf16.mxu0 0
  %3419 = vmatmul.mubr.bf16.gmra.mxu0 %v3314
  %v3420 = vpop.f32.mrf.mxu0
  %v3421 = vadd.f32 %v3336, %v3420
  %v3422 = vpop.f32.mrf.mxu0
  %v3423 = vpop.f32.mrf.mxu0
  %v3424 = vpop.f32.mrf.mxu0
  %3425 = vdwg.mxu0
  %3426 = vst [vmem:[%s15] sm:$0xff] %v3421
  // Predicated region
  $region62: #{lenet_forward.1} parent=0 // pred_check
    _
  $region63: #{lenet_forward.1} parent=0 // pred_check_branch
    %3428 = sbr.rel (0) target = $region65
  $region64: #{lenet_forward.1} parent=0 // pred_region
    _
  $region65: #{lenet_forward.1} parent=0 // pred_fallthru
    _
  // Predicated region
  $region66: #{lenet_forward.1} parent=0 // pred_check
    _
  $region67: #{lenet_forward.1} parent=0 // pred_check_branch
    %3430 = sbr.rel (0) target = $region69
  $region68: #{lenet_forward.1} parent=0 // pred_region
    _
  $region69: #{lenet_forward.1} parent=0 // pred_fallthru
    _

</llo_original>
